<compile_context>
chip_gen: v7x
topology: tpu7x:2x2x1
jax: 0.10.0
libtpu: 0.0.40
codegen_flags: <defaults>
</compile_context>

<pallas_src>
import functools
import math

import jax
import jax.numpy as jnp
from jax.experimental import pallas as pl
from jax.experimental.pallas import tpu as pltpu

# ----------------------------- configuration --------------------------------
IMG_DIM = 16
PATCH_DIM = 4
NUM_CHANNELS = 4
EMBED_DIM = 32
NUM_HEADS = 4
NUM_LAYERS = 2
HIDDEN_DIM = 32
OUT_DIM = 8

NUM_PATCHES = (IMG_DIM // PATCH_DIM) ** 2           # 16
SEQ_LEN = NUM_PATCHES + 1                            # 17
FLATTEN_DIM = PATCH_DIM * PATCH_DIM * NUM_CHANNELS   # 64
HEAD_DIM = EMBED_DIM // NUM_HEADS                     # 8
LN_EPS = 1e-5                                         # nn.LayerNorm default
ATTN_SCALE = float(HEAD_DIM) ** -0.5
# dropout_rate = attn_dropout_rate = 0.0 -> every Dropout is identity.

# -------- packed bias/LN vector rows (all rows padded to EMBED_DIM lanes) ----
# per layer l (base = 7*l): +0 ln1_g, +1 ln1_b, +2 b_proj, +3 ln2_g, +4 ln2_b,
#                           +5 ff_b1, +6 ff_b2
_VB = 7 * NUM_LAYERS
VEC_SINGLE_W = _VB + 0      # mlp_single weight (P values)
VEC_SFLB     = _VB + 1      # sfl_b + single_b (folded)
VEC_SIAG     = _VB + 2
VEC_SIAB     = _VB + 3
VEC_SIABP    = _VB + 4      # SIA output-proj bias
VEC_PREG     = _VB + 5
VEC_PREB     = _VB + 6
VEC_HB1      = _VB + 7
VEC_HB2      = _VB + 8      # head_b2 (OUT_DIM values, zero padded)
NVEC         = _VB + 9


# --------------------------- in-kernel helpers -------------------------------

def _layernorm(x, g, b):
    mu = jnp.mean(x, axis=-1, keepdims=True)
    xc = x - mu
    var = jnp.mean(xc * xc, axis=-1, keepdims=True)   # biased, like PyTorch
    return xc * jax.lax.rsqrt(var + LN_EPS) * g + b


def _erf_f32(x):
    # Abramowitz & Stegun 7.1.26, |err| < 1.5e-7.
    a1, a2, a3, a4, a5 = 0.254829592, -0.284496736, 1.421413741, -1.453152027, 1.061405429
    p = 0.3275911
    ax = jnp.abs(x)
    t = 1.0 / (1.0 + p * ax)
    poly = ((((a5 * t + a4) * t + a3) * t + a2) * t + a1) * t
    y = 1.0 - poly * jnp.exp(-ax * ax)
    return jnp.where(x < 0.0, -y, y)


def _gelu_exact(x):
    # nn.GELU() default = exact (erf) GELU
    return 0.5 * x * (1.0 + _erf_f32(x * (1.0 / math.sqrt(2.0))))


def _softmax_rows(s):
    m = jnp.max(s, axis=-1, keepdims=True)
    p = jnp.exp(s - m)
    return p * pl.reciprocal(jnp.sum(p, axis=-1, keepdims=True), approx=True)


# ------------------------------ fused kernel ---------------------------------

def _stvt_kernel(xp_ref, lin_w_ref, seqbias_ref, vecs_ref, wqkv_ref, wsmall_ref,
                 multi_ref, tailw_ref, out_ref, *, bb):
    f32 = jnp.float32
    S, E, P, Dh = SEQ_LEN, EMBED_DIM, NUM_PATCHES, HEAD_DIM

    vecs = vecs_ref[...]                                # (NVEC, E) -- one tile

    def vrow(i):                                        # static row slice, free
        return vecs[i:i + 1, :]

    # --- patch embedding; cls token / pos encoding / embed bias folded into
    #     seq_bias (row 0 of each item's xp block is zeros -> cls position).
    xp = xp_ref[...].reshape(bb * S, FLATTEN_DIM)
    sb = seqbias_ref[...]
    if bb > 1:
        sb = jnp.concatenate([sb] * bb, axis=0)
    x = jnp.dot(xp, lin_w_ref[...], preferred_element_type=f32) + sb      # (bb*S, E)

    # --- transformer encoder (unrolled; per-item attention keeps items apart)
    for l in range(NUM_LAYERS):
        base = 7 * l
        h = _layernorm(x, vrow(base + 0), vrow(base + 1))
        qkv = jnp.dot(h, wqkv_ref[l], preferred_element_type=f32)         # (bb*S, 3E)
        per_item = []
        for b in range(bb):
            r0 = b * S
            heads = []
            for hd in range(NUM_HEADS):
                c0 = hd * Dh
                q = qkv[r0:r0 + S, c0:c0 + Dh]
                k = qkv[r0:r0 + S, E + c0:E + c0 + Dh]
                v = qkv[r0:r0 + S, 2 * E + c0:2 * E + c0 + Dh]
                s = jax.lax.dot_general(q, k, (((1,), (1,)), ((), ())),
                                        preferred_element_type=f32) * ATTN_SCALE
                heads.append(jnp.dot(_softmax_rows(s), v,
                                     preferred_element_type=f32))          # (S, Dh)
            per_item.append(jnp.concatenate(heads, axis=-1))               # (S, E)
        ao = per_item[0] if bb == 1 else jnp.concatenate(per_item, axis=0)  # (bb*S, E)
        x = x + jnp.dot(ao, wsmall_ref[l, 0], preferred_element_type=f32) + vrow(base + 2)
        h2 = _layernorm(x, vrow(base + 3), vrow(base + 4))
        f = jnp.dot(h2, wsmall_ref[l, 1], preferred_element_type=f32) + vrow(base + 5)
        f = _gelu_exact(f)
        f = jnp.dot(f, wsmall_ref[l, 2], preferred_element_type=f32) + vrow(base + 6)
        x = x + f

    # --- tail: mlp_multi / mlp_single / per-patch branch ----------------------
    multi = multi_ref[...]                               # (P, S+1): [multi_wT | multi_b]
    mw = multi[:, :S]                                    # (P, S)
    mb = multi[:, S:S + 1]                               # (P, 1)
    single_w = vrow(VEC_SINGLE_W)[:, :P]                 # (1, P)
    sfl_w = tailw_ref[0]

    x1_items = []
    for b in range(bb):
        xb = x if bb == 1 else x[b * S:(b + 1) * S]                        # (S, E)
        xmt = jnp.dot(mw, xb, preferred_element_type=f32) + mb             # (P, E)
        orix1 = jnp.dot(single_w, xmt, preferred_element_type=f32)         # (1, E)
        x1_items.append(jnp.dot(xmt, sfl_w, preferred_element_type=f32)
                        + vrow(VEC_SFLB) + orix1)                          # (P, E)
    x1 = x1_items[0] if bb == 1 else jnp.concatenate(x1_items, axis=0)     # (bb*P, E)

    x1n = _layernorm(x1, vrow(VEC_SIAG), vrow(VEC_SIAB))
    # SIA over a length-1 sequence: softmax over a single key == 1, so the
    # attention output equals V; only the V- and output-projections remain.
    sia = jnp.dot(jnp.dot(x1n, tailw_ref[1], preferred_element_type=f32),
                  tailw_ref[2], preferred_element_type=f32) + vrow(VEC_SIABP)
    x1s = _layernorm(sia + x1, vrow(VEC_PREG), vrow(VEC_PREB))
    # mlp_head = Linear -> Tanh -> Linear (to_cls_token is identity for seq len 1)
    hh = jnp.tanh(jnp.dot(x1s, tailw_ref[3], preferred_element_type=f32) + vrow(VEC_HB1))
    o = jnp.dot(hh, tailw_ref[4], preferred_element_type=f32) + vrow(VEC_HB2)   # (bb*P, E)
    out_ref[...] = o[:, :OUT_DIM].reshape(bb, P, OUT_DIM)


# ------------------------------ parameters ----------------------------------

def init_params(key):
    def dense(k, fan_in, fan_out):
        kw, kb = jax.random.split(k)
        w = jax.random.normal(kw, (fan_in, fan_out), jnp.float32) * 0.02
        b = jax.random.normal(kb, (fan_out,), jnp.float32) * 0.02
        return w, b

    keys = jax.random.split(key, 10 + NUM_LAYERS)
    params = {}
    params["cls_token"] = jnp.zeros((1, 1, EMBED_DIM), jnp.float32)  # torch.zeros init
    params["pos_emb"] = jax.random.normal(keys[0], (1, SEQ_LEN, EMBED_DIM), jnp.float32) * 0.02
    params["lin_enc_w"], params["lin_enc_b"] = dense(keys[1], FLATTEN_DIM, EMBED_DIM)

    layers = []
    for l in range(NUM_LAYERS):
        k = jax.random.split(keys[2 + l], 4)
        w_qkv, _ = dense(k[0], EMBED_DIM, 3 * EMBED_DIM)            # qkv_bias=False
        w_proj, b_proj = dense(k[1], EMBED_DIM, EMBED_DIM)
        ff_w1, ff_b1 = dense(k[2], EMBED_DIM, HIDDEN_DIM)
        ff_w2, ff_b2 = dense(k[3], HIDDEN_DIM, EMBED_DIM)
        layers.append(dict(
            ln1_g=jnp.ones((EMBED_DIM,), jnp.float32),
            ln1_b=jnp.zeros((EMBED_DIM,), jnp.float32),
            w_qkv=w_qkv, w_proj=w_proj, b_proj=b_proj,
            ln2_g=jnp.ones((EMBED_DIM,), jnp.float32),
            ln2_b=jnp.zeros((EMBED_DIM,), jnp.float32),
            ff_w1=ff_w1, ff_b1=ff_b1, ff_w2=ff_w2, ff_b2=ff_b2,
        ))
    params["layers"] = layers

    base = 2 + NUM_LAYERS
    params["pre_head_ln_g"] = jnp.ones((EMBED_DIM,), jnp.float32)
    params["pre_head_ln_b"] = jnp.zeros((EMBED_DIM,), jnp.float32)
    params["head_w1"], params["head_b1"] = dense(keys[base + 0], EMBED_DIM, HIDDEN_DIM)
    params["head_w2"], params["head_b2"] = dense(keys[base + 1], HIDDEN_DIM, OUT_DIM)
    params["multi_w"], params["multi_b"] = dense(keys[base + 2], SEQ_LEN, NUM_PATCHES)
    params["single_w"], params["single_b"] = dense(keys[base + 3], NUM_PATCHES, 1)
    params["sfl_w"], params["sfl_b"] = dense(keys[base + 4], EMBED_DIM, EMBED_DIM)
    params["sia_norm_g"] = jnp.ones((EMBED_DIM,), jnp.float32)
    params["sia_norm_b"] = jnp.zeros((EMBED_DIM,), jnp.float32)
    params["sia_w_qkv"], _ = dense(keys[base + 5], EMBED_DIM, 3 * EMBED_DIM)  # bias=False
    params["sia_w_proj"], params["sia_b_proj"] = dense(keys[base + 6], EMBED_DIM, EMBED_DIM)
    return params


# -------------------- one-time packing (hoisted out of forward) --------------

def _row(v, width=EMBED_DIM):
    v = jnp.asarray(v, jnp.float32).reshape(-1)
    return jnp.pad(v, (0, width - v.shape[0]))


def prepare_params(params):
    """Repack model params into the small set of kernel operands (run once)."""
    E = EMBED_DIM
    pos = params["pos_emb"][0]                                           # (S, E)
    seq_bias = jnp.concatenate(
        [params["cls_token"].reshape(1, E) + pos[0:1],
         params["lin_enc_b"].reshape(1, E) + pos[1:]], axis=0)           # (S, E)

    wqkv = jnp.stack([lp["w_qkv"] for lp in params["layers"]], axis=0)   # (L, E, 3E)
    wsmall = jnp.stack(
        [jnp.stack([lp["w_proj"], lp["ff_w1"], lp["ff_w2"]], axis=0)
         for lp in params["layers"]], axis=0)                            # (L, 3, E, E)

    multi_op = jnp.concatenate(
        [params["multi_w"].T, params["multi_b"].reshape(NUM_PATCHES, 1)], axis=1)  # (P, S+1)

    head_w2_pad = jnp.pad(params["head_w2"], ((0, 0), (0, E - OUT_DIM)))
    tailw = jnp.stack([params["sfl_w"],
                       params["sia_w_qkv"][:, 2 * E:3 * E],              # Wv of SIA
                       params["sia_w_proj"],
                       params["head_w1"],
                       head_w2_pad], axis=0)                             # (5, E, E)

    rows = []
    for lp in params["layers"]:
        rows += [_row(lp["ln1_g"]), _row(lp["ln1_b"]), _row(lp["b_proj"]),
                 _row(lp["ln2_g"]), _row(lp["ln2_b"]),
                 _row(lp["ff_b1"]), _row(lp["ff_b2"])]
    rows += [
        _row(params["single_w"].reshape(-1)),                            # VEC_SINGLE_W
        _row(params["sfl_b"] + params["single_b"].reshape(())),          # VEC_SFLB
        _row(params["sia_norm_g"]), _row(params["sia_norm_b"]),
        _row(params["sia_b_proj"]),
        _row(params["pre_head_ln_g"]), _row(params["pre_head_ln_b"]),
        _row(params["head_b1"]),
        _row(params["head_b2"]),
    ]
    vecs = jnp.stack(rows, axis=0)                                       # (NVEC, E)
    assert vecs.shape[0] == NVEC

    return dict(lin_w=params["lin_enc_w"], seq_bias=seq_bias, vecs=vecs,
                wqkv=wqkv, wsmall=wsmall, multi_op=multi_op, tailw=tailw)


# ------------------------------ full forward ---------------------------------

def _rep_spec(arr):
    nd = arr.ndim
    return pl.BlockSpec(arr.shape, lambda i, _nd=nd: (0,) * _nd)


def stvt_forward(packed, x):
    bs, c, h, w = x.shape
    p = PATCH_DIM

    # --- patch extraction == unfold(2).unfold(3) -> view -> permute -> view ---
    xp = x.reshape(bs, c, h // p, p, w // p, p)
    xp = xp.transpose(0, 1, 2, 4, 3, 5)                          # (bs,c,hp,wp,p,p)
    xp = xp.reshape(bs, c, NUM_PATCHES, p * p)
    xp = xp.transpose(0, 2, 3, 1).reshape(bs, NUM_PATCHES, FLATTEN_DIM)
    # prepend a zero row: cls position falls out of the same embedding matmul
    xp_aug = jnp.concatenate(
        [jnp.zeros((bs, 1, FLATTEN_DIM), jnp.float32), xp], axis=1)      # (bs, S, F)

    # --- batch folding: 2 parallel grid steps (both v7x TCs), bb items each ---
    num_steps = 2 if bs >= 2 else 1
    bb = -(-bs // num_steps)
    bs_pad = num_steps * bb
    if bs_pad != bs:
        xp_aug = jnp.concatenate(
            [xp_aug, jnp.zeros((bs_pad - bs, SEQ_LEN, FLATTEN_DIM), jnp.float32)],
            axis=0)

    operands = [xp_aug, packed["lin_w"], packed["seq_bias"], packed["vecs"],
                packed["wqkv"], packed["wsmall"], packed["multi_op"], packed["tailw"]]

    in_specs = [pl.BlockSpec((bb, SEQ_LEN, FLATTEN_DIM), lambda i: (i, 0, 0))]
    in_specs += [_rep_spec(a) for a in operands[1:]]

    out = pl.pallas_call(
        functools.partial(_stvt_kernel, bb=bb),
        out_shape=jax.ShapeDtypeStruct((bs_pad, NUM_PATCHES, OUT_DIM), jnp.float32),
        grid=(num_steps,),
        in_specs=in_specs,
        out_specs=pl.BlockSpec((bb, NUM_PATCHES, OUT_DIM), lambda i: (i, 0, 0)),
        compiler_params=pltpu.CompilerParams(dimension_semantics=("parallel",)),
    )(*operands)

    out = out[:bs]
    return out.transpose(1, 0, 2)                                # (P, bs, out_dim)


# ---------------------------------- main -------------------------------------

if __name__ == "__main__":
    key = jax.random.PRNGKey(0)
    pkey, xkey = jax.random.split(key)
    params = init_params(pkey)
    packed = prepare_params(params)          # one-time repack, hoisted out of forward
    x = jax.random.normal(xkey, (2, NUM_CHANNELS, IMG_DIM, IMG_DIM), jnp.float32)

    out = jax.jit(stvt_forward)(packed, x)
    out = jax.block_until_ready(out)

    assert out.shape == (NUM_PATCHES, 2, OUT_DIM), out.shape
    assert out.dtype == jnp.float32
    assert bool(jnp.all(jnp.isfinite(out)))
    print("KERNEL_OK")
</pallas_src>

<mosaic_0001>
module attributes {stable_mosaic.version = 11 : i64} {
  func.func @_stvt_kernel(%arg0: i32, %arg1: memref<1x17x64xf32, #tpu.memory_space<vmem>>, %arg2: memref<64x32xf32, #tpu.memory_space<vmem>>, %arg3: memref<17x32xf32, #tpu.memory_space<vmem>>, %arg4: memref<23x32xf32, #tpu.memory_space<vmem>>, %arg5: memref<2x32x96xf32, #tpu.memory_space<vmem>>, %arg6: memref<2x3x32x32xf32, #tpu.memory_space<vmem>>, %arg7: memref<16x18xf32, #tpu.memory_space<vmem>>, %arg8: memref<5x32x32xf32, #tpu.memory_space<vmem>>, %arg9: memref<1x16x8xf32, #tpu.memory_space<vmem>>) attributes {dimension_semantics = [#tpu.dimension_semantics<parallel>], iteration_bounds = array<i64: 2>, scalar_prefetch = 0 : i64, scratch_operands = 0 : i64, tpu.core_type = #tpu.core_type<tc>, window_params = [{transform_indices = @transform_0, window_bounds = array<i64: 1, 17, 64>}, {pipeline_mode = #tpu.pipeline_mode<synchronous>, transform_indices = @transform_1, window_bounds = array<i64: 64, 32>}, {pipeline_mode = #tpu.pipeline_mode<synchronous>, transform_indices = @transform_2, window_bounds = array<i64: 17, 32>}, {pipeline_mode = #tpu.pipeline_mode<synchronous>, transform_indices = @transform_3, window_bounds = array<i64: 23, 32>}, {pipeline_mode = #tpu.pipeline_mode<synchronous>, transform_indices = @transform_4, window_bounds = array<i64: 2, 32, 96>}, {pipeline_mode = #tpu.pipeline_mode<synchronous>, transform_indices = @transform_5, window_bounds = array<i64: 2, 3, 32, 32>}, {pipeline_mode = #tpu.pipeline_mode<synchronous>, transform_indices = @transform_6, window_bounds = array<i64: 16, 18>}, {pipeline_mode = #tpu.pipeline_mode<synchronous>, transform_indices = @transform_7, window_bounds = array<i64: 5, 32, 32>}, {transform_indices = @transform_8, window_bounds = array<i64: 1, 16, 8>}]} {
    %c0 = arith.constant 0 : index
    %c0_0 = arith.constant 0 : index
    %0 = vector.load %arg4[%c0, %c0_0] : memref<23x32xf32, #tpu.memory_space<vmem>>, vector<23x32xf32>
    %c0_1 = arith.constant 0 : index
    %c0_2 = arith.constant 0 : index
    %c0_3 = arith.constant 0 : index
    %1 = vector.load %arg1[%c0_1, %c0_2, %c0_3] : memref<1x17x64xf32, #tpu.memory_space<vmem>>, vector<1x17x64xf32>
    %2 = vector.shape_cast %1 : vector<1x17x64xf32> to vector<17x64xf32>
    %c0_4 = arith.constant 0 : index
    %c0_5 = arith.constant 0 : index
    %3 = vector.load %arg3[%c0_4, %c0_5] : memref<17x32xf32, #tpu.memory_space<vmem>>, vector<17x32xf32>
    %c0_6 = arith.constant 0 : index
    %c0_7 = arith.constant 0 : index
    %4 = vector.load %arg2[%c0_6, %c0_7] : memref<64x32xf32, #tpu.memory_space<vmem>>, vector<64x32xf32>
    %cst = arith.constant dense<0.000000e+00> : vector<17x32xf32>
    %5 = tpu.matmul %2, %4, %cst {dimension_numbers = #tpu.dot_dimension_numbers<[1], [0], [0], [1], [0, 0, 1, 1], [], []>} : vector<17x64xf32>, vector<64x32xf32>, vector<17x32xf32> -> vector<17x32xf32>
    %6 = arith.addf %5, %3 : vector<17x32xf32>
    %7 = vector.extract_strided_slice %0 {offsets = [0, 0], sizes = [1, 32], strides = [1, 1]} : vector<23x32xf32> to vector<1x32xf32>
    %8 = vector.extract_strided_slice %0 {offsets = [1, 0], sizes = [1, 32], strides = [1, 1]} : vector<23x32xf32> to vector<1x32xf32>
    %cst_8 = arith.constant dense<0.000000e+00> : vector<17xf32>
    %9 = vector.multi_reduction <add>, %6, %cst_8 [1] : vector<17x32xf32> to vector<17xf32>
    %10 = vector.shape_cast %9 : vector<17xf32> to vector<17x1xf32>
    %cst_9 = arith.constant 3.200000e+01 : f32
    %11 = vector.broadcast %cst_9 : f32 to vector<17x1xf32>
    %12 = arith.divf %10, %11 : vector<17x1xf32>
    %13 = vector.broadcast %12 : vector<17x1xf32> to vector<17x32xf32>
    %14 = arith.subf %6, %13 : vector<17x32xf32>
    %15 = arith.mulf %14, %14 : vector<17x32xf32>
    %cst_10 = arith.constant dense<0.000000e+00> : vector<17xf32>
    %16 = vector.multi_reduction <add>, %15, %cst_10 [1] : vector<17x32xf32> to vector<17xf32>
    %17 = vector.shape_cast %16 : vector<17xf32> to vector<17x1xf32>
    %cst_11 = arith.constant 3.200000e+01 : f32
    %18 = vector.broadcast %cst_11 : f32 to vector<17x1xf32>
    %19 = arith.divf %17, %18 : vector<17x1xf32>
    %cst_12 = arith.constant 9.99999974E-6 : f32
    %20 = vector.broadcast %cst_12 : f32 to vector<17x1xf32>
    %21 = arith.addf %19, %20 : vector<17x1xf32>
    %22 = math.rsqrt %21 : vector<17x1xf32>
    %23 = vector.broadcast %22 : vector<17x1xf32> to vector<17x32xf32>
    %24 = arith.mulf %14, %23 : vector<17x32xf32>
    %25 = vector.broadcast %7 : vector<1x32xf32> to vector<17x32xf32>
    %26 = arith.mulf %24, %25 : vector<17x32xf32>
    %27 = vector.broadcast %8 : vector<1x32xf32> to vector<17x32xf32>
    %28 = arith.addf %26, %27 : vector<17x32xf32>
    %c0_13 = arith.constant 0 : index
    %c0_14 = arith.constant 0 : index
    %c0_15 = arith.constant 0 : index
    %29 = vector.load %arg5[%c0_13, %c0_14, %c0_15] : memref<2x32x96xf32, #tpu.memory_space<vmem>>, vector<1x32x96xf32>
    %30 = vector.shape_cast %29 : vector<1x32x96xf32> to vector<32x96xf32>
    %cst_16 = arith.constant dense<0.000000e+00> : vector<17x96xf32>
    %31 = tpu.matmul %28, %30, %cst_16 {dimension_numbers = #tpu.dot_dimension_numbers<[1], [0], [0], [1], [0, 0, 1, 1], [], []>} : vector<17x32xf32>, vector<32x96xf32>, vector<17x96xf32> -> vector<17x96xf32>
    %32 = vector.extract_strided_slice %31 {offsets = [0, 0], sizes = [17, 8], strides = [1, 1]} : vector<17x96xf32> to vector<17x8xf32>
    %33 = vector.extract_strided_slice %31 {offsets = [0, 32], sizes = [17, 8], strides = [1, 1]} : vector<17x96xf32> to vector<17x8xf32>
    %34 = vector.extract_strided_slice %31 {offsets = [0, 64], sizes = [17, 8], strides = [1, 1]} : vector<17x96xf32> to vector<17x8xf32>
    %cst_17 = arith.constant dense<0.000000e+00> : vector<17x17xf32>
    %35 = tpu.matmul %32, %33, %cst_17 {dimension_numbers = #tpu.dot_dimension_numbers<[1], [1], [0], [0], [0, 0, 1, 0], [], []>} : vector<17x8xf32>, vector<17x8xf32>, vector<17x17xf32> -> vector<17x17xf32>
    %cst_18 = arith.constant 0.353553385 : f32
    %36 = vector.broadcast %cst_18 : f32 to vector<17x17xf32>
    %37 = arith.mulf %35, %36 : vector<17x17xf32>
    %cst_19 = arith.constant dense<0xFF800000> : vector<17xf32>
    %38 = vector.multi_reduction <maximumf>, %37, %cst_19 [1] : vector<17x17xf32> to vector<17xf32>
    %39 = vector.shape_cast %38 : vector<17xf32> to vector<17x1xf32>
    %40 = vector.broadcast %39 : vector<17x1xf32> to vector<17x17xf32>
    %41 = arith.subf %37, %40 : vector<17x17xf32>
    %42 = math.exp %41 : vector<17x17xf32>
    %cst_20 = arith.constant dense<0.000000e+00> : vector<17xf32>
    %43 = vector.multi_reduction <add>, %42, %cst_20 [1] : vector<17x17xf32> to vector<17xf32>
    %44 = vector.shape_cast %43 : vector<17xf32> to vector<17x1xf32>
    %45 = tpu.reciprocal %44 {approx = true} : vector<17x1xf32> -> vector<17x1xf32>
    %46 = vector.broadcast %45 : vector<17x1xf32> to vector<17x17xf32>
    %47 = arith.mulf %42, %46 : vector<17x17xf32>
    %cst_21 = arith.constant dense<0.000000e+00> : vector<17x8xf32>
    %48 = tpu.matmul %47, %34, %cst_21 {dimension_numbers = #tpu.dot_dimension_numbers<[1], [0], [0], [1], [0, 0, 1, 1], [], []>} : vector<17x17xf32>, vector<17x8xf32>, vector<17x8xf32> -> vector<17x8xf32>
    %49 = vector.extract_strided_slice %31 {offsets = [0, 8], sizes = [17, 8], strides = [1, 1]} : vector<17x96xf32> to vector<17x8xf32>
    %50 = vector.extract_strided_slice %31 {offsets = [0, 40], sizes = [17, 8], strides = [1, 1]} : vector<17x96xf32> to vector<17x8xf32>
    %51 = vector.extract_strided_slice %31 {offsets = [0, 72], sizes = [17, 8], strides = [1, 1]} : vector<17x96xf32> to vector<17x8xf32>
    %cst_22 = arith.constant dense<0.000000e+00> : vector<17x17xf32>
    %52 = tpu.matmul %49, %50, %cst_22 {dimension_numbers = #tpu.dot_dimension_numbers<[1], [1], [0], [0], [0, 0, 1, 0], [], []>} : vector<17x8xf32>, vector<17x8xf32>, vector<17x17xf32> -> vector<17x17xf32>
    %cst_23 = arith.constant 0.353553385 : f32
    %53 = vector.broadcast %cst_23 : f32 to vector<17x17xf32>
    %54 = arith.mulf %52, %53 : vector<17x17xf32>
    %cst_24 = arith.constant dense<0xFF800000> : vector<17xf32>
    %55 = vector.multi_reduction <maximumf>, %54, %cst_24 [1] : vector<17x17xf32> to vector<17xf32>
    %56 = vector.shape_cast %55 : vector<17xf32> to vector<17x1xf32>
    %57 = vector.broadcast %56 : vector<17x1xf32> to vector<17x17xf32>
    %58 = arith.subf %54, %57 : vector<17x17xf32>
    %59 = math.exp %58 : vector<17x17xf32>
    %cst_25 = arith.constant dense<0.000000e+00> : vector<17xf32>
    %60 = vector.multi_reduction <add>, %59, %cst_25 [1] : vector<17x17xf32> to vector<17xf32>
    %61 = vector.shape_cast %60 : vector<17xf32> to vector<17x1xf32>
    %62 = tpu.reciprocal %61 {approx = true} : vector<17x1xf32> -> vector<17x1xf32>
    %63 = vector.broadcast %62 : vector<17x1xf32> to vector<17x17xf32>
    %64 = arith.mulf %59, %63 : vector<17x17xf32>
    %cst_26 = arith.constant dense<0.000000e+00> : vector<17x8xf32>
    %65 = tpu.matmul %64, %51, %cst_26 {dimension_numbers = #tpu.dot_dimension_numbers<[1], [0], [0], [1], [0, 0, 1, 1], [], []>} : vector<17x17xf32>, vector<17x8xf32>, vector<17x8xf32> -> vector<17x8xf32>
    %66 = vector.extract_strided_slice %31 {offsets = [0, 16], sizes = [17, 8], strides = [1, 1]} : vector<17x96xf32> to vector<17x8xf32>
    %67 = vector.extract_strided_slice %31 {offsets = [0, 48], sizes = [17, 8], strides = [1, 1]} : vector<17x96xf32> to vector<17x8xf32>
    %68 = vector.extract_strided_slice %31 {offsets = [0, 80], sizes = [17, 8], strides = [1, 1]} : vector<17x96xf32> to vector<17x8xf32>
    %cst_27 = arith.constant dense<0.000000e+00> : vector<17x17xf32>
    %69 = tpu.matmul %66, %67, %cst_27 {dimension_numbers = #tpu.dot_dimension_numbers<[1], [1], [0], [0], [0, 0, 1, 0], [], []>} : vector<17x8xf32>, vector<17x8xf32>, vector<17x17xf32> -> vector<17x17xf32>
    %cst_28 = arith.constant 0.353553385 : f32
    %70 = vector.broadcast %cst_28 : f32 to vector<17x17xf32>
    %71 = arith.mulf %69, %70 : vector<17x17xf32>
    %cst_29 = arith.constant dense<0xFF800000> : vector<17xf32>
    %72 = vector.multi_reduction <maximumf>, %71, %cst_29 [1] : vector<17x17xf32> to vector<17xf32>
    %73 = vector.shape_cast %72 : vector<17xf32> to vector<17x1xf32>
    %74 = vector.broadcast %73 : vector<17x1xf32> to vector<17x17xf32>
    %75 = arith.subf %71, %74 : vector<17x17xf32>
    %76 = math.exp %75 : vector<17x17xf32>
    %cst_30 = arith.constant dense<0.000000e+00> : vector<17xf32>
    %77 = vector.multi_reduction <add>, %76, %cst_30 [1] : vector<17x17xf32> to vector<17xf32>
    %78 = vector.shape_cast %77 : vector<17xf32> to vector<17x1xf32>
    %79 = tpu.reciprocal %78 {approx = true} : vector<17x1xf32> -> vector<17x1xf32>
    %80 = vector.broadcast %79 : vector<17x1xf32> to vector<17x17xf32>
    %81 = arith.mulf %76, %80 : vector<17x17xf32>
    %cst_31 = arith.constant dense<0.000000e+00> : vector<17x8xf32>
    %82 = tpu.matmul %81, %68, %cst_31 {dimension_numbers = #tpu.dot_dimension_numbers<[1], [0], [0], [1], [0, 0, 1, 1], [], []>} : vector<17x17xf32>, vector<17x8xf32>, vector<17x8xf32> -> vector<17x8xf32>
    %83 = vector.extract_strided_slice %31 {offsets = [0, 24], sizes = [17, 8], strides = [1, 1]} : vector<17x96xf32> to vector<17x8xf32>
    %84 = vector.extract_strided_slice %31 {offsets = [0, 56], sizes = [17, 8], strides = [1, 1]} : vector<17x96xf32> to vector<17x8xf32>
    %85 = vector.extract_strided_slice %31 {offsets = [0, 88], sizes = [17, 8], strides = [1, 1]} : vector<17x96xf32> to vector<17x8xf32>
    %cst_32 = arith.constant dense<0.000000e+00> : vector<17x17xf32>
    %86 = tpu.matmul %83, %84, %cst_32 {dimension_numbers = #tpu.dot_dimension_numbers<[1], [1], [0], [0], [0, 0, 1, 0], [], []>} : vector<17x8xf32>, vector<17x8xf32>, vector<17x17xf32> -> vector<17x17xf32>
    %cst_33 = arith.constant 0.353553385 : f32
    %87 = vector.broadcast %cst_33 : f32 to vector<17x17xf32>
    %88 = arith.mulf %86, %87 : vector<17x17xf32>
    %cst_34 = arith.constant dense<0xFF800000> : vector<17xf32>
    %89 = vector.multi_reduction <maximumf>, %88, %cst_34 [1] : vector<17x17xf32> to vector<17xf32>
    %90 = vector.shape_cast %89 : vector<17xf32> to vector<17x1xf32>
    %91 = vector.broadcast %90 : vector<17x1xf32> to vector<17x17xf32>
    %92 = arith.subf %88, %91 : vector<17x17xf32>
    %93 = math.exp %92 : vector<17x17xf32>
    %cst_35 = arith.constant dense<0.000000e+00> : vector<17xf32>
    %94 = vector.multi_reduction <add>, %93, %cst_35 [1] : vector<17x17xf32> to vector<17xf32>
    %95 = vector.shape_cast %94 : vector<17xf32> to vector<17x1xf32>
    %96 = tpu.reciprocal %95 {approx = true} : vector<17x1xf32> -> vector<17x1xf32>
    %97 = vector.broadcast %96 : vector<17x1xf32> to vector<17x17xf32>
    %98 = arith.mulf %93, %97 : vector<17x17xf32>
    %cst_36 = arith.constant dense<0.000000e+00> : vector<17x8xf32>
    %99 = tpu.matmul %98, %85, %cst_36 {dimension_numbers = #tpu.dot_dimension_numbers<[1], [0], [0], [1], [0, 0, 1, 1], [], []>} : vector<17x17xf32>, vector<17x8xf32>, vector<17x8xf32> -> vector<17x8xf32>
    %100 = tpu.concatenate %48, %65, %82, %99 in 1 : vector<17x8xf32>, vector<17x8xf32>, vector<17x8xf32>, vector<17x8xf32> -> vector<17x32xf32>
    %c0_37 = arith.constant 0 : index
    %c0_38 = arith.constant 0 : index
    %c0_39 = arith.constant 0 : index
    %c0_40 = arith.constant 0 : index
    %101 = vector.load %arg6[%c0_37, %c0_38, %c0_39, %c0_40] : memref<2x3x32x32xf32, #tpu.memory_space<vmem>>, vector<1x1x32x32xf32>
    %102 = vector.shape_cast %101 : vector<1x1x32x32xf32> to vector<32x32xf32>
    %cst_41 = arith.constant dense<0.000000e+00> : vector<17x32xf32>
    %103 = tpu.matmul %100, %102, %cst_41 {dimension_numbers = #tpu.dot_dimension_numbers<[1], [0], [0], [1], [0, 0, 1, 1], [], []>} : vector<17x32xf32>, vector<32x32xf32>, vector<17x32xf32> -> vector<17x32xf32>
    %104 = arith.addf %6, %103 : vector<17x32xf32>
    %105 = vector.extract_strided_slice %0 {offsets = [2, 0], sizes = [1, 32], strides = [1, 1]} : vector<23x32xf32> to vector<1x32xf32>
    %106 = vector.broadcast %105 : vector<1x32xf32> to vector<17x32xf32>
    %107 = arith.addf %104, %106 : vector<17x32xf32>
    %108 = vector.extract_strided_slice %0 {offsets = [3, 0], sizes = [1, 32], strides = [1, 1]} : vector<23x32xf32> to vector<1x32xf32>
    %109 = vector.extract_strided_slice %0 {offsets = [4, 0], sizes = [1, 32], strides = [1, 1]} : vector<23x32xf32> to vector<1x32xf32>
    %cst_42 = arith.constant dense<0.000000e+00> : vector<17xf32>
    %110 = vector.multi_reduction <add>, %107, %cst_42 [1] : vector<17x32xf32> to vector<17xf32>
    %111 = vector.shape_cast %110 : vector<17xf32> to vector<17x1xf32>
    %cst_43 = arith.constant 3.200000e+01 : f32
    %112 = vector.broadcast %cst_43 : f32 to vector<17x1xf32>
    %113 = arith.divf %111, %112 : vector<17x1xf32>
    %114 = vector.broadcast %113 : vector<17x1xf32> to vector<17x32xf32>
    %115 = arith.subf %107, %114 : vector<17x32xf32>
    %116 = arith.mulf %115, %115 : vector<17x32xf32>
    %cst_44 = arith.constant dense<0.000000e+00> : vector<17xf32>
    %117 = vector.multi_reduction <add>, %116, %cst_44 [1] : vector<17x32xf32> to vector<17xf32>
    %118 = vector.shape_cast %117 : vector<17xf32> to vector<17x1xf32>
    %cst_45 = arith.constant 3.200000e+01 : f32
    %119 = vector.broadcast %cst_45 : f32 to vector<17x1xf32>
    %120 = arith.divf %118, %119 : vector<17x1xf32>
    %cst_46 = arith.constant 9.99999974E-6 : f32
    %121 = vector.broadcast %cst_46 : f32 to vector<17x1xf32>
    %122 = arith.addf %120, %121 : vector<17x1xf32>
    %123 = math.rsqrt %122 : vector<17x1xf32>
    %124 = vector.broadcast %123 : vector<17x1xf32> to vector<17x32xf32>
    %125 = arith.mulf %115, %124 : vector<17x32xf32>
    %126 = vector.broadcast %108 : vector<1x32xf32> to vector<17x32xf32>
    %127 = arith.mulf %125, %126 : vector<17x32xf32>
    %128 = vector.broadcast %109 : vector<1x32xf32> to vector<17x32xf32>
    %129 = arith.addf %127, %128 : vector<17x32xf32>
    %c0_47 = arith.constant 0 : index
    %c1 = arith.constant 1 : index
    %c0_48 = arith.constant 0 : index
    %c0_49 = arith.constant 0 : index
    %130 = vector.load %arg6[%c0_47, %c1, %c0_48, %c0_49] : memref<2x3x32x32xf32, #tpu.memory_space<vmem>>, vector<1x1x32x32xf32>
    %131 = vector.shape_cast %130 : vector<1x1x32x32xf32> to vector<32x32xf32>
    %cst_50 = arith.constant dense<0.000000e+00> : vector<17x32xf32>
    %132 = tpu.matmul %129, %131, %cst_50 {dimension_numbers = #tpu.dot_dimension_numbers<[1], [0], [0], [1], [0, 0, 1, 1], [], []>} : vector<17x32xf32>, vector<32x32xf32>, vector<17x32xf32> -> vector<17x32xf32>
    %133 = vector.extract_strided_slice %0 {offsets = [5, 0], sizes = [1, 32], strides = [1, 1]} : vector<23x32xf32> to vector<1x32xf32>
    %134 = vector.broadcast %133 : vector<1x32xf32> to vector<17x32xf32>
    %135 = arith.addf %132, %134 : vector<17x32xf32>
    %cst_51 = arith.constant 5.000000e-01 : f32
    %136 = vector.broadcast %cst_51 : f32 to vector<17x32xf32>
    %137 = arith.mulf %136, %135 : vector<17x32xf32>
    %cst_52 = arith.constant 0.707106769 : f32
    %138 = vector.broadcast %cst_52 : f32 to vector<17x32xf32>
    %139 = arith.mulf %135, %138 : vector<17x32xf32>
    %140 = math.absf %139 : vector<17x32xf32>
    %cst_53 = arith.constant 0.327591091 : f32
    %141 = vector.broadcast %cst_53 : f32 to vector<17x32xf32>
    %142 = arith.mulf %141, %140 : vector<17x32xf32>
    %cst_54 = arith.constant 1.000000e+00 : f32
    %143 = vector.broadcast %cst_54 : f32 to vector<17x32xf32>
    %144 = arith.addf %143, %142 : vector<17x32xf32>
    %cst_55 = arith.constant 1.000000e+00 : f32
    %145 = vector.broadcast %cst_55 : f32 to vector<17x32xf32>
    %146 = arith.divf %145, %144 : vector<17x32xf32>
    %cst_56 = arith.constant 1.06140542 : f32
    %147 = vector.broadcast %cst_56 : f32 to vector<17x32xf32>
    %148 = arith.mulf %147, %146 : vector<17x32xf32>
    %cst_57 = arith.constant -1.45315206 : f32
    %149 = vector.broadcast %cst_57 : f32 to vector<17x32xf32>
    %150 = arith.addf %148, %149 : vector<17x32xf32>
    %151 = arith.mulf %150, %146 : vector<17x32xf32>
    %cst_58 = arith.constant 1.42141378 : f32
    %152 = vector.broadcast %cst_58 : f32 to vector<17x32xf32>
    %153 = arith.addf %151, %152 : vector<17x32xf32>
    %154 = arith.mulf %153, %146 : vector<17x32xf32>
    %cst_59 = arith.constant -0.284496725 : f32
    %155 = vector.broadcast %cst_59 : f32 to vector<17x32xf32>
    %156 = arith.addf %154, %155 : vector<17x32xf32>
    %157 = arith.mulf %156, %146 : vector<17x32xf32>
    %cst_60 = arith.constant 0.254829586 : f32
    %158 = vector.broadcast %cst_60 : f32 to vector<17x32xf32>
    %159 = arith.addf %157, %158 : vector<17x32xf32>
    %160 = arith.mulf %159, %146 : vector<17x32xf32>
    %cst_61 = arith.constant 0.000000e+00 : f32
    %161 = vector.broadcast %cst_61 : f32 to vector<17x32xf32>
    %162 = arith.subf %161, %140 : vector<17x32xf32>
    %163 = arith.mulf %162, %140 : vector<17x32xf32>
    %164 = math.exp %163 : vector<17x32xf32>
    %165 = arith.mulf %160, %164 : vector<17x32xf32>
    %cst_62 = arith.constant 1.000000e+00 : f32
    %166 = vector.broadcast %cst_62 : f32 to vector<17x32xf32>
    %167 = arith.subf %166, %165 : vector<17x32xf32>
    %cst_63 = arith.constant 0.000000e+00 : f32
    %168 = vector.broadcast %cst_63 : f32 to vector<17x32xf32>
    %169 = arith.cmpf olt, %139, %168 : vector<17x32xf32>
    %cst_64 = arith.constant 0.000000e+00 : f32
    %170 = vector.broadcast %cst_64 : f32 to vector<17x32xf32>
    %171 = arith.subf %170, %167 : vector<17x32xf32>
    %172 = arith.select %169, %171, %167 : vector<17x32xi1>, vector<17x32xf32>
    %cst_65 = arith.constant 1.000000e+00 : f32
    %173 = vector.broadcast %cst_65 : f32 to vector<17x32xf32>
    %174 = arith.addf %173, %172 : vector<17x32xf32>
    %175 = arith.mulf %137, %174 : vector<17x32xf32>
    %c0_66 = arith.constant 0 : index
    %c2 = arith.constant 2 : index
    %c0_67 = arith.constant 0 : index
    %c0_68 = arith.constant 0 : index
    %176 = vector.load %arg6[%c0_66, %c2, %c0_67, %c0_68] : memref<2x3x32x32xf32, #tpu.memory_space<vmem>>, vector<1x1x32x32xf32>
    %177 = vector.shape_cast %176 : vector<1x1x32x32xf32> to vector<32x32xf32>
    %cst_69 = arith.constant dense<0.000000e+00> : vector<17x32xf32>
    %178 = tpu.matmul %175, %177, %cst_69 {dimension_numbers = #tpu.dot_dimension_numbers<[1], [0], [0], [1], [0, 0, 1, 1], [], []>} : vector<17x32xf32>, vector<32x32xf32>, vector<17x32xf32> -> vector<17x32xf32>
    %179 = vector.extract_strided_slice %0 {offsets = [6, 0], sizes = [1, 32], strides = [1, 1]} : vector<23x32xf32> to vector<1x32xf32>
    %180 = vector.broadcast %179 : vector<1x32xf32> to vector<17x32xf32>
    %181 = arith.addf %178, %180 : vector<17x32xf32>
    %182 = arith.addf %107, %181 : vector<17x32xf32>
    %183 = vector.extract_strided_slice %0 {offsets = [7, 0], sizes = [1, 32], strides = [1, 1]} : vector<23x32xf32> to vector<1x32xf32>
    %184 = vector.extract_strided_slice %0 {offsets = [8, 0], sizes = [1, 32], strides = [1, 1]} : vector<23x32xf32> to vector<1x32xf32>
    %cst_70 = arith.constant dense<0.000000e+00> : vector<17xf32>
    %185 = vector.multi_reduction <add>, %182, %cst_70 [1] : vector<17x32xf32> to vector<17xf32>
    %186 = vector.shape_cast %185 : vector<17xf32> to vector<17x1xf32>
    %cst_71 = arith.constant 3.200000e+01 : f32
    %187 = vector.broadcast %cst_71 : f32 to vector<17x1xf32>
    %188 = arith.divf %186, %187 : vector<17x1xf32>
    %189 = vector.broadcast %188 : vector<17x1xf32> to vector<17x32xf32>
    %190 = arith.subf %182, %189 : vector<17x32xf32>
    %191 = arith.mulf %190, %190 : vector<17x32xf32>
    %cst_72 = arith.constant dense<0.000000e+00> : vector<17xf32>
    %192 = vector.multi_reduction <add>, %191, %cst_72 [1] : vector<17x32xf32> to vector<17xf32>
    %193 = vector.shape_cast %192 : vector<17xf32> to vector<17x1xf32>
    %cst_73 = arith.constant 3.200000e+01 : f32
    %194 = vector.broadcast %cst_73 : f32 to vector<17x1xf32>
    %195 = arith.divf %193, %194 : vector<17x1xf32>
    %cst_74 = arith.constant 9.99999974E-6 : f32
    %196 = vector.broadcast %cst_74 : f32 to vector<17x1xf32>
    %197 = arith.addf %195, %196 : vector<17x1xf32>
    %198 = math.rsqrt %197 : vector<17x1xf32>
    %199 = vector.broadcast %198 : vector<17x1xf32> to vector<17x32xf32>
    %200 = arith.mulf %190, %199 : vector<17x32xf32>
    %201 = vector.broadcast %183 : vector<1x32xf32> to vector<17x32xf32>
    %202 = arith.mulf %200, %201 : vector<17x32xf32>
    %203 = vector.broadcast %184 : vector<1x32xf32> to vector<17x32xf32>
    %204 = arith.addf %202, %203 : vector<17x32xf32>
    %c1_75 = arith.constant 1 : index
    %c0_76 = arith.constant 0 : index
    %c0_77 = arith.constant 0 : index
    %205 = vector.load %arg5[%c1_75, %c0_76, %c0_77] : memref<2x32x96xf32, #tpu.memory_space<vmem>>, vector<1x32x96xf32>
    %206 = vector.shape_cast %205 : vector<1x32x96xf32> to vector<32x96xf32>
    %cst_78 = arith.constant dense<0.000000e+00> : vector<17x96xf32>
    %207 = tpu.matmul %204, %206, %cst_78 {dimension_numbers = #tpu.dot_dimension_numbers<[1], [0], [0], [1], [0, 0, 1, 1], [], []>} : vector<17x32xf32>, vector<32x96xf32>, vector<17x96xf32> -> vector<17x96xf32>
    %208 = vector.extract_strided_slice %207 {offsets = [0, 0], sizes = [17, 8], strides = [1, 1]} : vector<17x96xf32> to vector<17x8xf32>
    %209 = vector.extract_strided_slice %207 {offsets = [0, 32], sizes = [17, 8], strides = [1, 1]} : vector<17x96xf32> to vector<17x8xf32>
    %210 = vector.extract_strided_slice %207 {offsets = [0, 64], sizes = [17, 8], strides = [1, 1]} : vector<17x96xf32> to vector<17x8xf32>
    %cst_79 = arith.constant dense<0.000000e+00> : vector<17x17xf32>
    %211 = tpu.matmul %208, %209, %cst_79 {dimension_numbers = #tpu.dot_dimension_numbers<[1], [1], [0], [0], [0, 0, 1, 0], [], []>} : vector<17x8xf32>, vector<17x8xf32>, vector<17x17xf32> -> vector<17x17xf32>
    %cst_80 = arith.constant 0.353553385 : f32
    %212 = vector.broadcast %cst_80 : f32 to vector<17x17xf32>
    %213 = arith.mulf %211, %212 : vector<17x17xf32>
    %cst_81 = arith.constant dense<0xFF800000> : vector<17xf32>
    %214 = vector.multi_reduction <maximumf>, %213, %cst_81 [1] : vector<17x17xf32> to vector<17xf32>
    %215 = vector.shape_cast %214 : vector<17xf32> to vector<17x1xf32>
    %216 = vector.broadcast %215 : vector<17x1xf32> to vector<17x17xf32>
    %217 = arith.subf %213, %216 : vector<17x17xf32>
    %218 = math.exp %217 : vector<17x17xf32>
    %cst_82 = arith.constant dense<0.000000e+00> : vector<17xf32>
    %219 = vector.multi_reduction <add>, %218, %cst_82 [1] : vector<17x17xf32> to vector<17xf32>
    %220 = vector.shape_cast %219 : vector<17xf32> to vector<17x1xf32>
    %221 = tpu.reciprocal %220 {approx = true} : vector<17x1xf32> -> vector<17x1xf32>
    %222 = vector.broadcast %221 : vector<17x1xf32> to vector<17x17xf32>
    %223 = arith.mulf %218, %222 : vector<17x17xf32>
    %cst_83 = arith.constant dense<0.000000e+00> : vector<17x8xf32>
    %224 = tpu.matmul %223, %210, %cst_83 {dimension_numbers = #tpu.dot_dimension_numbers<[1], [0], [0], [1], [0, 0, 1, 1], [], []>} : vector<17x17xf32>, vector<17x8xf32>, vector<17x8xf32> -> vector<17x8xf32>
    %225 = vector.extract_strided_slice %207 {offsets = [0, 8], sizes = [17, 8], strides = [1, 1]} : vector<17x96xf32> to vector<17x8xf32>
    %226 = vector.extract_strided_slice %207 {offsets = [0, 40], sizes = [17, 8], strides = [1, 1]} : vector<17x96xf32> to vector<17x8xf32>
    %227 = vector.extract_strided_slice %207 {offsets = [0, 72], sizes = [17, 8], strides = [1, 1]} : vector<17x96xf32> to vector<17x8xf32>
    %cst_84 = arith.constant dense<0.000000e+00> : vector<17x17xf32>
    %228 = tpu.matmul %225, %226, %cst_84 {dimension_numbers = #tpu.dot_dimension_numbers<[1], [1], [0], [0], [0, 0, 1, 0], [], []>} : vector<17x8xf32>, vector<17x8xf32>, vector<17x17xf32> -> vector<17x17xf32>
    %cst_85 = arith.constant 0.353553385 : f32
    %229 = vector.broadcast %cst_85 : f32 to vector<17x17xf32>
    %230 = arith.mulf %228, %229 : vector<17x17xf32>
    %cst_86 = arith.constant dense<0xFF800000> : vector<17xf32>
    %231 = vector.multi_reduction <maximumf>, %230, %cst_86 [1] : vector<17x17xf32> to vector<17xf32>
    %232 = vector.shape_cast %231 : vector<17xf32> to vector<17x1xf32>
    %233 = vector.broadcast %232 : vector<17x1xf32> to vector<17x17xf32>
    %234 = arith.subf %230, %233 : vector<17x17xf32>
    %235 = math.exp %234 : vector<17x17xf32>
    %cst_87 = arith.constant dense<0.000000e+00> : vector<17xf32>
    %236 = vector.multi_reduction <add>, %235, %cst_87 [1] : vector<17x17xf32> to vector<17xf32>
    %237 = vector.shape_cast %236 : vector<17xf32> to vector<17x1xf32>
    %238 = tpu.reciprocal %237 {approx = true} : vector<17x1xf32> -> vector<17x1xf32>
    %239 = vector.broadcast %238 : vector<17x1xf32> to vector<17x17xf32>
    %240 = arith.mulf %235, %239 : vector<17x17xf32>
    %cst_88 = arith.constant dense<0.000000e+00> : vector<17x8xf32>
    %241 = tpu.matmul %240, %227, %cst_88 {dimension_numbers = #tpu.dot_dimension_numbers<[1], [0], [0], [1], [0, 0, 1, 1], [], []>} : vector<17x17xf32>, vector<17x8xf32>, vector<17x8xf32> -> vector<17x8xf32>
    %242 = vector.extract_strided_slice %207 {offsets = [0, 16], sizes = [17, 8], strides = [1, 1]} : vector<17x96xf32> to vector<17x8xf32>
    %243 = vector.extract_strided_slice %207 {offsets = [0, 48], sizes = [17, 8], strides = [1, 1]} : vector<17x96xf32> to vector<17x8xf32>
    %244 = vector.extract_strided_slice %207 {offsets = [0, 80], sizes = [17, 8], strides = [1, 1]} : vector<17x96xf32> to vector<17x8xf32>
    %cst_89 = arith.constant dense<0.000000e+00> : vector<17x17xf32>
    %245 = tpu.matmul %242, %243, %cst_89 {dimension_numbers = #tpu.dot_dimension_numbers<[1], [1], [0], [0], [0, 0, 1, 0], [], []>} : vector<17x8xf32>, vector<17x8xf32>, vector<17x17xf32> -> vector<17x17xf32>
    %cst_90 = arith.constant 0.353553385 : f32
    %246 = vector.broadcast %cst_90 : f32 to vector<17x17xf32>
    %247 = arith.mulf %245, %246 : vector<17x17xf32>
    %cst_91 = arith.constant dense<0xFF800000> : vector<17xf32>
    %248 = vector.multi_reduction <maximumf>, %247, %cst_91 [1] : vector<17x17xf32> to vector<17xf32>
    %249 = vector.shape_cast %248 : vector<17xf32> to vector<17x1xf32>
    %250 = vector.broadcast %249 : vector<17x1xf32> to vector<17x17xf32>
    %251 = arith.subf %247, %250 : vector<17x17xf32>
    %252 = math.exp %251 : vector<17x17xf32>
    %cst_92 = arith.constant dense<0.000000e+00> : vector<17xf32>
    %253 = vector.multi_reduction <add>, %252, %cst_92 [1] : vector<17x17xf32> to vector<17xf32>
    %254 = vector.shape_cast %253 : vector<17xf32> to vector<17x1xf32>
    %255 = tpu.reciprocal %254 {approx = true} : vector<17x1xf32> -> vector<17x1xf32>
    %256 = vector.broadcast %255 : vector<17x1xf32> to vector<17x17xf32>
    %257 = arith.mulf %252, %256 : vector<17x17xf32>
    %cst_93 = arith.constant dense<0.000000e+00> : vector<17x8xf32>
    %258 = tpu.matmul %257, %244, %cst_93 {dimension_numbers = #tpu.dot_dimension_numbers<[1], [0], [0], [1], [0, 0, 1, 1], [], []>} : vector<17x17xf32>, vector<17x8xf32>, vector<17x8xf32> -> vector<17x8xf32>
    %259 = vector.extract_strided_slice %207 {offsets = [0, 24], sizes = [17, 8], strides = [1, 1]} : vector<17x96xf32> to vector<17x8xf32>
    %260 = vector.extract_strided_slice %207 {offsets = [0, 56], sizes = [17, 8], strides = [1, 1]} : vector<17x96xf32> to vector<17x8xf32>
    %261 = vector.extract_strided_slice %207 {offsets = [0, 88], sizes = [17, 8], strides = [1, 1]} : vector<17x96xf32> to vector<17x8xf32>
    %cst_94 = arith.constant dense<0.000000e+00> : vector<17x17xf32>
    %262 = tpu.matmul %259, %260, %cst_94 {dimension_numbers = #tpu.dot_dimension_numbers<[1], [1], [0], [0], [0, 0, 1, 0], [], []>} : vector<17x8xf32>, vector<17x8xf32>, vector<17x17xf32> -> vector<17x17xf32>
    %cst_95 = arith.constant 0.353553385 : f32
    %263 = vector.broadcast %cst_95 : f32 to vector<17x17xf32>
    %264 = arith.mulf %262, %263 : vector<17x17xf32>
    %cst_96 = arith.constant dense<0xFF800000> : vector<17xf32>
    %265 = vector.multi_reduction <maximumf>, %264, %cst_96 [1] : vector<17x17xf32> to vector<17xf32>
    %266 = vector.shape_cast %265 : vector<17xf32> to vector<17x1xf32>
    %267 = vector.broadcast %266 : vector<17x1xf32> to vector<17x17xf32>
    %268 = arith.subf %264, %267 : vector<17x17xf32>
    %269 = math.exp %268 : vector<17x17xf32>
    %cst_97 = arith.constant dense<0.000000e+00> : vector<17xf32>
    %270 = vector.multi_reduction <add>, %269, %cst_97 [1] : vector<17x17xf32> to vector<17xf32>
    %271 = vector.shape_cast %270 : vector<17xf32> to vector<17x1xf32>
    %272 = tpu.reciprocal %271 {approx = true} : vector<17x1xf32> -> vector<17x1xf32>
    %273 = vector.broadcast %272 : vector<17x1xf32> to vector<17x17xf32>
    %274 = arith.mulf %269, %273 : vector<17x17xf32>
    %cst_98 = arith.constant dense<0.000000e+00> : vector<17x8xf32>
    %275 = tpu.matmul %274, %261, %cst_98 {dimension_numbers = #tpu.dot_dimension_numbers<[1], [0], [0], [1], [0, 0, 1, 1], [], []>} : vector<17x17xf32>, vector<17x8xf32>, vector<17x8xf32> -> vector<17x8xf32>
    %276 = tpu.concatenate %224, %241, %258, %275 in 1 : vector<17x8xf32>, vector<17x8xf32>, vector<17x8xf32>, vector<17x8xf32> -> vector<17x32xf32>
    %c1_99 = arith.constant 1 : index
    %c0_100 = arith.constant 0 : index
    %c0_101 = arith.constant 0 : index
    %c0_102 = arith.constant 0 : index
    %277 = vector.load %arg6[%c1_99, %c0_100, %c0_101, %c0_102] : memref<2x3x32x32xf32, #tpu.memory_space<vmem>>, vector<1x1x32x32xf32>
    %278 = vector.shape_cast %277 : vector<1x1x32x32xf32> to vector<32x32xf32>
    %cst_103 = arith.constant dense<0.000000e+00> : vector<17x32xf32>
    %279 = tpu.matmul %276, %278, %cst_103 {dimension_numbers = #tpu.dot_dimension_numbers<[1], [0], [0], [1], [0, 0, 1, 1], [], []>} : vector<17x32xf32>, vector<32x32xf32>, vector<17x32xf32> -> vector<17x32xf32>
    %280 = arith.addf %182, %279 : vector<17x32xf32>
    %281 = vector.extract_strided_slice %0 {offsets = [9, 0], sizes = [1, 32], strides = [1, 1]} : vector<23x32xf32> to vector<1x32xf32>
    %282 = vector.broadcast %281 : vector<1x32xf32> to vector<17x32xf32>
    %283 = arith.addf %280, %282 : vector<17x32xf32>
    %284 = vector.extract_strided_slice %0 {offsets = [10, 0], sizes = [1, 32], strides = [1, 1]} : vector<23x32xf32> to vector<1x32xf32>
    %285 = vector.extract_strided_slice %0 {offsets = [11, 0], sizes = [1, 32], strides = [1, 1]} : vector<23x32xf32> to vector<1x32xf32>
    %cst_104 = arith.constant dense<0.000000e+00> : vector<17xf32>
    %286 = vector.multi_reduction <add>, %283, %cst_104 [1] : vector<17x32xf32> to vector<17xf32>
    %287 = vector.shape_cast %286 : vector<17xf32> to vector<17x1xf32>
    %cst_105 = arith.constant 3.200000e+01 : f32
    %288 = vector.broadcast %cst_105 : f32 to vector<17x1xf32>
    %289 = arith.divf %287, %288 : vector<17x1xf32>
    %290 = vector.broadcast %289 : vector<17x1xf32> to vector<17x32xf32>
    %291 = arith.subf %283, %290 : vector<17x32xf32>
    %292 = arith.mulf %291, %291 : vector<17x32xf32>
    %cst_106 = arith.constant dense<0.000000e+00> : vector<17xf32>
    %293 = vector.multi_reduction <add>, %292, %cst_106 [1] : vector<17x32xf32> to vector<17xf32>
    %294 = vector.shape_cast %293 : vector<17xf32> to vector<17x1xf32>
    %cst_107 = arith.constant 3.200000e+01 : f32
    %295 = vector.broadcast %cst_107 : f32 to vector<17x1xf32>
    %296 = arith.divf %294, %295 : vector<17x1xf32>
    %cst_108 = arith.constant 9.99999974E-6 : f32
    %297 = vector.broadcast %cst_108 : f32 to vector<17x1xf32>
    %298 = arith.addf %296, %297 : vector<17x1xf32>
    %299 = math.rsqrt %298 : vector<17x1xf32>
    %300 = vector.broadcast %299 : vector<17x1xf32> to vector<17x32xf32>
    %301 = arith.mulf %291, %300 : vector<17x32xf32>
    %302 = vector.broadcast %284 : vector<1x32xf32> to vector<17x32xf32>
    %303 = arith.mulf %301, %302 : vector<17x32xf32>
    %304 = vector.broadcast %285 : vector<1x32xf32> to vector<17x32xf32>
    %305 = arith.addf %303, %304 : vector<17x32xf32>
    %c1_109 = arith.constant 1 : index
    %c1_110 = arith.constant 1 : index
    %c0_111 = arith.constant 0 : index
    %c0_112 = arith.constant 0 : index
    %306 = vector.load %arg6[%c1_109, %c1_110, %c0_111, %c0_112] : memref<2x3x32x32xf32, #tpu.memory_space<vmem>>, vector<1x1x32x32xf32>
    %307 = vector.shape_cast %306 : vector<1x1x32x32xf32> to vector<32x32xf32>
    %cst_113 = arith.constant dense<0.000000e+00> : vector<17x32xf32>
    %308 = tpu.matmul %305, %307, %cst_113 {dimension_numbers = #tpu.dot_dimension_numbers<[1], [0], [0], [1], [0, 0, 1, 1], [], []>} : vector<17x32xf32>, vector<32x32xf32>, vector<17x32xf32> -> vector<17x32xf32>
    %309 = vector.extract_strided_slice %0 {offsets = [12, 0], sizes = [1, 32], strides = [1, 1]} : vector<23x32xf32> to vector<1x32xf32>
    %310 = vector.broadcast %309 : vector<1x32xf32> to vector<17x32xf32>
    %311 = arith.addf %308, %310 : vector<17x32xf32>
    %cst_114 = arith.constant 5.000000e-01 : f32
    %312 = vector.broadcast %cst_114 : f32 to vector<17x32xf32>
    %313 = arith.mulf %312, %311 : vector<17x32xf32>
    %cst_115 = arith.constant 0.707106769 : f32
    %314 = vector.broadcast %cst_115 : f32 to vector<17x32xf32>
    %315 = arith.mulf %311, %314 : vector<17x32xf32>
    %316 = math.absf %315 : vector<17x32xf32>
    %cst_116 = arith.constant 0.327591091 : f32
    %317 = vector.broadcast %cst_116 : f32 to vector<17x32xf32>
    %318 = arith.mulf %317, %316 : vector<17x32xf32>
    %cst_117 = arith.constant 1.000000e+00 : f32
    %319 = vector.broadcast %cst_117 : f32 to vector<17x32xf32>
    %320 = arith.addf %319, %318 : vector<17x32xf32>
    %cst_118 = arith.constant 1.000000e+00 : f32
    %321 = vector.broadcast %cst_118 : f32 to vector<17x32xf32>
    %322 = arith.divf %321, %320 : vector<17x32xf32>
    %cst_119 = arith.constant 1.06140542 : f32
    %323 = vector.broadcast %cst_119 : f32 to vector<17x32xf32>
    %324 = arith.mulf %323, %322 : vector<17x32xf32>
    %cst_120 = arith.constant -1.45315206 : f32
    %325 = vector.broadcast %cst_120 : f32 to vector<17x32xf32>
    %326 = arith.addf %324, %325 : vector<17x32xf32>
    %327 = arith.mulf %326, %322 : vector<17x32xf32>
    %cst_121 = arith.constant 1.42141378 : f32
    %328 = vector.broadcast %cst_121 : f32 to vector<17x32xf32>
    %329 = arith.addf %327, %328 : vector<17x32xf32>
    %330 = arith.mulf %329, %322 : vector<17x32xf32>
    %cst_122 = arith.constant -0.284496725 : f32
    %331 = vector.broadcast %cst_122 : f32 to vector<17x32xf32>
    %332 = arith.addf %330, %331 : vector<17x32xf32>
    %333 = arith.mulf %332, %322 : vector<17x32xf32>
    %cst_123 = arith.constant 0.254829586 : f32
    %334 = vector.broadcast %cst_123 : f32 to vector<17x32xf32>
    %335 = arith.addf %333, %334 : vector<17x32xf32>
    %336 = arith.mulf %335, %322 : vector<17x32xf32>
    %cst_124 = arith.constant 0.000000e+00 : f32
    %337 = vector.broadcast %cst_124 : f32 to vector<17x32xf32>
    %338 = arith.subf %337, %316 : vector<17x32xf32>
    %339 = arith.mulf %338, %316 : vector<17x32xf32>
    %340 = math.exp %339 : vector<17x32xf32>
    %341 = arith.mulf %336, %340 : vector<17x32xf32>
    %cst_125 = arith.constant 1.000000e+00 : f32
    %342 = vector.broadcast %cst_125 : f32 to vector<17x32xf32>
    %343 = arith.subf %342, %341 : vector<17x32xf32>
    %cst_126 = arith.constant 0.000000e+00 : f32
    %344 = vector.broadcast %cst_126 : f32 to vector<17x32xf32>
    %345 = arith.cmpf olt, %315, %344 : vector<17x32xf32>
    %cst_127 = arith.constant 0.000000e+00 : f32
    %346 = vector.broadcast %cst_127 : f32 to vector<17x32xf32>
    %347 = arith.subf %346, %343 : vector<17x32xf32>
    %348 = arith.select %345, %347, %343 : vector<17x32xi1>, vector<17x32xf32>
    %cst_128 = arith.constant 1.000000e+00 : f32
    %349 = vector.broadcast %cst_128 : f32 to vector<17x32xf32>
    %350 = arith.addf %349, %348 : vector<17x32xf32>
    %351 = arith.mulf %313, %350 : vector<17x32xf32>
    %c1_129 = arith.constant 1 : index
    %c2_130 = arith.constant 2 : index
    %c0_131 = arith.constant 0 : index
    %c0_132 = arith.constant 0 : index
    %352 = vector.load %arg6[%c1_129, %c2_130, %c0_131, %c0_132] : memref<2x3x32x32xf32, #tpu.memory_space<vmem>>, vector<1x1x32x32xf32>
    %353 = vector.shape_cast %352 : vector<1x1x32x32xf32> to vector<32x32xf32>
    %cst_133 = arith.constant dense<0.000000e+00> : vector<17x32xf32>
    %354 = tpu.matmul %351, %353, %cst_133 {dimension_numbers = #tpu.dot_dimension_numbers<[1], [0], [0], [1], [0, 0, 1, 1], [], []>} : vector<17x32xf32>, vector<32x32xf32>, vector<17x32xf32> -> vector<17x32xf32>
    %355 = vector.extract_strided_slice %0 {offsets = [13, 0], sizes = [1, 32], strides = [1, 1]} : vector<23x32xf32> to vector<1x32xf32>
    %356 = vector.broadcast %355 : vector<1x32xf32> to vector<17x32xf32>
    %357 = arith.addf %354, %356 : vector<17x32xf32>
    %358 = arith.addf %283, %357 : vector<17x32xf32>
    %c0_134 = arith.constant 0 : index
    %c0_135 = arith.constant 0 : index
    %359 = vector.load %arg7[%c0_134, %c0_135] : memref<16x18xf32, #tpu.memory_space<vmem>>, vector<16x18xf32>
    %360 = vector.extract_strided_slice %359 {offsets = [0, 0], sizes = [16, 17], strides = [1, 1]} : vector<16x18xf32> to vector<16x17xf32>
    %361 = vector.extract_strided_slice %359 {offsets = [0, 17], sizes = [16, 1], strides = [1, 1]} : vector<16x18xf32> to vector<16x1xf32>
    %362 = vector.extract_strided_slice %0 {offsets = [14, 0], sizes = [1, 32], strides = [1, 1]} : vector<23x32xf32> to vector<1x32xf32>
    %363 = vector.extract_strided_slice %362 {offsets = [0, 0], sizes = [1, 16], strides = [1, 1]} : vector<1x32xf32> to vector<1x16xf32>
    %c0_136 = arith.constant 0 : index
    %c0_137 = arith.constant 0 : index
    %c0_138 = arith.constant 0 : index
    %364 = vector.load %arg8[%c0_136, %c0_137, %c0_138] : memref<5x32x32xf32, #tpu.memory_space<vmem>>, vector<1x32x32xf32>
    %365 = vector.shape_cast %364 : vector<1x32x32xf32> to vector<32x32xf32>
    %cst_139 = arith.constant dense<0.000000e+00> : vector<16x32xf32>
    %366 = tpu.matmul %360, %358, %cst_139 {dimension_numbers = #tpu.dot_dimension_numbers<[1], [0], [0], [1], [0, 0, 1, 1], [], []>} : vector<16x17xf32>, vector<17x32xf32>, vector<16x32xf32> -> vector<16x32xf32>
    %367 = vector.broadcast %361 : vector<16x1xf32> to vector<16x32xf32>
    %368 = arith.addf %366, %367 : vector<16x32xf32>
    %cst_140 = arith.constant dense<0.000000e+00> : vector<1x32xf32>
    %369 = tpu.matmul %363, %368, %cst_140 {dimension_numbers = #tpu.dot_dimension_numbers<[1], [0], [0], [1], [0, 0, 1, 1], [], []>} : vector<1x16xf32>, vector<16x32xf32>, vector<1x32xf32> -> vector<1x32xf32>
    %cst_141 = arith.constant dense<0.000000e+00> : vector<16x32xf32>
    %370 = tpu.matmul %368, %365, %cst_141 {dimension_numbers = #tpu.dot_dimension_numbers<[1], [0], [0], [1], [0, 0, 1, 1], [], []>} : vector<16x32xf32>, vector<32x32xf32>, vector<16x32xf32> -> vector<16x32xf32>
    %371 = vector.extract_strided_slice %0 {offsets = [15, 0], sizes = [1, 32], strides = [1, 1]} : vector<23x32xf32> to vector<1x32xf32>
    %372 = vector.broadcast %371 : vector<1x32xf32> to vector<16x32xf32>
    %373 = arith.addf %370, %372 : vector<16x32xf32>
    %374 = vector.broadcast %369 : vector<1x32xf32> to vector<16x32xf32>
    %375 = arith.addf %373, %374 : vector<16x32xf32>
    %376 = vector.extract_strided_slice %0 {offsets = [16, 0], sizes = [1, 32], strides = [1, 1]} : vector<23x32xf32> to vector<1x32xf32>
    %377 = vector.extract_strided_slice %0 {offsets = [17, 0], sizes = [1, 32], strides = [1, 1]} : vector<23x32xf32> to vector<1x32xf32>
    %cst_142 = arith.constant dense<0.000000e+00> : vector<16xf32>
    %378 = vector.multi_reduction <add>, %375, %cst_142 [1] : vector<16x32xf32> to vector<16xf32>
    %379 = vector.shape_cast %378 : vector<16xf32> to vector<16x1xf32>
    %cst_143 = arith.constant 3.200000e+01 : f32
    %380 = vector.broadcast %cst_143 : f32 to vector<16x1xf32>
    %381 = arith.divf %379, %380 : vector<16x1xf32>
    %382 = vector.broadcast %381 : vector<16x1xf32> to vector<16x32xf32>
    %383 = arith.subf %375, %382 : vector<16x32xf32>
    %384 = arith.mulf %383, %383 : vector<16x32xf32>
    %cst_144 = arith.constant dense<0.000000e+00> : vector<16xf32>
    %385 = vector.multi_reduction <add>, %384, %cst_144 [1] : vector<16x32xf32> to vector<16xf32>
    %386 = vector.shape_cast %385 : vector<16xf32> to vector<16x1xf32>
    %cst_145 = arith.constant 3.200000e+01 : f32
    %387 = vector.broadcast %cst_145 : f32 to vector<16x1xf32>
    %388 = arith.divf %386, %387 : vector<16x1xf32>
    %cst_146 = arith.constant 9.99999974E-6 : f32
    %389 = vector.broadcast %cst_146 : f32 to vector<16x1xf32>
    %390 = arith.addf %388, %389 : vector<16x1xf32>
    %391 = math.rsqrt %390 : vector<16x1xf32>
    %392 = vector.broadcast %391 : vector<16x1xf32> to vector<16x32xf32>
    %393 = arith.mulf %383, %392 : vector<16x32xf32>
    %394 = vector.broadcast %376 : vector<1x32xf32> to vector<16x32xf32>
    %395 = arith.mulf %393, %394 : vector<16x32xf32>
    %396 = vector.broadcast %377 : vector<1x32xf32> to vector<16x32xf32>
    %397 = arith.addf %395, %396 : vector<16x32xf32>
    %c1_147 = arith.constant 1 : index
    %c0_148 = arith.constant 0 : index
    %c0_149 = arith.constant 0 : index
    %398 = vector.load %arg8[%c1_147, %c0_148, %c0_149] : memref<5x32x32xf32, #tpu.memory_space<vmem>>, vector<1x32x32xf32>
    %399 = vector.shape_cast %398 : vector<1x32x32xf32> to vector<32x32xf32>
    %cst_150 = arith.constant dense<0.000000e+00> : vector<16x32xf32>
    %400 = tpu.matmul %397, %399, %cst_150 {dimension_numbers = #tpu.dot_dimension_numbers<[1], [0], [0], [1], [0, 0, 1, 1], [], []>} : vector<16x32xf32>, vector<32x32xf32>, vector<16x32xf32> -> vector<16x32xf32>
    %c2_151 = arith.constant 2 : index
    %c0_152 = arith.constant 0 : index
    %c0_153 = arith.constant 0 : index
    %401 = vector.load %arg8[%c2_151, %c0_152, %c0_153] : memref<5x32x32xf32, #tpu.memory_space<vmem>>, vector<1x32x32xf32>
    %402 = vector.shape_cast %401 : vector<1x32x32xf32> to vector<32x32xf32>
    %cst_154 = arith.constant dense<0.000000e+00> : vector<16x32xf32>
    %403 = tpu.matmul %400, %402, %cst_154 {dimension_numbers = #tpu.dot_dimension_numbers<[1], [0], [0], [1], [0, 0, 1, 1], [], []>} : vector<16x32xf32>, vector<32x32xf32>, vector<16x32xf32> -> vector<16x32xf32>
    %404 = vector.extract_strided_slice %0 {offsets = [18, 0], sizes = [1, 32], strides = [1, 1]} : vector<23x32xf32> to vector<1x32xf32>
    %405 = vector.broadcast %404 : vector<1x32xf32> to vector<16x32xf32>
    %406 = arith.addf %403, %405 : vector<16x32xf32>
    %407 = arith.addf %406, %375 : vector<16x32xf32>
    %408 = vector.extract_strided_slice %0 {offsets = [19, 0], sizes = [1, 32], strides = [1, 1]} : vector<23x32xf32> to vector<1x32xf32>
    %409 = vector.extract_strided_slice %0 {offsets = [20, 0], sizes = [1, 32], strides = [1, 1]} : vector<23x32xf32> to vector<1x32xf32>
    %cst_155 = arith.constant dense<0.000000e+00> : vector<16xf32>
    %410 = vector.multi_reduction <add>, %407, %cst_155 [1] : vector<16x32xf32> to vector<16xf32>
    %411 = vector.shape_cast %410 : vector<16xf32> to vector<16x1xf32>
    %cst_156 = arith.constant 3.200000e+01 : f32
    %412 = vector.broadcast %cst_156 : f32 to vector<16x1xf32>
    %413 = arith.divf %411, %412 : vector<16x1xf32>
    %414 = vector.broadcast %413 : vector<16x1xf32> to vector<16x32xf32>
    %415 = arith.subf %407, %414 : vector<16x32xf32>
    %416 = arith.mulf %415, %415 : vector<16x32xf32>
    %cst_157 = arith.constant dense<0.000000e+00> : vector<16xf32>
    %417 = vector.multi_reduction <add>, %416, %cst_157 [1] : vector<16x32xf32> to vector<16xf32>
    %418 = vector.shape_cast %417 : vector<16xf32> to vector<16x1xf32>
    %cst_158 = arith.constant 3.200000e+01 : f32
    %419 = vector.broadcast %cst_158 : f32 to vector<16x1xf32>
    %420 = arith.divf %418, %419 : vector<16x1xf32>
    %cst_159 = arith.constant 9.99999974E-6 : f32
    %421 = vector.broadcast %cst_159 : f32 to vector<16x1xf32>
    %422 = arith.addf %420, %421 : vector<16x1xf32>
    %423 = math.rsqrt %422 : vector<16x1xf32>
    %424 = vector.broadcast %423 : vector<16x1xf32> to vector<16x32xf32>
    %425 = arith.mulf %415, %424 : vector<16x32xf32>
    %426 = vector.broadcast %408 : vector<1x32xf32> to vector<16x32xf32>
    %427 = arith.mulf %425, %426 : vector<16x32xf32>
    %428 = vector.broadcast %409 : vector<1x32xf32> to vector<16x32xf32>
    %429 = arith.addf %427, %428 : vector<16x32xf32>
    %c3 = arith.constant 3 : index
    %c0_160 = arith.constant 0 : index
    %c0_161 = arith.constant 0 : index
    %430 = vector.load %arg8[%c3, %c0_160, %c0_161] : memref<5x32x32xf32, #tpu.memory_space<vmem>>, vector<1x32x32xf32>
    %431 = vector.shape_cast %430 : vector<1x32x32xf32> to vector<32x32xf32>
    %cst_162 = arith.constant dense<0.000000e+00> : vector<16x32xf32>
    %432 = tpu.matmul %429, %431, %cst_162 {dimension_numbers = #tpu.dot_dimension_numbers<[1], [0], [0], [1], [0, 0, 1, 1], [], []>} : vector<16x32xf32>, vector<32x32xf32>, vector<16x32xf32> -> vector<16x32xf32>
    %433 = vector.extract_strided_slice %0 {offsets = [21, 0], sizes = [1, 32], strides = [1, 1]} : vector<23x32xf32> to vector<1x32xf32>
    %434 = vector.broadcast %433 : vector<1x32xf32> to vector<16x32xf32>
    %435 = arith.addf %432, %434 : vector<16x32xf32>
    %436 = math.tanh %435 : vector<16x32xf32>
    %c4 = arith.constant 4 : index
    %c0_163 = arith.constant 0 : index
    %c0_164 = arith.constant 0 : index
    %437 = vector.load %arg8[%c4, %c0_163, %c0_164] : memref<5x32x32xf32, #tpu.memory_space<vmem>>, vector<1x32x32xf32>
    %438 = vector.shape_cast %437 : vector<1x32x32xf32> to vector<32x32xf32>
    %cst_165 = arith.constant dense<0.000000e+00> : vector<16x32xf32>
    %439 = tpu.matmul %436, %438, %cst_165 {dimension_numbers = #tpu.dot_dimension_numbers<[1], [0], [0], [1], [0, 0, 1, 1], [], []>} : vector<16x32xf32>, vector<32x32xf32>, vector<16x32xf32> -> vector<16x32xf32>
    %440 = vector.extract_strided_slice %0 {offsets = [22, 0], sizes = [1, 32], strides = [1, 1]} : vector<23x32xf32> to vector<1x32xf32>
    %441 = vector.broadcast %440 : vector<1x32xf32> to vector<16x32xf32>
    %442 = arith.addf %439, %441 : vector<16x32xf32>
    %443 = vector.extract_strided_slice %442 {offsets = [0, 0], sizes = [16, 8], strides = [1, 1]} : vector<16x32xf32> to vector<16x8xf32>
    %444 = vector.shape_cast %443 : vector<16x8xf32> to vector<1x16x8xf32>
    %c0_166 = arith.constant 0 : index
    %c0_167 = arith.constant 0 : index
    %c0_168 = arith.constant 0 : index
    %445 = vector.load %arg9[%c0_166, %c0_167, %c0_168] : memref<1x16x8xf32, #tpu.memory_space<vmem>>, vector<1x16x8xf32>
    tpu.vector_store %arg9[%c0_166, %c0_167, %c0_168], %444 {strides = array<i32>} : memref<1x16x8xf32, #tpu.memory_space<vmem>>, vector<1x16x8xf32>,
    return
  }
  func.func @transform_0(%arg0: i32) -> (i32, i32, i32) {
    %c0_i32 = arith.constant 0 : i32
    %c0_i32_0 = arith.constant 0 : i32
    %c0_i32_1 = arith.constant 0 : i32
    return %arg0, %c0_i32, %c0_i32_0 : i32, i32, i32
  }
  func.func @transform_1(%arg0: i32) -> (i32, i32) {
    %c0_i32 = arith.constant 0 : i32
    %c0_i32_0 = arith.constant 0 : i32
    %c0_i32_1 = arith.constant 0 : i32
    return %c0_i32, %c0_i32_0 : i32, i32
  }
  func.func @transform_2(%arg0: i32) -> (i32, i32) {
    %c0_i32 = arith.constant 0 : i32
    %c0_i32_0 = arith.constant 0 : i32
    %c0_i32_1 = arith.constant 0 : i32
    return %c0_i32, %c0_i32_0 : i32, i32
  }
  func.func @transform_3(%arg0: i32) -> (i32, i32) {
    %c0_i32 = arith.constant 0 : i32
    %c0_i32_0 = arith.constant 0 : i32
    %c0_i32_1 = arith.constant 0 : i32
    return %c0_i32, %c0_i32_0 : i32, i32
  }
  func.func @transform_4(%arg0: i32) -> (i32, i32, i32) {
    %c0_i32 = arith.constant 0 : i32
    %c0_i32_0 = arith.constant 0 : i32
    %c0_i32_1 = arith.constant 0 : i32
    %c0_i32_2 = arith.constant 0 : i32
    return %c0_i32, %c0_i32_0, %c0_i32_1 : i32, i32, i32
  }
  func.func @transform_5(%arg0: i32) -> (i32, i32, i32, i32) {
    %c0_i32 = arith.constant 0 : i32
    %c0_i32_0 = arith.constant 0 : i32
    %c0_i32_1 = arith.constant 0 : i32
    %c0_i32_2 = arith.constant 0 : i32
    %c0_i32_3 = arith.constant 0 : i32
    return %c0_i32, %c0_i32_0, %c0_i32_1, %c0_i32_2 : i32, i32, i32, i32
  }
  func.func @transform_6(%arg0: i32) -> (i32, i32) {
    %c0_i32 = arith.constant 0 : i32
    %c0_i32_0 = arith.constant 0 : i32
    %c0_i32_1 = arith.constant 0 : i32
    return %c0_i32, %c0_i32_0 : i32, i32
  }
  func.func @transform_7(%arg0: i32) -> (i32, i32, i32) {
    %c0_i32 = arith.constant 0 : i32
    %c0_i32_0 = arith.constant 0 : i32
    %c0_i32_1 = arith.constant 0 : i32
    %c0_i32_2 = arith.constant 0 : i32
    return %c0_i32, %c0_i32_0, %c0_i32_1 : i32, i32, i32
  }
  func.func @transform_8(%arg0: i32) -> (i32, i32, i32) {
    %c0_i32 = arith.constant 0 : i32
    %c0_i32_0 = arith.constant 0 : i32
    %c0_i32_1 = arith.constant 0 : i32
    return %arg0, %c0_i32, %c0_i32_0 : i32, i32, i32
  }
}

</mosaic_0001>

<llo_original>
// kernel: stvt_forward.1
$region0: #{stvt_forward.1}
  #allocation0 [shape = 'u32[]', space=smem, size = 0x4, offset = 0x4, fixed_abs, tag = 'smem constant byte address 0x4 - core index']
  #allocation1 [shape = 'u32[144,128]{1,0:T(1,128)}', space=vmem, size = 0x12000, scoped, tag = 'internal scratch']
  %s0 = inlined_call_operand.vmem [shape: f32[2,17,64], index: 0, kind: input, shape index: {}]
  %s1 = inlined_call_operand.vmem [shape: f32[64,32], index: 1, kind: input, shape index: {}]
  %s2 = inlined_call_operand.vmem [shape: f32[17,32], index: 2, kind: input, shape index: {}]
  %s3 = inlined_call_operand.vmem [shape: f32[23,32], index: 3, kind: input, shape index: {}]
  %s4 = inlined_call_operand.vmem [shape: f32[2,32,96], index: 4, kind: input, shape index: {}]
  %s5 = inlined_call_operand.vmem [shape: f32[2,3,32,32], index: 5, kind: input, shape index: {}]
  %s6 = inlined_call_operand.vmem [shape: f32[16,18], index: 6, kind: input, shape index: {}]
  %s7 = inlined_call_operand.vmem [shape: f32[5,32,32], index: 7, kind: input, shape index: {}]
  %s8 = inlined_call_operand.vmem [shape: f32[2,16,8], index: 8, kind: output, shape index: {}]
  %s9 = sld [smem:[#allocation0]]
  $region65: #{stvt_forward.1} parent=0
    _
  %s11 = ssub.s32 1, %s9
  %s12 = scalar_select 0, %s11, %s9
  loop: start=0, step=1, limit=4
  $region2: #{stvt_forward.1} parent=0 // loop_pre_header
    _
  $region3: #{stvt_forward.1} parent=0 // loop_header
    %s14 = sphi 0, %s18
    %p15 = scmp.ge.s32.totalorder %s14, 4
    %s24 = sphi 0, %s26
    %s27 = sphi 0, %s24
    %s28 = sphi 0, %s27
    %s44 = sphi 0, %s28
    %s48 = sphi 0, %s48
    %s50 = sphi 0, %s48
    %s51 = sphi 0, %s50
    %s65 = sphi 0, %s51
    %s69 = sphi 0, %s69
    %s71 = sphi 0, %s69
    %s72 = sphi 0, %s71
    %s86 = sphi 0, %s72
    %s90 = sphi 0, %s90
    %s92 = sphi 0, %s90
    %s93 = sphi 0, %s92
    %s107 = sphi 0, %s93
    %s111 = sphi 0, %s111
    %s113 = sphi 0, %s111
    %s114 = sphi 0, %s113
    %s128 = sphi 0, %s114
    %s132 = sphi 0, %s132
    %s134 = sphi 0, %s132
    %s135 = sphi 0, %s134
    %s149 = sphi 0, %s135
    %s153 = sphi 0, %s153
    %s155 = sphi 0, %s153
    %s156 = sphi 0, %s155
    %s170 = sphi 0, %s156
    %s174 = sphi 0, %s174
    %s176 = sphi 0, %s174
    %s177 = sphi 0, %s176
    %s191 = sphi 0, %s177
    %s197 = sphi 0, %s199
    %s200 = sphi 0, %s197
    %s201 = sphi 0, %s200
    %s217 = sphi 0, %s201
  $region4: #{stvt_forward.1} parent=0 // loop_header_branch
    %17 = sbr.rel (%p15) target = $region8
  $region5: #{stvt_forward.1} parent=0 // loop_body
    %s19 = ssub.s32 %s14, 1
    %s20 = ssub.s32 %s14, 2
    %s21 = sadd.s32 %s14, 1
    %s22 = ssub.s32 %s14, %s21
    %p23 = scmp.eq.s32.totalorder %s22, 0
    %s25 = sadd.s32 %s24, 1
    %s26 = scalar_select %p23, %s24, %s25
    %p29 = pneg %p23
    %p30 = scmp.eq.s32.totalorder %s14, 1
    %p31 = por %p29, %p30
    %p32 = scmp.ne.s32.totalorder %s24, %s27
    %p33 = scmp.eq.s32.totalorder %s14, 0
    %p34 = por %p32, %p33
    %p35 = scmp.ne.s32.totalorder %s24, %s27
    %p36 = scmp.eq.s32.totalorder %s19, 1
    %p37 = por %p35, %p36
    %p38 = scmp.ne.s32.totalorder %s27, %s28
    %p39 = scmp.eq.s32.totalorder %s19, 0
    %p40 = por %p38, %p39
    %p41 = scmp.ne.s32.totalorder %s27, %s28
    %p42 = scmp.eq.s32.totalorder %s20, 1
    %p43 = por %p41, %p42
    %p45 = scmp.ne.s32.totalorder %s28, %s44
    %p46 = scmp.eq.s32.totalorder %s20, 0
    %p47 = por %p45, %p46
    %s49 = sadd.s32 %s48, 1
    %p52 = scmp.eq.s32.totalorder %s14, 1
    %p53 = scmp.ne.s32.totalorder %s48, %s50
    %p54 = scmp.eq.s32.totalorder %s14, 0
    %p55 = por %p53, %p54
    %p56 = scmp.ne.s32.totalorder %s48, %s50
    %p57 = scmp.eq.s32.totalorder %s19, 1
    %p58 = por %p56, %p57
    %p59 = scmp.ne.s32.totalorder %s50, %s51
    %p60 = scmp.eq.s32.totalorder %s19, 0
    %p61 = por %p59, %p60
    %p62 = scmp.ne.s32.totalorder %s50, %s51
    %p63 = scmp.eq.s32.totalorder %s20, 1
    %p64 = por %p62, %p63
    %p66 = scmp.ne.s32.totalorder %s51, %s65
    %p67 = scmp.eq.s32.totalorder %s20, 0
    %p68 = por %p66, %p67
    %s70 = sadd.s32 %s69, 1
    %p73 = scmp.eq.s32.totalorder %s14, 1
    %p74 = scmp.ne.s32.totalorder %s69, %s71
    %p75 = scmp.eq.s32.totalorder %s14, 0
    %p76 = por %p74, %p75
    %p77 = scmp.ne.s32.totalorder %s69, %s71
    %p78 = scmp.eq.s32.totalorder %s19, 1
    %p79 = por %p77, %p78
    %p80 = scmp.ne.s32.totalorder %s71, %s72
    %p81 = scmp.eq.s32.totalorder %s19, 0
    %p82 = por %p80, %p81
    %p83 = scmp.ne.s32.totalorder %s71, %s72
    %p84 = scmp.eq.s32.totalorder %s20, 1
    %p85 = por %p83, %p84
    %p87 = scmp.ne.s32.totalorder %s72, %s86
    %p88 = scmp.eq.s32.totalorder %s20, 0
    %p89 = por %p87, %p88
    %s91 = sadd.s32 %s90, 1
    %p94 = scmp.eq.s32.totalorder %s14, 1
    %p95 = scmp.ne.s32.totalorder %s90, %s92
    %p96 = scmp.eq.s32.totalorder %s14, 0
    %p97 = por %p95, %p96
    %p98 = scmp.ne.s32.totalorder %s90, %s92
    %p99 = scmp.eq.s32.totalorder %s19, 1
    %p100 = por %p98, %p99
    %p101 = scmp.ne.s32.totalorder %s92, %s93
    %p102 = scmp.eq.s32.totalorder %s19, 0
    %p103 = por %p101, %p102
    %p104 = scmp.ne.s32.totalorder %s92, %s93
    %p105 = scmp.eq.s32.totalorder %s20, 1
    %p106 = por %p104, %p105
    %p108 = scmp.ne.s32.totalorder %s93, %s107
    %p109 = scmp.eq.s32.totalorder %s20, 0
    %p110 = por %p108, %p109
    %s112 = sadd.s32 %s111, 1
    %p115 = scmp.eq.s32.totalorder %s14, 1
    %p116 = scmp.ne.s32.totalorder %s111, %s113
    %p117 = scmp.eq.s32.totalorder %s14, 0
    %p118 = por %p116, %p117
    %p119 = scmp.ne.s32.totalorder %s111, %s113
    %p120 = scmp.eq.s32.totalorder %s19, 1
    %p121 = por %p119, %p120
    %p122 = scmp.ne.s32.totalorder %s113, %s114
    %p123 = scmp.eq.s32.totalorder %s19, 0
    %p124 = por %p122, %p123
    %p125 = scmp.ne.s32.totalorder %s113, %s114
    %p126 = scmp.eq.s32.totalorder %s20, 1
    %p127 = por %p125, %p126
    %p129 = scmp.ne.s32.totalorder %s114, %s128
    %p130 = scmp.eq.s32.totalorder %s20, 0
    %p131 = por %p129, %p130
    %s133 = sadd.s32 %s132, 1
    %p136 = scmp.eq.s32.totalorder %s14, 1
    %p137 = scmp.ne.s32.totalorder %s132, %s134
    %p138 = scmp.eq.s32.totalorder %s14, 0
    %p139 = por %p137, %p138
    %p140 = scmp.ne.s32.totalorder %s132, %s134
    %p141 = scmp.eq.s32.totalorder %s19, 1
    %p142 = por %p140, %p141
    %p143 = scmp.ne.s32.totalorder %s134, %s135
    %p144 = scmp.eq.s32.totalorder %s19, 0
    %p145 = por %p143, %p144
    %p146 = scmp.ne.s32.totalorder %s134, %s135
    %p147 = scmp.eq.s32.totalorder %s20, 1
    %p148 = por %p146, %p147
    %p150 = scmp.ne.s32.totalorder %s135, %s149
    %p151 = scmp.eq.s32.totalorder %s20, 0
    %p152 = por %p150, %p151
    %s154 = sadd.s32 %s153, 1
    %p157 = scmp.eq.s32.totalorder %s14, 1
    %p158 = scmp.ne.s32.totalorder %s153, %s155
    %p159 = scmp.eq.s32.totalorder %s14, 0
    %p160 = por %p158, %p159
    %p161 = scmp.ne.s32.totalorder %s153, %s155
    %p162 = scmp.eq.s32.totalorder %s19, 1
    %p163 = por %p161, %p162
    %p164 = scmp.ne.s32.totalorder %s155, %s156
    %p165 = scmp.eq.s32.totalorder %s19, 0
    %p166 = por %p164, %p165
    %p167 = scmp.ne.s32.totalorder %s155, %s156
    %p168 = scmp.eq.s32.totalorder %s20, 1
    %p169 = por %p167, %p168
    %p171 = scmp.ne.s32.totalorder %s156, %s170
    %p172 = scmp.eq.s32.totalorder %s20, 0
    %p173 = por %p171, %p172
    %s175 = sadd.s32 %s174, 1
    %p178 = scmp.eq.s32.totalorder %s14, 1
    %p179 = scmp.ne.s32.totalorder %s174, %s176
    %p180 = scmp.eq.s32.totalorder %s14, 0
    %p181 = por %p179, %p180
    %p182 = scmp.ne.s32.totalorder %s174, %s176
    %p183 = scmp.eq.s32.totalorder %s19, 1
    %p184 = por %p182, %p183
    %p185 = scmp.ne.s32.totalorder %s176, %s177
    %p186 = scmp.eq.s32.totalorder %s19, 0
    %p187 = por %p185, %p186
    %p188 = scmp.ne.s32.totalorder %s176, %s177
    %p189 = scmp.eq.s32.totalorder %s20, 1
    %p190 = por %p188, %p189
    %p192 = scmp.ne.s32.totalorder %s177, %s191
    %p193 = scmp.eq.s32.totalorder %s20, 0
    %p194 = por %p192, %p193
    %s195 = ssub.s32 %s14, %s21
    %p196 = scmp.eq.s32.totalorder %s195, 0
    %s198 = sadd.s32 %s197, 1
    %s199 = scalar_select %p196, %s197, %s198
    %p202 = pneg %p196
    %p203 = scmp.eq.s32.totalorder %s14, 1
    %p204 = por %p202, %p203
    %p205 = scmp.ne.s32.totalorder %s197, %s200
    %p206 = scmp.eq.s32.totalorder %s14, 0
    %p207 = por %p205, %p206
    %p208 = scmp.ne.s32.totalorder %s197, %s200
    %p209 = scmp.eq.s32.totalorder %s19, 1
    %p210 = por %p208, %p209
    %p211 = scmp.ne.s32.totalorder %s200, %s201
    %p212 = scmp.eq.s32.totalorder %s19, 0
    %p213 = por %p211, %p212
    %p214 = scmp.ne.s32.totalorder %s200, %s201
    %p215 = scmp.eq.s32.totalorder %s20, 1
    %p216 = por %p214, %p215
    %p218 = scmp.ne.s32.totalorder %s201, %s217
    %p219 = scmp.eq.s32.totalorder %s20, 0
    %p220 = por %p218, %p219
    %p221 = scmp.le.s32.totalorder 1, %s14
    %p222 = scmp.lt.s32.totalorder %s14, 3
    %p223 = pnand %p221, %p222
    %p224 = pneg %p223
    // Predicated region
    $region9: #{stvt_forward.1} parent=5 // pred_check
      _
    $region10: #{stvt_forward.1} parent=5 // pred_check_branch
      %226 = sbr.rel (%p223) target = $region12
    $region11: #{stvt_forward.1} parent=5 // pred_region
      %s227 = ssub.s32 %s14, 1
      // Predicated region
      $region13: #{stvt_forward.1} parent=11 // pred_check
        %p228 = pneg %p61
      $region14: #{stvt_forward.1} parent=11 // pred_check_branch
        %230 = sbr.rel (%p228) target = $region16
      $region15: #{stvt_forward.1} parent=11 // pred_region
        _
      $region16: #{stvt_forward.1} parent=11 // pred_fallthru
        _
      // Predicated region
      $region17: #{stvt_forward.1} parent=11 // pred_check
        %p231 = pneg %p82
      $region18: #{stvt_forward.1} parent=11 // pred_check_branch
        %233 = sbr.rel (%p231) target = $region20
      $region19: #{stvt_forward.1} parent=11 // pred_region
        _
      $region20: #{stvt_forward.1} parent=11 // pred_fallthru
        _
      // Predicated region
      $region21: #{stvt_forward.1} parent=11 // pred_check
        %p234 = pneg %p103
      $region22: #{stvt_forward.1} parent=11 // pred_check_branch
        %236 = sbr.rel (%p234) target = $region24
      $region23: #{stvt_forward.1} parent=11 // pred_region
        _
      $region24: #{stvt_forward.1} parent=11 // pred_fallthru
        _
      // Predicated region
      $region25: #{stvt_forward.1} parent=11 // pred_check
        %p237 = pneg %p124
      $region26: #{stvt_forward.1} parent=11 // pred_check_branch
        %239 = sbr.rel (%p237) target = $region28
      $region27: #{stvt_forward.1} parent=11 // pred_region
        _
      $region28: #{stvt_forward.1} parent=11 // pred_fallthru
        _
      // Predicated region
      $region29: #{stvt_forward.1} parent=11 // pred_check
        %p240 = pneg %p145
      $region30: #{stvt_forward.1} parent=11 // pred_check_branch
        %242 = sbr.rel (%p240) target = $region32
      $region31: #{stvt_forward.1} parent=11 // pred_region
        _
      $region32: #{stvt_forward.1} parent=11 // pred_fallthru
        _
      // Predicated region
      $region33: #{stvt_forward.1} parent=11 // pred_check
        %p243 = pneg %p166
      $region34: #{stvt_forward.1} parent=11 // pred_check_branch
        %245 = sbr.rel (%p243) target = $region36
      $region35: #{stvt_forward.1} parent=11 // pred_region
        _
      $region36: #{stvt_forward.1} parent=11 // pred_fallthru
        _
      // Predicated region
      $region37: #{stvt_forward.1} parent=11 // pred_check
        %p246 = pneg %p187
      $region38: #{stvt_forward.1} parent=11 // pred_check_branch
        %248 = sbr.rel (%p246) target = $region40
      $region39: #{stvt_forward.1} parent=11 // pred_region
        _
      $region40: #{stvt_forward.1} parent=11 // pred_fallthru
        _
    $region12: #{stvt_forward.1} parent=5 // pred_fallthru
      _
    %p249 = scmp.lt.s32.totalorder %s14, 2
    // Predicated region
    $region41: #{stvt_forward.1} parent=5 // pred_check
      %p250 = pneg %p249
    $region42: #{stvt_forward.1} parent=5 // pred_check_branch
      %252 = sbr.rel (%p250) target = $region44
    $region43: #{stvt_forward.1} parent=5 // pred_region
      // Predicated region
      $region45: #{stvt_forward.1} parent=43 // pred_check
        %p253 = pneg %p34
      $region46: #{stvt_forward.1} parent=43 // pred_check_branch
        %255 = sbr.rel (%p253) target = $region48
      $region47: #{stvt_forward.1} parent=43 // pred_region
        %p256 = scmp.lt.s32.totalorder %s14, 1
        %s257 = scalar_select %p256, %s14, 1
        %s258 = smul.addr %s257, 3
        %s259 = smul.addr %s258, 8
        %s260 = scalar_lea.vmem %s0, %s259
      $region48: #{stvt_forward.1} parent=43 // pred_fallthru
        _
    $region44: #{stvt_forward.1} parent=5 // pred_fallthru
      _
    %p261 = scmp.le.s32.totalorder 1, %s14
    %p262 = scmp.lt.s32.totalorder %s14, 3
    %p263 = pnand %p261, %p262
    %p264 = pneg %p263
    // Predicated region
    $region49: #{stvt_forward.1} parent=5 // pred_check
      _
    $region50: #{stvt_forward.1} parent=5 // pred_check_branch
      %266 = sbr.rel (%p263) target = $region52
    $region51: #{stvt_forward.1} parent=5 // pred_region
      %s267 = ssub.s32 %s14, 1
      %p268 = scmp.lt.s32.totalorder %s19, 1
      %s269 = scalar_select %p268, %s19, 1
      %s270 = smul.addr %s269, 3
      %s271 = smul.addr %s270, 8
      %s272 = scalar_lea.vmem %s0, %s271
      %p273 = pneg %p40
      %p274 = pneg %p37
      %p275 = pneg %p61
      %p276 = pneg %p58
      %p277 = pneg %p82
      %p278 = pneg %p79
      %p279 = pneg %p103
      %p280 = pneg %p100
      %p281 = pneg %p124
      %p282 = pneg %p121
      %p283 = pneg %p145
      %p284 = pneg %p142
      %p285 = pneg %p166
      %p286 = pneg %p163
      %p287 = pneg %p187
      %p288 = pneg %p184
      %p289 = pneg %p213
      %p290 = pneg %p210
      %p291 = scmp.lt.s32.totalorder %s19, 1
      %s292 = scalar_select %p291, %s19, 1
      %s293 = smul.addr %s292, 2
      %s294 = smul.addr %s293, 8
      %s295 = scalar_lea.vmem %s8, %s294
      %p296 = scmp.lt.s32.totalorder %s19, 1
      %s297 = scalar_select %p296, %s19, 1
      %s298 = smul.addr %s297, 3
      %s299 = smul.addr %s298, 8
      %s300 = scalar_lea.vmem %s0, %s299
      %p301 = scmp.lt.s32.totalorder %s19, 1
      %s302 = scalar_select %p301, %s19, 1
      %s303 = smul.addr %s302, 2
      %s304 = smul.addr %s303, 8
      %s305 = scalar_lea.vmem %s8, %s304
      %v306 = vld [vmem:[%s3] sm:$0xff]
      %v307 = vld [vmem:[%s3 + $0x8] sm:$0xff]
      %v308 = vld [vmem:[%s3 + $0x10] sm:$0x7f]
      %v309 = vld [vmem:[%s300] sm:$0xff]
      %v310 = vld [vmem:[%s300 + $0x8] sm:$0xff]
      %v311 = vld [vmem:[%s300 + $0x10] sm:$0x1]
      %v312 = vld [vmem:[%s2] sm:$0xff]
      %v313 = vld [vmem:[%s2 + $0x8] sm:$0xff]
      %v314 = vld [vmem:[%s2 + $0x10] sm:$0x1]
      %v315 = vld [vmem:[%s1] sm:$0xff]
      %v316 = vld [vmem:[%s1 + $0x8] sm:$0xff]
      %v317 = vld [vmem:[%s1 + $0x10] sm:$0xff]
      %v318 = vld [vmem:[%s1 + $0x18] sm:$0xff]
      %v319 = vld [vmem:[%s1 + $0x20] sm:$0xff]
      %v320 = vld [vmem:[%s1 + $0x28] sm:$0xff]
      %v321 = vld [vmem:[%s1 + $0x30] sm:$0xff]
      %v322 = vld [vmem:[%s1 + $0x38] sm:$0xff]
      %vm323 = vcmask 523264
      %v325 = vsel %vm323, %v309, 0
      %v328 = vsel %vm323, %v310, 0
      %v331 = vsel %vm323, %v311, 0
      %333 = vmatprep.subr.mxu0 0.0
      %334 = vmatpush1.msra.mxu0 %v315
      %335 = vmatprep.subr.mxu0 0.0
      %336 = vmatpush1.msra.mxu0 %v316
      %337 = vmatprep.subr.mxu0 0.0
      %338 = vmatpush1.msra.mxu0 %v317
      %339 = vmatprep.subr.mxu0 0.0
      %340 = vmatpush1.msra.mxu0 %v318
      %341 = vmatprep.subr.mxu0 0.0
      %342 = vmatpush1.msra.mxu0 %v319
      %343 = vmatprep.subr.mxu0 0.0
      %344 = vmatpush1.msra.mxu0 %v320
      %345 = vmatprep.subr.mxu0 0.0
      %346 = vmatpush1.msra.mxu0 %v321
      %347 = vmatprep.subr.mxu0 0.0
      %348 = vmatpush1.msra.mxu0 %v322
      %349 = vmatprep.subr.mxu0 0.0
      %350 = vmatpush1.msra.mxu0 0.0
      %351 = vmatprep.subr.mxu0 0.0
      %352 = vmatpush1.msra.mxu0 0.0
      %353 = vmatprep.subr.mxu0 0.0
      %354 = vmatpush1.msra.mxu0 0.0
      %355 = vmatprep.subr.mxu0 0.0
      %356 = vmatpush1.msra.mxu0 0.0
      %357 = vmatprep.subr.mxu0 0.0
      %358 = vmatpush1.msra.mxu0 0.0
      %359 = vmatprep.subr.mxu0 0.0
      %360 = vmatpush1.msra.mxu0 0.0
      %361 = vmatprep.subr.mxu0 0.0
      %362 = vmatpush1.msra.mxu0 0.0
      %363 = vmatprep.subr.mxu0 0.0
      %364 = vmatpush1.msra.mxu0 0.0
      %365 = vmatprep.subr.mxu0 0.0
      %366 = vmatpush1.msra.mxu0 0.0
      %367 = vmatprep.subr.mxu0 0.0
      %368 = vmatpush1.msra.mxu0 0.0
      %369 = vmatprep.subr.mxu0 0.0
      %370 = vmatpush1.msra.mxu0 0.0
      %371 = vmatprep.subr.mxu0 0.0
      %372 = vmatpush1.msra.mxu0 0.0
      %373 = vmatprep.subr.mxu0 0.0
      %374 = vmatpush1.msra.mxu0 0.0
      %375 = vmatprep.subr.mxu0 0.0
      %376 = vmatpush1.msra.mxu0 0.0
      %377 = vmatprep.subr.mxu0 0.0
      %378 = vmatpush1.msra.mxu0 0.0
      %379 = vmatprep.subr.mxu0 0.0
      %380 = vmatpush1.msra.mxu0 0.0
      %381 = vmatprep.subr.mxu0 0.0
      %382 = vmatpush1.msra.mxu0 0.0
      %383 = vmatprep.subr.mxu0 0.0
      %384 = vmatpush1.msra.mxu0 0.0
      %385 = vmatprep.subr.mxu0 0.0
      %386 = vmatpush1.msra.mxu0 0.0
      %387 = vmatprep.subr.mxu0 0.0
      %388 = vmatpush1.msra.mxu0 0.0
      %389 = vmatprep.subr.mxu0 0.0
      %390 = vmatpush1.msra.mxu0 0.0
      %391 = vmatprep.subr.mxu0 0.0
      %392 = vmatpush1.msra.mxu0 0.0
      %393 = vmatprep.subr.mxu0 0.0
      %394 = vmatpush1.msra.mxu0 0.0
      %395 = vmatprep.subr.mxu0 0.0
      %396 = vmatpush1.msra.mxu0 0.0
      %397 = vmatprep.mubr.f32.mxu0 0.0
      %398 = vmatmul.mubr.f32.gmra.mrb[0].mxu0 %v325
      %v399 = vpop.f32.mrb[0].mxu0
      %v400 = vadd.f32 %v312, %v399
      %v401 = vpop.f32.mrb[0].mxu0
      %402 = vmatprep.mubr.f32.mxu0 0.0
      %403 = vmatmul.mubr.f32.gmra.mrb[0].mxu0 %v328
      %v404 = vpop.f32.mrb[0].mxu0
      %v405 = vadd.f32 %v313, %v404
      %v406 = vpop.f32.mrb[0].mxu0
      %407 = vmatprep.mubr.f32.mxu0 0.0
      %408 = vmatmul.mubr.f32.gmra.mrb[0].mxu0 %v331
      %v409 = vpop.f32.mrb[0].mxu0
      %v410 = vadd.f32 %v314, %v409
      %v411 = vpop.f32.mrb[0].mxu0
      %412 = vdwg.mxu0
      %vm413 = vcmask 261120
      %v414 = vsel %vm413, %v400, 0.0
      %415 = vadd.xlane.f32.xlu0 %v414
      %v416 = vpop.xlane.xlu0 %415
      %v417 = vsel %vm413, %v405, 0.0
      %418 = vadd.xlane.f32.xlu0 %v417
      %v419 = vpop.xlane.xlu0 %418
      %vm420 = vcmask 253952
      %v421 = vsel %vm420, %v410, 0.0
      %422 = vadd.xlane.f32.xlu0 %v421
      %v423 = vpop.xlane.xlu0 %422
      %v424 = vrcp.pop 32.0
      %v425 = vmul.f32 %v416, %v424
      %v426 = vmul.f32 %v419, %v424
      %v427 = vmul.f32 %v423, %v424
      %v428 = vsub.f32 %v400, %v425
      %v429 = vsub.f32 %v405, %v426
      %v430 = vsub.f32 %v410, %v427
      %v431 = vmul.f32 %v428, %v428
      %v432 = vmul.f32 %v429, %v429
      %v433 = vmul.f32 %v430, %v430
      %v434 = vsel %vm413, %v431, 0.0
      %435 = vadd.xlane.f32.xlu0 %v434
      %v436 = vpop.xlane.xlu0 %435
      %v437 = vsel %vm413, %v432, 0.0
      %438 = vadd.xlane.f32.xlu0 %v437
      %v439 = vpop.xlane.xlu0 %438
      %v440 = vsel %vm420, %v433, 0.0
      %441 = vadd.xlane.f32.xlu0 %v440
      %v442 = vpop.xlane.xlu0 %441
      %v443 = vmul.f32 %v436, %v424
      %v444 = vmul.f32 %v439, %v424
      %v445 = vmul.f32 %v442, %v424
      %v446 = vadd.f32 %v443, 1e-05
      %v447 = vadd.f32 %v444, 1e-05
      %v448 = vadd.f32 %v445, 1e-05
      %v449 = vrsqrt.pop %v446
      %v450 = vrsqrt.pop %v447
      %v451 = vrsqrt.pop %v448
      %v452 = vmul.f32 %v428, %v449
      %v453 = vmul.f32 %v429, %v450
      %v454 = vmul.f32 %v430, %v451
      %v455 = vlaneseq
      %v456 = vshrl.u32 %v455, 7
      %v457 = vsub.s32 0, %v456
      %v458 = vrot.slane %v306, %v457
      %v459 = vmul.f32 %v452, %v458
      %v460 = vmul.f32 %v453, %v458
      %v461 = vmul.f32 %v454, %v458
      %v462 = vlaneseq
      %v463 = vshrl.u32 %v462, 7
      %v464 = vsub.s32 1, %v463
      %v465 = vrot.slane %v306, %v464
      %v466 = vadd.f32 %v459, %v465
      %v467 = vadd.f32 %v460, %v465
      %v468 = vadd.f32 %v461, %v465
      %v469 = vld [vmem:[%s4] sm:$0xff]
      %v470 = vld [vmem:[%s4 + $0x8] sm:$0xff]
      %v471 = vld [vmem:[%s4 + $0x10] sm:$0xff]
      %v472 = vld [vmem:[%s4 + $0x18] sm:$0xff]
      %v474 = vsel %vm413, %v466, 0
      %v477 = vsel %vm413, %v467, 0
      %v480 = vsel %vm413, %v468, 0
      %482 = vmatprep.subr.mxu0 0.0
      %483 = vmatpush1.msra.mxu0 %v469
      %484 = vmatprep.subr.mxu0 0.0
      %485 = vmatpush1.msra.mxu0 %v470
      %486 = vmatprep.subr.mxu0 0.0
      %487 = vmatpush1.msra.mxu0 %v471
      %488 = vmatprep.subr.mxu0 0.0
      %489 = vmatpush1.msra.mxu0 %v472
      %490 = vmatprep.subr.mxu0 0.0
      %491 = vmatpush1.msra.mxu0 0.0
      %492 = vmatprep.subr.mxu0 0.0
      %493 = vmatpush1.msra.mxu0 0.0
      %494 = vmatprep.subr.mxu0 0.0
      %495 = vmatpush1.msra.mxu0 0.0
      %496 = vmatprep.subr.mxu0 0.0
      %497 = vmatpush1.msra.mxu0 0.0
      %498 = vmatprep.subr.mxu0 0.0
      %499 = vmatpush1.msra.mxu0 0.0
      %500 = vmatprep.subr.mxu0 0.0
      %501 = vmatpush1.msra.mxu0 0.0
      %502 = vmatprep.subr.mxu0 0.0
      %503 = vmatpush1.msra.mxu0 0.0
      %504 = vmatprep.subr.mxu0 0.0
      %505 = vmatpush1.msra.mxu0 0.0
      %506 = vmatprep.subr.mxu0 0.0
      %507 = vmatpush1.msra.mxu0 0.0
      %508 = vmatprep.subr.mxu0 0.0
      %509 = vmatpush1.msra.mxu0 0.0
      %510 = vmatprep.subr.mxu0 0.0
      %511 = vmatpush1.msra.mxu0 0.0
      %512 = vmatprep.subr.mxu0 0.0
      %513 = vmatpush1.msra.mxu0 0.0
      %514 = vmatprep.subr.mxu0 0.0
      %515 = vmatpush1.msra.mxu0 0.0
      %516 = vmatprep.subr.mxu0 0.0
      %517 = vmatpush1.msra.mxu0 0.0
      %518 = vmatprep.subr.mxu0 0.0
      %519 = vmatpush1.msra.mxu0 0.0
      %520 = vmatprep.subr.mxu0 0.0
      %521 = vmatpush1.msra.mxu0 0.0
      %522 = vmatprep.subr.mxu0 0.0
      %523 = vmatpush1.msra.mxu0 0.0
      %524 = vmatprep.subr.mxu0 0.0
      %525 = vmatpush1.msra.mxu0 0.0
      %526 = vmatprep.subr.mxu0 0.0
      %527 = vmatpush1.msra.mxu0 0.0
      %528 = vmatprep.subr.mxu0 0.0
      %529 = vmatpush1.msra.mxu0 0.0
      %530 = vmatprep.subr.mxu0 0.0
      %531 = vmatpush1.msra.mxu0 0.0
      %532 = vmatprep.subr.mxu0 0.0
      %533 = vmatpush1.msra.mxu0 0.0
      %534 = vmatprep.subr.mxu0 0.0
      %535 = vmatpush1.msra.mxu0 0.0
      %536 = vmatprep.subr.mxu0 0.0
      %537 = vmatpush1.msra.mxu0 0.0
      %538 = vmatprep.subr.mxu0 0.0
      %539 = vmatpush1.msra.mxu0 0.0
      %540 = vmatprep.subr.mxu0 0.0
      %541 = vmatpush1.msra.mxu0 0.0
      %542 = vmatprep.subr.mxu0 0.0
      %543 = vmatpush1.msra.mxu0 0.0
      %544 = vmatprep.subr.mxu0 0.0
      %545 = vmatpush1.msra.mxu0 0.0
      %546 = vmatprep.mubr.f32.mxu0 0.0
      %547 = vmatmul.mubr.f32.gmra.mrb[0].mxu0 %v474
      %v548 = vpop.f32.mrb[0].mxu0
      %v549 = vadd.f32 0.0, %v548
      %v550 = vpop.f32.mrb[0].mxu0
      %551 = vmatprep.mubr.f32.mxu0 0.0
      %552 = vmatmul.mubr.f32.gmra.mrb[0].mxu0 %v477
      %v553 = vpop.f32.mrb[0].mxu0
      %v554 = vadd.f32 0.0, %v553
      %v555 = vpop.f32.mrb[0].mxu0
      %556 = vmatprep.mubr.f32.mxu0 0.0
      %557 = vmatmul.mubr.f32.gmra.mrb[0].mxu0 %v480
      %v558 = vpop.f32.mrb[0].mxu0
      %v559 = vadd.f32 0.0, %v558
      %v560 = vpop.f32.mrb[0].mxu0
      %561 = vdwg.mxu0
      %565 = vrot.lane.b32.xlu0 %v549, 96
      %v566 = vpop.permute.xlu0 %565
      %567 = vrot.lane.b32.xlu0 %v554, 96
      %v568 = vpop.permute.xlu0 %567
      %569 = vrot.lane.b32.xlu0 %v559, 96
      %v570 = vpop.permute.xlu0 %569
      %vm571 = vcmask 64512
      %v572 = vsel %vm571, %v549, 0
      %v574 = vsel %vm571, %v554, 0
      %v576 = vsel %vm571, %v559, 0
      %v578 = vsel %vm571, %v566, 0
      %v580 = vsel %vm571, %v568, 0
      %v582 = vsel %vm571, %v570, 0
      %584 = vmatprep.subr.mxu0 0.0
      %585 = vmatpush1.xpose.msra.mxu0 %v578
      %586 = vmatprep.subr.mxu0 0.0
      %587 = vmatpush1.xpose.msra.mxu0 %v580
      %588 = vmatprep.subr.mxu0 0.0
      %589 = vmatpush1.xpose.msra.mxu0 %v582
      %590 = vmatprep.subr.mxu0 0.0
      %591 = vmatpush1.xpose.msra.mxu0 0.0
      %592 = vmatprep.subr.mxu0 0.0
      %593 = vmatpush1.xpose.msra.mxu0 0.0
      %594 = vmatprep.subr.mxu0 0.0
      %595 = vmatpush1.xpose.msra.mxu0 0.0
      %596 = vmatprep.subr.mxu0 0.0
      %597 = vmatpush1.xpose.msra.mxu0 0.0
      %598 = vmatprep.subr.mxu0 0.0
      %599 = vmatpush1.xpose.msra.mxu0 0.0
      %600 = vmatprep.subr.mxu0 0.0
      %601 = vmatpush1.xpose.msra.mxu0 0.0
      %602 = vmatprep.subr.mxu0 0.0
      %603 = vmatpush1.xpose.msra.mxu0 0.0
      %604 = vmatprep.subr.mxu0 0.0
      %605 = vmatpush1.xpose.msra.mxu0 0.0
      %606 = vmatprep.subr.mxu0 0.0
      %607 = vmatpush1.xpose.msra.mxu0 0.0
      %608 = vmatprep.subr.mxu0 0.0
      %609 = vmatpush1.xpose.msra.mxu0 0.0
      %610 = vmatprep.subr.mxu0 0.0
      %611 = vmatpush1.xpose.msra.mxu0 0.0
      %612 = vmatprep.subr.mxu0 0.0
      %613 = vmatpush1.xpose.msra.mxu0 0.0
      %614 = vmatprep.subr.mxu0 0.0
      %615 = vmatpush1.xpose.msra.mxu0 0.0
      %616 = vmatprep.subr.mxu0 0.0
      %617 = vmatpush1.xpose.msra.mxu0 0.0
      %618 = vmatprep.subr.mxu0 0.0
      %619 = vmatpush1.xpose.msra.mxu0 0.0
      %620 = vmatprep.subr.mxu0 0.0
      %621 = vmatpush1.xpose.msra.mxu0 0.0
      %622 = vmatprep.subr.mxu0 0.0
      %623 = vmatpush1.xpose.msra.mxu0 0.0
      %624 = vmatprep.subr.mxu0 0.0
      %625 = vmatpush1.xpose.msra.mxu0 0.0
      %626 = vmatprep.subr.mxu0 0.0
      %627 = vmatpush1.xpose.msra.mxu0 0.0
      %628 = vmatprep.subr.mxu0 0.0
      %629 = vmatpush1.xpose.msra.mxu0 0.0
      %630 = vmatprep.subr.mxu0 0.0
      %631 = vmatpush1.xpose.msra.mxu0 0.0
      %632 = vmatprep.subr.mxu0 0.0
      %633 = vmatpush1.xpose.msra.mxu0 0.0
      %634 = vmatprep.subr.mxu0 0.0
      %635 = vmatpush1.xpose.msra.mxu0 0.0
      %636 = vmatprep.subr.mxu0 0.0
      %637 = vmatpush1.xpose.msra.mxu0 0.0
      %638 = vmatprep.subr.mxu0 0.0
      %639 = vmatpush1.xpose.msra.mxu0 0.0
      %640 = vmatprep.subr.mxu0 0.0
      %641 = vmatpush1.xpose.msra.mxu0 0.0
      %642 = vmatprep.subr.mxu0 0.0
      %643 = vmatpush1.xpose.msra.mxu0 0.0
      %644 = vmatprep.subr.mxu0 0.0
      %645 = vmatpush1.xpose.msra.mxu0 0.0
      %646 = vmatprep.subr.mxu0 0.0
      %647 = vmatpush1.xpose.msra.mxu0 0.0
      %648 = vmatprep.mubr.f32.mxu0 0.0
      %649 = vmatmul.mubr.f32.gmra.mrb[0].mxu0 %v572
      %v650 = vpop.f32.mrb[0].mxu0
      %v651 = vadd.f32 0.0, %v650
      %v652 = vpop.f32.mrb[0].mxu0
      %653 = vmatprep.mubr.f32.mxu0 0.0
      %654 = vmatmul.mubr.f32.gmra.mrb[0].mxu0 %v574
      %v655 = vpop.f32.mrb[0].mxu0
      %v656 = vadd.f32 0.0, %v655
      %v657 = vpop.f32.mrb[0].mxu0
      %658 = vmatprep.mubr.f32.mxu0 0.0
      %659 = vmatmul.mubr.f32.gmra.mrb[0].mxu0 %v576
      %v660 = vpop.f32.mrb[0].mxu0
      %v661 = vadd.f32 0.0, %v660
      %v662 = vpop.f32.mrb[0].mxu0
      %663 = vdwg.mxu0
      %v664 = vmul.f32 %v651, 0.35355338
      %v665 = vmul.f32 %v656, 0.35355338
      %v666 = vmul.f32 %v661, 0.35355338
      %vm667 = vcmask 138240
      %v668 = vsel %vm667, %v664, -inf
      %669 = vmax.xlane.f32.xlu0 %v668
      %v670 = vpop.xlane.xlu0 %669
      %v671 = vsel %vm667, %v665, -inf
      %672 = vmax.xlane.f32.xlu0 %v671
      %v673 = vpop.xlane.xlu0 %672
      %vm674 = vcmask 131072
      %v675 = vsel %vm674, %v666, -inf
      %676 = vmax.xlane.f32.xlu0 %v675
      %v677 = vpop.xlane.xlu0 %676
      %v678 = vsub.f32 %v664, %v670
      %v679 = vsub.f32 %v665, %v673
      %v680 = vsub.f32 %v666, %v677
      %v681 = vmul.f32 %v678, 1.442695
      %v682 = vpow.pop %v681
      %v683 = vmul.f32 %v679, 1.442695
      %v684 = vpow.pop %v683
      %v685 = vmul.f32 %v680, 1.442695
      %v686 = vpow.pop %v685
      %v687 = vsel %vm667, %v682, 0.0
      %688 = vadd.xlane.f32.xlu0 %v687
      %v689 = vpop.xlane.xlu0 %688
      %v690 = vsel %vm667, %v684, 0.0
      %691 = vadd.xlane.f32.xlu0 %v690
      %v692 = vpop.xlane.xlu0 %691
      %v693 = vsel %vm674, %v686, 0.0
      %694 = vadd.xlane.f32.xlu0 %v693
      %v695 = vpop.xlane.xlu0 %694
      %v696 = vrcp.pop %v689
      %v697 = vrcp.pop %v692
      %v698 = vrcp.pop %v695
      %v699 = vmul.f32 %v682, %v696
      %v700 = vmul.f32 %v684, %v697
      %v701 = vmul.f32 %v686, %v698
      %702 = vrot.lane.b32.xlu0 %v549, 64
      %v703 = vpop.permute.xlu0 %702
      %704 = vrot.lane.b32.xlu0 %v554, 64
      %v705 = vpop.permute.xlu0 %704
      %706 = vrot.lane.b32.xlu0 %v559, 64
      %v707 = vpop.permute.xlu0 %706
      %v711 = vsel %vm667, %v699, 0
      %v714 = vsel %vm667, %v700, 0
      %v717 = vsel %vm667, %v701, 0
      %vm719 = vcmask 1040384
      %v720 = vsel %vm719, %v707, 0
      %722 = vmatprep.subr.mxu0 0.0
      %723 = vmatpush1.msra.mxu0 %v703
      %724 = vmatprep.subr.mxu0 0.0
      %725 = vmatpush1.msra.mxu0 %v705
      %726 = vmatprep.subr.mxu0 0.0
      %727 = vmatpush1.msra.mxu0 %v720
      %728 = vmatprep.subr.mxu0 0.0
      %729 = vmatpush1.msra.mxu0 0.0
      %730 = vmatprep.subr.mxu0 0.0
      %731 = vmatpush1.msra.mxu0 0.0
      %732 = vmatprep.subr.mxu0 0.0
      %733 = vmatpush1.msra.mxu0 0.0
      %734 = vmatprep.subr.mxu0 0.0
      %735 = vmatpush1.msra.mxu0 0.0
      %736 = vmatprep.subr.mxu0 0.0
      %737 = vmatpush1.msra.mxu0 0.0
      %738 = vmatprep.subr.mxu0 0.0
      %739 = vmatpush1.msra.mxu0 0.0
      %740 = vmatprep.subr.mxu0 0.0
      %741 = vmatpush1.msra.mxu0 0.0
      %742 = vmatprep.subr.mxu0 0.0
      %743 = vmatpush1.msra.mxu0 0.0
      %744 = vmatprep.subr.mxu0 0.0
      %745 = vmatpush1.msra.mxu0 0.0
      %746 = vmatprep.subr.mxu0 0.0
      %747 = vmatpush1.msra.mxu0 0.0
      %748 = vmatprep.subr.mxu0 0.0
      %749 = vmatpush1.msra.mxu0 0.0
      %750 = vmatprep.subr.mxu0 0.0
      %751 = vmatpush1.msra.mxu0 0.0
      %752 = vmatprep.subr.mxu0 0.0
      %753 = vmatpush1.msra.mxu0 0.0
      %754 = vmatprep.subr.mxu0 0.0
      %755 = vmatpush1.msra.mxu0 0.0
      %756 = vmatprep.subr.mxu0 0.0
      %757 = vmatpush1.msra.mxu0 0.0
      %758 = vmatprep.subr.mxu0 0.0
      %759 = vmatpush1.msra.mxu0 0.0
      %760 = vmatprep.subr.mxu0 0.0
      %761 = vmatpush1.msra.mxu0 0.0
      %762 = vmatprep.subr.mxu0 0.0
      %763 = vmatpush1.msra.mxu0 0.0
      %764 = vmatprep.subr.mxu0 0.0
      %765 = vmatpush1.msra.mxu0 0.0
      %766 = vmatprep.subr.mxu0 0.0
      %767 = vmatpush1.msra.mxu0 0.0
      %768 = vmatprep.subr.mxu0 0.0
      %769 = vmatpush1.msra.mxu0 0.0
      %770 = vmatprep.subr.mxu0 0.0
      %771 = vmatpush1.msra.mxu0 0.0
      %772 = vmatprep.subr.mxu0 0.0
      %773 = vmatpush1.msra.mxu0 0.0
      %774 = vmatprep.subr.mxu0 0.0
      %775 = vmatpush1.msra.mxu0 0.0
      %776 = vmatprep.subr.mxu0 0.0
      %777 = vmatpush1.msra.mxu0 0.0
      %778 = vmatprep.subr.mxu0 0.0
      %779 = vmatpush1.msra.mxu0 0.0
      %780 = vmatprep.subr.mxu0 0.0
      %781 = vmatpush1.msra.mxu0 0.0
      %782 = vmatprep.subr.mxu0 0.0
      %783 = vmatpush1.msra.mxu0 0.0
      %784 = vmatprep.subr.mxu0 0.0
      %785 = vmatpush1.msra.mxu0 0.0
      %786 = vmatprep.mubr.f32.mxu0 0.0
      %787 = vmatmul.mubr.f32.gmra.mrb[0].mxu0 %v711
      %v788 = vpop.f32.mrb[0].mxu0
      %v789 = vadd.f32 0.0, %v788
      %v790 = vpop.f32.mrb[0].mxu0
      %791 = vmatprep.mubr.f32.mxu0 0.0
      %792 = vmatmul.mubr.f32.gmra.mrb[0].mxu0 %v714
      %v793 = vpop.f32.mrb[0].mxu0
      %v794 = vadd.f32 0.0, %v793
      %v795 = vpop.f32.mrb[0].mxu0
      %796 = vmatprep.mubr.f32.mxu0 0.0
      %797 = vmatmul.mubr.f32.gmra.mrb[0].mxu0 %v717
      %v798 = vpop.f32.mrb[0].mxu0
      %v799 = vadd.f32 0.0, %v798
      %v800 = vpop.f32.mrb[0].mxu0
      %801 = vdwg.mxu0
      %802 = vrot.lane.b32.xlu0 %v549, 120
      %v803 = vpop.permute.xlu0 %802
      %804 = vrot.lane.b32.xlu0 %v554, 120
      %v805 = vpop.permute.xlu0 %804
      %806 = vrot.lane.b32.xlu0 %v559, 120
      %v807 = vpop.permute.xlu0 %806
      %808 = vrot.lane.b32.xlu0 %v549, 88
      %v809 = vpop.permute.xlu0 %808
      %810 = vrot.lane.b32.xlu0 %v554, 88
      %v811 = vpop.permute.xlu0 %810
      %812 = vrot.lane.b32.xlu0 %v559, 88
      %v813 = vpop.permute.xlu0 %812
      %v814 = vsel %vm571, %v803, 0
      %v816 = vsel %vm571, %v805, 0
      %v818 = vsel %vm571, %v807, 0
      %v820 = vsel %vm571, %v809, 0
      %v822 = vsel %vm571, %v811, 0
      %v824 = vsel %vm571, %v813, 0
      %826 = vmatprep.subr.mxu0 0.0
      %827 = vmatpush1.xpose.msra.mxu0 %v820
      %828 = vmatprep.subr.mxu0 0.0
      %829 = vmatpush1.xpose.msra.mxu0 %v822
      %830 = vmatprep.subr.mxu0 0.0
      %831 = vmatpush1.xpose.msra.mxu0 %v824
      %832 = vmatprep.subr.mxu0 0.0
      %833 = vmatpush1.xpose.msra.mxu0 0.0
      %834 = vmatprep.subr.mxu0 0.0
      %835 = vmatpush1.xpose.msra.mxu0 0.0
      %836 = vmatprep.subr.mxu0 0.0
      %837 = vmatpush1.xpose.msra.mxu0 0.0
      %838 = vmatprep.subr.mxu0 0.0
      %839 = vmatpush1.xpose.msra.mxu0 0.0
      %840 = vmatprep.subr.mxu0 0.0
      %841 = vmatpush1.xpose.msra.mxu0 0.0
      %842 = vmatprep.subr.mxu0 0.0
      %843 = vmatpush1.xpose.msra.mxu0 0.0
      %844 = vmatprep.subr.mxu0 0.0
      %845 = vmatpush1.xpose.msra.mxu0 0.0
      %846 = vmatprep.subr.mxu0 0.0
      %847 = vmatpush1.xpose.msra.mxu0 0.0
      %848 = vmatprep.subr.mxu0 0.0
      %849 = vmatpush1.xpose.msra.mxu0 0.0
      %850 = vmatprep.subr.mxu0 0.0
      %851 = vmatpush1.xpose.msra.mxu0 0.0
      %852 = vmatprep.subr.mxu0 0.0
      %853 = vmatpush1.xpose.msra.mxu0 0.0
      %854 = vmatprep.subr.mxu0 0.0
      %855 = vmatpush1.xpose.msra.mxu0 0.0
      %856 = vmatprep.subr.mxu0 0.0
      %857 = vmatpush1.xpose.msra.mxu0 0.0
      %858 = vmatprep.subr.mxu0 0.0
      %859 = vmatpush1.xpose.msra.mxu0 0.0
      %860 = vmatprep.subr.mxu0 0.0
      %861 = vmatpush1.xpose.msra.mxu0 0.0
      %862 = vmatprep.subr.mxu0 0.0
      %863 = vmatpush1.xpose.msra.mxu0 0.0
      %864 = vmatprep.subr.mxu0 0.0
      %865 = vmatpush1.xpose.msra.mxu0 0.0
      %866 = vmatprep.subr.mxu0 0.0
      %867 = vmatpush1.xpose.msra.mxu0 0.0
      %868 = vmatprep.subr.mxu0 0.0
      %869 = vmatpush1.xpose.msra.mxu0 0.0
      %870 = vmatprep.subr.mxu0 0.0
      %871 = vmatpush1.xpose.msra.mxu0 0.0
      %872 = vmatprep.subr.mxu0 0.0
      %873 = vmatpush1.xpose.msra.mxu0 0.0
      %874 = vmatprep.subr.mxu0 0.0
      %875 = vmatpush1.xpose.msra.mxu0 0.0
      %876 = vmatprep.subr.mxu0 0.0
      %877 = vmatpush1.xpose.msra.mxu0 0.0
      %878 = vmatprep.subr.mxu0 0.0
      %879 = vmatpush1.xpose.msra.mxu0 0.0
      %880 = vmatprep.subr.mxu0 0.0
      %881 = vmatpush1.xpose.msra.mxu0 0.0
      %882 = vmatprep.subr.mxu0 0.0
      %883 = vmatpush1.xpose.msra.mxu0 0.0
      %884 = vmatprep.subr.mxu0 0.0
      %885 = vmatpush1.xpose.msra.mxu0 0.0
      %886 = vmatprep.subr.mxu0 0.0
      %887 = vmatpush1.xpose.msra.mxu0 0.0
      %888 = vmatprep.subr.mxu0 0.0
      %889 = vmatpush1.xpose.msra.mxu0 0.0
      %890 = vmatprep.mubr.f32.mxu0 0.0
      %891 = vmatmul.mubr.f32.gmra.mrb[0].mxu0 %v814
      %v892 = vpop.f32.mrb[0].mxu0
      %v893 = vadd.f32 0.0, %v892
      %v894 = vpop.f32.mrb[0].mxu0
      %895 = vmatprep.mubr.f32.mxu0 0.0
      %896 = vmatmul.mubr.f32.gmra.mrb[0].mxu0 %v816
      %v897 = vpop.f32.mrb[0].mxu0
      %v898 = vadd.f32 0.0, %v897
      %v899 = vpop.f32.mrb[0].mxu0
      %900 = vmatprep.mubr.f32.mxu0 0.0
      %901 = vmatmul.mubr.f32.gmra.mrb[0].mxu0 %v818
      %v902 = vpop.f32.mrb[0].mxu0
      %v903 = vadd.f32 0.0, %v902
      %v904 = vpop.f32.mrb[0].mxu0
      %905 = vdwg.mxu0
      %v906 = vmul.f32 %v893, 0.35355338
      %v907 = vmul.f32 %v898, 0.35355338
      %v908 = vmul.f32 %v903, 0.35355338
      %v909 = vsel %vm667, %v906, -inf
      %910 = vmax.xlane.f32.xlu0 %v909
      %v911 = vpop.xlane.xlu0 %910
      %v912 = vsel %vm667, %v907, -inf
      %913 = vmax.xlane.f32.xlu0 %v912
      %v914 = vpop.xlane.xlu0 %913
      %v915 = vsel %vm674, %v908, -inf
      %916 = vmax.xlane.f32.xlu0 %v915
      %v917 = vpop.xlane.xlu0 %916
      %v918 = vsub.f32 %v906, %v911
      %v919 = vsub.f32 %v907, %v914
      %v920 = vsub.f32 %v908, %v917
      %v921 = vmul.f32 %v918, 1.442695
      %v922 = vpow.pop %v921
      %v923 = vmul.f32 %v919, 1.442695
      %v924 = vpow.pop %v923
      %v925 = vmul.f32 %v920, 1.442695
      %v926 = vpow.pop %v925
      %v927 = vsel %vm667, %v922, 0.0
      %928 = vadd.xlane.f32.xlu0 %v927
      %v929 = vpop.xlane.xlu0 %928
      %v930 = vsel %vm667, %v924, 0.0
      %931 = vadd.xlane.f32.xlu0 %v930
      %v932 = vpop.xlane.xlu0 %931
      %v933 = vsel %vm674, %v926, 0.0
      %934 = vadd.xlane.f32.xlu0 %v933
      %v935 = vpop.xlane.xlu0 %934
      %v936 = vrcp.pop %v929
      %v937 = vrcp.pop %v932
      %v938 = vrcp.pop %v935
      %v939 = vmul.f32 %v922, %v936
      %v940 = vmul.f32 %v924, %v937
      %v941 = vmul.f32 %v926, %v938
      %942 = vrot.lane.b32.xlu0 %v549, 56
      %v943 = vpop.permute.xlu0 %942
      %944 = vrot.lane.b32.xlu0 %v554, 56
      %v945 = vpop.permute.xlu0 %944
      %946 = vrot.lane.b32.xlu0 %v559, 56
      %v947 = vpop.permute.xlu0 %946
      %v951 = vsel %vm667, %v939, 0
      %v954 = vsel %vm667, %v940, 0
      %v957 = vsel %vm667, %v941, 0
      %v959 = vsel %vm719, %v947, 0
      %961 = vmatprep.subr.mxu0 0.0
      %962 = vmatpush1.msra.mxu0 %v943
      %963 = vmatprep.subr.mxu0 0.0
      %964 = vmatpush1.msra.mxu0 %v945
      %965 = vmatprep.subr.mxu0 0.0
      %966 = vmatpush1.msra.mxu0 %v959
      %967 = vmatprep.subr.mxu0 0.0
      %968 = vmatpush1.msra.mxu0 0.0
      %969 = vmatprep.subr.mxu0 0.0
      %970 = vmatpush1.msra.mxu0 0.0
      %971 = vmatprep.subr.mxu0 0.0
      %972 = vmatpush1.msra.mxu0 0.0
      %973 = vmatprep.subr.mxu0 0.0
      %974 = vmatpush1.msra.mxu0 0.0
      %975 = vmatprep.subr.mxu0 0.0
      %976 = vmatpush1.msra.mxu0 0.0
      %977 = vmatprep.subr.mxu0 0.0
      %978 = vmatpush1.msra.mxu0 0.0
      %979 = vmatprep.subr.mxu0 0.0
      %980 = vmatpush1.msra.mxu0 0.0
      %981 = vmatprep.subr.mxu0 0.0
      %982 = vmatpush1.msra.mxu0 0.0
      %983 = vmatprep.subr.mxu0 0.0
      %984 = vmatpush1.msra.mxu0 0.0
      %985 = vmatprep.subr.mxu0 0.0
      %986 = vmatpush1.msra.mxu0 0.0
      %987 = vmatprep.subr.mxu0 0.0
      %988 = vmatpush1.msra.mxu0 0.0
      %989 = vmatprep.subr.mxu0 0.0
      %990 = vmatpush1.msra.mxu0 0.0
      %991 = vmatprep.subr.mxu0 0.0
      %992 = vmatpush1.msra.mxu0 0.0
      %993 = vmatprep.subr.mxu0 0.0
      %994 = vmatpush1.msra.mxu0 0.0
      %995 = vmatprep.subr.mxu0 0.0
      %996 = vmatpush1.msra.mxu0 0.0
      %997 = vmatprep.subr.mxu0 0.0
      %998 = vmatpush1.msra.mxu0 0.0
      %999 = vmatprep.subr.mxu0 0.0
      %1000 = vmatpush1.msra.mxu0 0.0
      %1001 = vmatprep.subr.mxu0 0.0
      %1002 = vmatpush1.msra.mxu0 0.0
      %1003 = vmatprep.subr.mxu0 0.0
      %1004 = vmatpush1.msra.mxu0 0.0
      %1005 = vmatprep.subr.mxu0 0.0
      %1006 = vmatpush1.msra.mxu0 0.0
      %1007 = vmatprep.subr.mxu0 0.0
      %1008 = vmatpush1.msra.mxu0 0.0
      %1009 = vmatprep.subr.mxu0 0.0
      %1010 = vmatpush1.msra.mxu0 0.0
      %1011 = vmatprep.subr.mxu0 0.0
      %1012 = vmatpush1.msra.mxu0 0.0
      %1013 = vmatprep.subr.mxu0 0.0
      %1014 = vmatpush1.msra.mxu0 0.0
      %1015 = vmatprep.subr.mxu0 0.0
      %1016 = vmatpush1.msra.mxu0 0.0
      %1017 = vmatprep.subr.mxu0 0.0
      %1018 = vmatpush1.msra.mxu0 0.0
      %1019 = vmatprep.subr.mxu0 0.0
      %1020 = vmatpush1.msra.mxu0 0.0
      %1021 = vmatprep.subr.mxu0 0.0
      %1022 = vmatpush1.msra.mxu0 0.0
      %1023 = vmatprep.subr.mxu0 0.0
      %1024 = vmatpush1.msra.mxu0 0.0
      %1025 = vmatprep.mubr.f32.mxu0 0.0
      %1026 = vmatmul.mubr.f32.gmra.mrb[0].mxu0 %v951
      %v1027 = vpop.f32.mrb[0].mxu0
      %v1028 = vadd.f32 0.0, %v1027
      %v1029 = vpop.f32.mrb[0].mxu0
      %1030 = vmatprep.mubr.f32.mxu0 0.0
      %1031 = vmatmul.mubr.f32.gmra.mrb[0].mxu0 %v954
      %v1032 = vpop.f32.mrb[0].mxu0
      %v1033 = vadd.f32 0.0, %v1032
      %v1034 = vpop.f32.mrb[0].mxu0
      %1035 = vmatprep.mubr.f32.mxu0 0.0
      %1036 = vmatmul.mubr.f32.gmra.mrb[0].mxu0 %v957
      %v1037 = vpop.f32.mrb[0].mxu0
      %v1038 = vadd.f32 0.0, %v1037
      %v1039 = vpop.f32.mrb[0].mxu0
      %1040 = vdwg.mxu0
      %1041 = vrot.lane.b32.xlu0 %v549, 112
      %v1042 = vpop.permute.xlu0 %1041
      %1043 = vrot.lane.b32.xlu0 %v554, 112
      %v1044 = vpop.permute.xlu0 %1043
      %1045 = vrot.lane.b32.xlu0 %v559, 112
      %v1046 = vpop.permute.xlu0 %1045
      %1047 = vrot.lane.b32.xlu0 %v549, 80
      %v1048 = vpop.permute.xlu0 %1047
      %1049 = vrot.lane.b32.xlu0 %v554, 80
      %v1050 = vpop.permute.xlu0 %1049
      %1051 = vrot.lane.b32.xlu0 %v559, 80
      %v1052 = vpop.permute.xlu0 %1051
      %v1053 = vsel %vm571, %v1042, 0
      %v1055 = vsel %vm571, %v1044, 0
      %v1057 = vsel %vm571, %v1046, 0
      %v1059 = vsel %vm571, %v1048, 0
      %v1061 = vsel %vm571, %v1050, 0
      %v1063 = vsel %vm571, %v1052, 0
      %1065 = vmatprep.subr.mxu0 0.0
      %1066 = vmatpush1.xpose.msra.mxu0 %v1059
      %1067 = vmatprep.subr.mxu0 0.0
      %1068 = vmatpush1.xpose.msra.mxu0 %v1061
      %1069 = vmatprep.subr.mxu0 0.0
      %1070 = vmatpush1.xpose.msra.mxu0 %v1063
      %1071 = vmatprep.subr.mxu0 0.0
      %1072 = vmatpush1.xpose.msra.mxu0 0.0
      %1073 = vmatprep.subr.mxu0 0.0
      %1074 = vmatpush1.xpose.msra.mxu0 0.0
      %1075 = vmatprep.subr.mxu0 0.0
      %1076 = vmatpush1.xpose.msra.mxu0 0.0
      %1077 = vmatprep.subr.mxu0 0.0
      %1078 = vmatpush1.xpose.msra.mxu0 0.0
      %1079 = vmatprep.subr.mxu0 0.0
      %1080 = vmatpush1.xpose.msra.mxu0 0.0
      %1081 = vmatprep.subr.mxu0 0.0
      %1082 = vmatpush1.xpose.msra.mxu0 0.0
      %1083 = vmatprep.subr.mxu0 0.0
      %1084 = vmatpush1.xpose.msra.mxu0 0.0
      %1085 = vmatprep.subr.mxu0 0.0
      %1086 = vmatpush1.xpose.msra.mxu0 0.0
      %1087 = vmatprep.subr.mxu0 0.0
      %1088 = vmatpush1.xpose.msra.mxu0 0.0
      %1089 = vmatprep.subr.mxu0 0.0
      %1090 = vmatpush1.xpose.msra.mxu0 0.0
      %1091 = vmatprep.subr.mxu0 0.0
      %1092 = vmatpush1.xpose.msra.mxu0 0.0
      %1093 = vmatprep.subr.mxu0 0.0
      %1094 = vmatpush1.xpose.msra.mxu0 0.0
      %1095 = vmatprep.subr.mxu0 0.0
      %1096 = vmatpush1.xpose.msra.mxu0 0.0
      %1097 = vmatprep.subr.mxu0 0.0
      %1098 = vmatpush1.xpose.msra.mxu0 0.0
      %1099 = vmatprep.subr.mxu0 0.0
      %1100 = vmatpush1.xpose.msra.mxu0 0.0
      %1101 = vmatprep.subr.mxu0 0.0
      %1102 = vmatpush1.xpose.msra.mxu0 0.0
      %1103 = vmatprep.subr.mxu0 0.0
      %1104 = vmatpush1.xpose.msra.mxu0 0.0
      %1105 = vmatprep.subr.mxu0 0.0
      %1106 = vmatpush1.xpose.msra.mxu0 0.0
      %1107 = vmatprep.subr.mxu0 0.0
      %1108 = vmatpush1.xpose.msra.mxu0 0.0
      %1109 = vmatprep.subr.mxu0 0.0
      %1110 = vmatpush1.xpose.msra.mxu0 0.0
      %1111 = vmatprep.subr.mxu0 0.0
      %1112 = vmatpush1.xpose.msra.mxu0 0.0
      %1113 = vmatprep.subr.mxu0 0.0
      %1114 = vmatpush1.xpose.msra.mxu0 0.0
      %1115 = vmatprep.subr.mxu0 0.0
      %1116 = vmatpush1.xpose.msra.mxu0 0.0
      %1117 = vmatprep.subr.mxu0 0.0
      %1118 = vmatpush1.xpose.msra.mxu0 0.0
      %1119 = vmatprep.subr.mxu0 0.0
      %1120 = vmatpush1.xpose.msra.mxu0 0.0
      %1121 = vmatprep.subr.mxu0 0.0
      %1122 = vmatpush1.xpose.msra.mxu0 0.0
      %1123 = vmatprep.subr.mxu0 0.0
      %1124 = vmatpush1.xpose.msra.mxu0 0.0
      %1125 = vmatprep.subr.mxu0 0.0
      %1126 = vmatpush1.xpose.msra.mxu0 0.0
      %1127 = vmatprep.subr.mxu0 0.0
      %1128 = vmatpush1.xpose.msra.mxu0 0.0
      %1129 = vmatprep.mubr.f32.mxu0 0.0
      %1130 = vmatmul.mubr.f32.gmra.mrb[0].mxu0 %v1053
      %v1131 = vpop.f32.mrb[0].mxu0
      %v1132 = vadd.f32 0.0, %v1131
      %v1133 = vpop.f32.mrb[0].mxu0
      %1134 = vmatprep.mubr.f32.mxu0 0.0
      %1135 = vmatmul.mubr.f32.gmra.mrb[0].mxu0 %v1055
      %v1136 = vpop.f32.mrb[0].mxu0
      %v1137 = vadd.f32 0.0, %v1136
      %v1138 = vpop.f32.mrb[0].mxu0
      %1139 = vmatprep.mubr.f32.mxu0 0.0
      %1140 = vmatmul.mubr.f32.gmra.mrb[0].mxu0 %v1057
      %v1141 = vpop.f32.mrb[0].mxu0
      %v1142 = vadd.f32 0.0, %v1141
      %v1143 = vpop.f32.mrb[0].mxu0
      %1144 = vdwg.mxu0
      %v1145 = vmul.f32 %v1132, 0.35355338
      %v1146 = vmul.f32 %v1137, 0.35355338
      %v1147 = vmul.f32 %v1142, 0.35355338
      %v1148 = vsel %vm667, %v1145, -inf
      %1149 = vmax.xlane.f32.xlu0 %v1148
      %v1150 = vpop.xlane.xlu0 %1149
      %v1151 = vsel %vm667, %v1146, -inf
      %1152 = vmax.xlane.f32.xlu0 %v1151
      %v1153 = vpop.xlane.xlu0 %1152
      %v1154 = vsel %vm674, %v1147, -inf
      %1155 = vmax.xlane.f32.xlu0 %v1154
      %v1156 = vpop.xlane.xlu0 %1155
      %v1157 = vsub.f32 %v1145, %v1150
      %v1158 = vsub.f32 %v1146, %v1153
      %v1159 = vsub.f32 %v1147, %v1156
      %v1160 = vmul.f32 %v1157, 1.442695
      %v1161 = vpow.pop %v1160
      %v1162 = vmul.f32 %v1158, 1.442695
      %v1163 = vpow.pop %v1162
      %v1164 = vmul.f32 %v1159, 1.442695
      %v1165 = vpow.pop %v1164
      %v1166 = vsel %vm667, %v1161, 0.0
      %1167 = vadd.xlane.f32.xlu0 %v1166
      %v1168 = vpop.xlane.xlu0 %1167
      %v1169 = vsel %vm667, %v1163, 0.0
      %1170 = vadd.xlane.f32.xlu0 %v1169
      %v1171 = vpop.xlane.xlu0 %1170
      %v1172 = vsel %vm674, %v1165, 0.0
      %1173 = vadd.xlane.f32.xlu0 %v1172
      %v1174 = vpop.xlane.xlu0 %1173
      %v1175 = vrcp.pop %v1168
      %v1176 = vrcp.pop %v1171
      %v1177 = vrcp.pop %v1174
      %v1178 = vmul.f32 %v1161, %v1175
      %v1179 = vmul.f32 %v1163, %v1176
      %v1180 = vmul.f32 %v1165, %v1177
      %1181 = vrot.lane.b32.xlu0 %v549, 48
      %v1182 = vpop.permute.xlu0 %1181
      %1183 = vrot.lane.b32.xlu0 %v554, 48
      %v1184 = vpop.permute.xlu0 %1183
      %1185 = vrot.lane.b32.xlu0 %v559, 48
      %v1186 = vpop.permute.xlu0 %1185
      %v1190 = vsel %vm667, %v1178, 0
      %v1193 = vsel %vm667, %v1179, 0
      %v1196 = vsel %vm667, %v1180, 0
      %v1198 = vsel %vm719, %v1186, 0
      %1200 = vmatprep.subr.mxu0 0.0
      %1201 = vmatpush1.msra.mxu0 %v1182
      %1202 = vmatprep.subr.mxu0 0.0
      %1203 = vmatpush1.msra.mxu0 %v1184
      %1204 = vmatprep.subr.mxu0 0.0
      %1205 = vmatpush1.msra.mxu0 %v1198
      %1206 = vmatprep.subr.mxu0 0.0
      %1207 = vmatpush1.msra.mxu0 0.0
      %1208 = vmatprep.subr.mxu0 0.0
      %1209 = vmatpush1.msra.mxu0 0.0
      %1210 = vmatprep.subr.mxu0 0.0
      %1211 = vmatpush1.msra.mxu0 0.0
      %1212 = vmatprep.subr.mxu0 0.0
      %1213 = vmatpush1.msra.mxu0 0.0
      %1214 = vmatprep.subr.mxu0 0.0
      %1215 = vmatpush1.msra.mxu0 0.0
      %1216 = vmatprep.subr.mxu0 0.0
      %1217 = vmatpush1.msra.mxu0 0.0
      %1218 = vmatprep.subr.mxu0 0.0
      %1219 = vmatpush1.msra.mxu0 0.0
      %1220 = vmatprep.subr.mxu0 0.0
      %1221 = vmatpush1.msra.mxu0 0.0
      %1222 = vmatprep.subr.mxu0 0.0
      %1223 = vmatpush1.msra.mxu0 0.0
      %1224 = vmatprep.subr.mxu0 0.0
      %1225 = vmatpush1.msra.mxu0 0.0
      %1226 = vmatprep.subr.mxu0 0.0
      %1227 = vmatpush1.msra.mxu0 0.0
      %1228 = vmatprep.subr.mxu0 0.0
      %1229 = vmatpush1.msra.mxu0 0.0
      %1230 = vmatprep.subr.mxu0 0.0
      %1231 = vmatpush1.msra.mxu0 0.0
      %1232 = vmatprep.subr.mxu0 0.0
      %1233 = vmatpush1.msra.mxu0 0.0
      %1234 = vmatprep.subr.mxu0 0.0
      %1235 = vmatpush1.msra.mxu0 0.0
      %1236 = vmatprep.subr.mxu0 0.0
      %1237 = vmatpush1.msra.mxu0 0.0
      %1238 = vmatprep.subr.mxu0 0.0
      %1239 = vmatpush1.msra.mxu0 0.0
      %1240 = vmatprep.subr.mxu0 0.0
      %1241 = vmatpush1.msra.mxu0 0.0
      %1242 = vmatprep.subr.mxu0 0.0
      %1243 = vmatpush1.msra.mxu0 0.0
      %1244 = vmatprep.subr.mxu0 0.0
      %1245 = vmatpush1.msra.mxu0 0.0
      %1246 = vmatprep.subr.mxu0 0.0
      %1247 = vmatpush1.msra.mxu0 0.0
      %1248 = vmatprep.subr.mxu0 0.0
      %1249 = vmatpush1.msra.mxu0 0.0
      %1250 = vmatprep.subr.mxu0 0.0
      %1251 = vmatpush1.msra.mxu0 0.0
      %1252 = vmatprep.subr.mxu0 0.0
      %1253 = vmatpush1.msra.mxu0 0.0
      %1254 = vmatprep.subr.mxu0 0.0
      %1255 = vmatpush1.msra.mxu0 0.0
      %1256 = vmatprep.subr.mxu0 0.0
      %1257 = vmatpush1.msra.mxu0 0.0
      %1258 = vmatprep.subr.mxu0 0.0
      %1259 = vmatpush1.msra.mxu0 0.0
      %1260 = vmatprep.subr.mxu0 0.0
      %1261 = vmatpush1.msra.mxu0 0.0
      %1262 = vmatprep.subr.mxu0 0.0
      %1263 = vmatpush1.msra.mxu0 0.0
      %1264 = vmatprep.mubr.f32.mxu0 0.0
      %1265 = vmatmul.mubr.f32.gmra.mrb[0].mxu0 %v1190
      %v1266 = vpop.f32.mrb[0].mxu0
      %v1267 = vadd.f32 0.0, %v1266
      %v1268 = vpop.f32.mrb[0].mxu0
      %1269 = vmatprep.mubr.f32.mxu0 0.0
      %1270 = vmatmul.mubr.f32.gmra.mrb[0].mxu0 %v1193
      %v1271 = vpop.f32.mrb[0].mxu0
      %v1272 = vadd.f32 0.0, %v1271
      %v1273 = vpop.f32.mrb[0].mxu0
      %1274 = vmatprep.mubr.f32.mxu0 0.0
      %1275 = vmatmul.mubr.f32.gmra.mrb[0].mxu0 %v1196
      %v1276 = vpop.f32.mrb[0].mxu0
      %v1277 = vadd.f32 0.0, %v1276
      %v1278 = vpop.f32.mrb[0].mxu0
      %1279 = vdwg.mxu0
      %1280 = vrot.lane.b32.xlu0 %v549, 104
      %v1281 = vpop.permute.xlu0 %1280
      %1282 = vrot.lane.b32.xlu0 %v554, 104
      %v1283 = vpop.permute.xlu0 %1282
      %1284 = vrot.lane.b32.xlu0 %v559, 104
      %v1285 = vpop.permute.xlu0 %1284
      %1286 = vrot.lane.b32.xlu0 %v549, 72
      %v1287 = vpop.permute.xlu0 %1286
      %1288 = vrot.lane.b32.xlu0 %v554, 72
      %v1289 = vpop.permute.xlu0 %1288
      %1290 = vrot.lane.b32.xlu0 %v559, 72
      %v1291 = vpop.permute.xlu0 %1290
      %v1292 = vsel %vm571, %v1281, 0
      %v1294 = vsel %vm571, %v1283, 0
      %v1296 = vsel %vm571, %v1285, 0
      %v1298 = vsel %vm571, %v1287, 0
      %v1300 = vsel %vm571, %v1289, 0
      %v1302 = vsel %vm571, %v1291, 0
      %1304 = vmatprep.subr.mxu0 0.0
      %1305 = vmatpush1.xpose.msra.mxu0 %v1298
      %1306 = vmatprep.subr.mxu0 0.0
      %1307 = vmatpush1.xpose.msra.mxu0 %v1300
      %1308 = vmatprep.subr.mxu0 0.0
      %1309 = vmatpush1.xpose.msra.mxu0 %v1302
      %1310 = vmatprep.subr.mxu0 0.0
      %1311 = vmatpush1.xpose.msra.mxu0 0.0
      %1312 = vmatprep.subr.mxu0 0.0
      %1313 = vmatpush1.xpose.msra.mxu0 0.0
      %1314 = vmatprep.subr.mxu0 0.0
      %1315 = vmatpush1.xpose.msra.mxu0 0.0
      %1316 = vmatprep.subr.mxu0 0.0
      %1317 = vmatpush1.xpose.msra.mxu0 0.0
      %1318 = vmatprep.subr.mxu0 0.0
      %1319 = vmatpush1.xpose.msra.mxu0 0.0
      %1320 = vmatprep.subr.mxu0 0.0
      %1321 = vmatpush1.xpose.msra.mxu0 0.0
      %1322 = vmatprep.subr.mxu0 0.0
      %1323 = vmatpush1.xpose.msra.mxu0 0.0
      %1324 = vmatprep.subr.mxu0 0.0
      %1325 = vmatpush1.xpose.msra.mxu0 0.0
      %1326 = vmatprep.subr.mxu0 0.0
      %1327 = vmatpush1.xpose.msra.mxu0 0.0
      %1328 = vmatprep.subr.mxu0 0.0
      %1329 = vmatpush1.xpose.msra.mxu0 0.0
      %1330 = vmatprep.subr.mxu0 0.0
      %1331 = vmatpush1.xpose.msra.mxu0 0.0
      %1332 = vmatprep.subr.mxu0 0.0
      %1333 = vmatpush1.xpose.msra.mxu0 0.0
      %1334 = vmatprep.subr.mxu0 0.0
      %1335 = vmatpush1.xpose.msra.mxu0 0.0
      %1336 = vmatprep.subr.mxu0 0.0
      %1337 = vmatpush1.xpose.msra.mxu0 0.0
      %1338 = vmatprep.subr.mxu0 0.0
      %1339 = vmatpush1.xpose.msra.mxu0 0.0
      %1340 = vmatprep.subr.mxu0 0.0
      %1341 = vmatpush1.xpose.msra.mxu0 0.0
      %1342 = vmatprep.subr.mxu0 0.0
      %1343 = vmatpush1.xpose.msra.mxu0 0.0
      %1344 = vmatprep.subr.mxu0 0.0
      %1345 = vmatpush1.xpose.msra.mxu0 0.0
      %1346 = vmatprep.subr.mxu0 0.0
      %1347 = vmatpush1.xpose.msra.mxu0 0.0
      %1348 = vmatprep.subr.mxu0 0.0
      %1349 = vmatpush1.xpose.msra.mxu0 0.0
      %1350 = vmatprep.subr.mxu0 0.0
      %1351 = vmatpush1.xpose.msra.mxu0 0.0
      %1352 = vmatprep.subr.mxu0 0.0
      %1353 = vmatpush1.xpose.msra.mxu0 0.0
      %1354 = vmatprep.subr.mxu0 0.0
      %1355 = vmatpush1.xpose.msra.mxu0 0.0
      %1356 = vmatprep.subr.mxu0 0.0
      %1357 = vmatpush1.xpose.msra.mxu0 0.0
      %1358 = vmatprep.subr.mxu0 0.0
      %1359 = vmatpush1.xpose.msra.mxu0 0.0
      %1360 = vmatprep.subr.mxu0 0.0
      %1361 = vmatpush1.xpose.msra.mxu0 0.0
      %1362 = vmatprep.subr.mxu0 0.0
      %1363 = vmatpush1.xpose.msra.mxu0 0.0
      %1364 = vmatprep.subr.mxu0 0.0
      %1365 = vmatpush1.xpose.msra.mxu0 0.0
      %1366 = vmatprep.subr.mxu0 0.0
      %1367 = vmatpush1.xpose.msra.mxu0 0.0
      %1368 = vmatprep.mubr.f32.mxu0 0.0
      %1369 = vmatmul.mubr.f32.gmra.mrb[0].mxu0 %v1292
      %v1370 = vpop.f32.mrb[0].mxu0
      %v1371 = vadd.f32 0.0, %v1370
      %v1372 = vpop.f32.mrb[0].mxu0
      %1373 = vmatprep.mubr.f32.mxu0 0.0
      %1374 = vmatmul.mubr.f32.gmra.mrb[0].mxu0 %v1294
      %v1375 = vpop.f32.mrb[0].mxu0
      %v1376 = vadd.f32 0.0, %v1375
      %v1377 = vpop.f32.mrb[0].mxu0
      %1378 = vmatprep.mubr.f32.mxu0 0.0
      %1379 = vmatmul.mubr.f32.gmra.mrb[0].mxu0 %v1296
      %v1380 = vpop.f32.mrb[0].mxu0
      %v1381 = vadd.f32 0.0, %v1380
      %v1382 = vpop.f32.mrb[0].mxu0
      %1383 = vdwg.mxu0
      %v1384 = vmul.f32 %v1371, 0.35355338
      %v1385 = vmul.f32 %v1376, 0.35355338
      %v1386 = vmul.f32 %v1381, 0.35355338
      %v1387 = vsel %vm667, %v1384, -inf
      %1388 = vmax.xlane.f32.xlu0 %v1387
      %v1389 = vpop.xlane.xlu0 %1388
      %v1390 = vsel %vm667, %v1385, -inf
      %1391 = vmax.xlane.f32.xlu0 %v1390
      %v1392 = vpop.xlane.xlu0 %1391
      %v1393 = vsel %vm674, %v1386, -inf
      %1394 = vmax.xlane.f32.xlu0 %v1393
      %v1395 = vpop.xlane.xlu0 %1394
      %v1396 = vsub.f32 %v1384, %v1389
      %v1397 = vsub.f32 %v1385, %v1392
      %v1398 = vsub.f32 %v1386, %v1395
      %v1399 = vmul.f32 %v1396, 1.442695
      %v1400 = vpow.pop %v1399
      %v1401 = vmul.f32 %v1397, 1.442695
      %v1402 = vpow.pop %v1401
      %v1403 = vmul.f32 %v1398, 1.442695
      %v1404 = vpow.pop %v1403
      %v1405 = vsel %vm667, %v1400, 0.0
      %1406 = vadd.xlane.f32.xlu0 %v1405
      %v1407 = vpop.xlane.xlu0 %1406
      %v1408 = vsel %vm667, %v1402, 0.0
      %1409 = vadd.xlane.f32.xlu0 %v1408
      %v1410 = vpop.xlane.xlu0 %1409
      %v1411 = vsel %vm674, %v1404, 0.0
      %1412 = vadd.xlane.f32.xlu0 %v1411
      %v1413 = vpop.xlane.xlu0 %1412
      %v1414 = vrcp.pop %v1407
      %v1415 = vrcp.pop %v1410
      %v1416 = vrcp.pop %v1413
      %v1417 = vmul.f32 %v1400, %v1414
      %v1418 = vmul.f32 %v1402, %v1415
      %v1419 = vmul.f32 %v1404, %v1416
      %1420 = vrot.lane.b32.xlu0 %v549, 40
      %v1421 = vpop.permute.xlu0 %1420
      %1422 = vrot.lane.b32.xlu0 %v554, 40
      %v1423 = vpop.permute.xlu0 %1422
      %1424 = vrot.lane.b32.xlu0 %v559, 40
      %v1425 = vpop.permute.xlu0 %1424
      %v1429 = vsel %vm667, %v1417, 0
      %v1432 = vsel %vm667, %v1418, 0
      %v1435 = vsel %vm667, %v1419, 0
      %v1437 = vsel %vm719, %v1425, 0
      %1439 = vmatprep.subr.mxu0 0.0
      %1440 = vmatpush1.msra.mxu0 %v1421
      %1441 = vmatprep.subr.mxu0 0.0
      %1442 = vmatpush1.msra.mxu0 %v1423
      %1443 = vmatprep.subr.mxu0 0.0
      %1444 = vmatpush1.msra.mxu0 %v1437
      %1445 = vmatprep.subr.mxu0 0.0
      %1446 = vmatpush1.msra.mxu0 0.0
      %1447 = vmatprep.subr.mxu0 0.0
      %1448 = vmatpush1.msra.mxu0 0.0
      %1449 = vmatprep.subr.mxu0 0.0
      %1450 = vmatpush1.msra.mxu0 0.0
      %1451 = vmatprep.subr.mxu0 0.0
      %1452 = vmatpush1.msra.mxu0 0.0
      %1453 = vmatprep.subr.mxu0 0.0
      %1454 = vmatpush1.msra.mxu0 0.0
      %1455 = vmatprep.subr.mxu0 0.0
      %1456 = vmatpush1.msra.mxu0 0.0
      %1457 = vmatprep.subr.mxu0 0.0
      %1458 = vmatpush1.msra.mxu0 0.0
      %1459 = vmatprep.subr.mxu0 0.0
      %1460 = vmatpush1.msra.mxu0 0.0
      %1461 = vmatprep.subr.mxu0 0.0
      %1462 = vmatpush1.msra.mxu0 0.0
      %1463 = vmatprep.subr.mxu0 0.0
      %1464 = vmatpush1.msra.mxu0 0.0
      %1465 = vmatprep.subr.mxu0 0.0
      %1466 = vmatpush1.msra.mxu0 0.0
      %1467 = vmatprep.subr.mxu0 0.0
      %1468 = vmatpush1.msra.mxu0 0.0
      %1469 = vmatprep.subr.mxu0 0.0
      %1470 = vmatpush1.msra.mxu0 0.0
      %1471 = vmatprep.subr.mxu0 0.0
      %1472 = vmatpush1.msra.mxu0 0.0
      %1473 = vmatprep.subr.mxu0 0.0
      %1474 = vmatpush1.msra.mxu0 0.0
      %1475 = vmatprep.subr.mxu0 0.0
      %1476 = vmatpush1.msra.mxu0 0.0
      %1477 = vmatprep.subr.mxu0 0.0
      %1478 = vmatpush1.msra.mxu0 0.0
      %1479 = vmatprep.subr.mxu0 0.0
      %1480 = vmatpush1.msra.mxu0 0.0
      %1481 = vmatprep.subr.mxu0 0.0
      %1482 = vmatpush1.msra.mxu0 0.0
      %1483 = vmatprep.subr.mxu0 0.0
      %1484 = vmatpush1.msra.mxu0 0.0
      %1485 = vmatprep.subr.mxu0 0.0
      %1486 = vmatpush1.msra.mxu0 0.0
      %1487 = vmatprep.subr.mxu0 0.0
      %1488 = vmatpush1.msra.mxu0 0.0
      %1489 = vmatprep.subr.mxu0 0.0
      %1490 = vmatpush1.msra.mxu0 0.0
      %1491 = vmatprep.subr.mxu0 0.0
      %1492 = vmatpush1.msra.mxu0 0.0
      %1493 = vmatprep.subr.mxu0 0.0
      %1494 = vmatpush1.msra.mxu0 0.0
      %1495 = vmatprep.subr.mxu0 0.0
      %1496 = vmatpush1.msra.mxu0 0.0
      %1497 = vmatprep.subr.mxu0 0.0
      %1498 = vmatpush1.msra.mxu0 0.0
      %1499 = vmatprep.subr.mxu0 0.0
      %1500 = vmatpush1.msra.mxu0 0.0
      %1501 = vmatprep.subr.mxu0 0.0
      %1502 = vmatpush1.msra.mxu0 0.0
      %1503 = vmatprep.mubr.f32.mxu0 0.0
      %1504 = vmatmul.mubr.f32.gmra.mrb[0].mxu0 %v1429
      %v1505 = vpop.f32.mrb[0].mxu0
      %v1506 = vadd.f32 0.0, %v1505
      %v1507 = vpop.f32.mrb[0].mxu0
      %1508 = vmatprep.mubr.f32.mxu0 0.0
      %1509 = vmatmul.mubr.f32.gmra.mrb[0].mxu0 %v1432
      %v1510 = vpop.f32.mrb[0].mxu0
      %v1511 = vadd.f32 0.0, %v1510
      %v1512 = vpop.f32.mrb[0].mxu0
      %1513 = vmatprep.mubr.f32.mxu0 0.0
      %1514 = vmatmul.mubr.f32.gmra.mrb[0].mxu0 %v1435
      %v1515 = vpop.f32.mrb[0].mxu0
      %v1516 = vadd.f32 0.0, %v1515
      %v1517 = vpop.f32.mrb[0].mxu0
      %1518 = vdwg.mxu0
      %1522 = vrot.lane.b32.xlu0 %v1028, 8
      %v1523 = vpop.permute.xlu0 %1522
      %1524 = vrot.lane.b32.xlu0 %v1033, 8
      %v1525 = vpop.permute.xlu0 %1524
      %1526 = vrot.lane.b32.xlu0 %v1038, 8
      %v1527 = vpop.permute.xlu0 %1526
      %1534 = vrot.lane.b32.xlu0 %v1267, 16
      %v1535 = vpop.permute.xlu0 %1534
      %1536 = vrot.lane.b32.xlu0 %v1272, 16
      %v1537 = vpop.permute.xlu0 %1536
      %1538 = vrot.lane.b32.xlu0 %v1277, 16
      %v1539 = vpop.permute.xlu0 %1538
      %1546 = vrot.lane.b32.xlu0 %v1506, 24
      %v1547 = vpop.permute.xlu0 %1546
      %1548 = vrot.lane.b32.xlu0 %v1511, 24
      %v1549 = vpop.permute.xlu0 %1548
      %1550 = vrot.lane.b32.xlu0 %v1516, 24
      %v1551 = vpop.permute.xlu0 %1550
      %v1555 = vsel %vm571, %v789, %v1523
      %v1556 = vsel %vm571, %v794, %v1525
      %v1557 = vsel %vm571, %v799, %v1527
      %vm1558 = vcmask 130048
      %v1559 = vsel %vm1558, %v1555, %v1535
      %v1560 = vsel %vm1558, %v1556, %v1537
      %v1561 = vsel %vm1558, %v1557, %v1539
      %vm1562 = vcmask 195584
      %v1563 = vsel %vm1562, %v1559, %v1547
      %v1564 = vsel %vm1562, %v1560, %v1549
      %v1565 = vsel %vm1562, %v1561, %v1551
      %v1566 = vld [vmem:[%s5] sm:$0xff]
      %v1567 = vld [vmem:[%s5 + $0x8] sm:$0xff]
      %v1568 = vld [vmem:[%s5 + $0x10] sm:$0xff]
      %v1569 = vld [vmem:[%s5 + $0x18] sm:$0xff]
      %v1571 = vsel %vm413, %v1563, 0
      %v1574 = vsel %vm413, %v1564, 0
      %v1577 = vsel %vm413, %v1565, 0
      %1579 = vmatprep.subr.mxu0 0.0
      %1580 = vmatpush1.msra.mxu0 %v1566
      %1581 = vmatprep.subr.mxu0 0.0
      %1582 = vmatpush1.msra.mxu0 %v1567
      %1583 = vmatprep.subr.mxu0 0.0
      %1584 = vmatpush1.msra.mxu0 %v1568
      %1585 = vmatprep.subr.mxu0 0.0
      %1586 = vmatpush1.msra.mxu0 %v1569
      %1587 = vmatprep.subr.mxu0 0.0
      %1588 = vmatpush1.msra.mxu0 0.0
      %1589 = vmatprep.subr.mxu0 0.0
      %1590 = vmatpush1.msra.mxu0 0.0
      %1591 = vmatprep.subr.mxu0 0.0
      %1592 = vmatpush1.msra.mxu0 0.0
      %1593 = vmatprep.subr.mxu0 0.0
      %1594 = vmatpush1.msra.mxu0 0.0
      %1595 = vmatprep.subr.mxu0 0.0
      %1596 = vmatpush1.msra.mxu0 0.0
      %1597 = vmatprep.subr.mxu0 0.0
      %1598 = vmatpush1.msra.mxu0 0.0
      %1599 = vmatprep.subr.mxu0 0.0
      %1600 = vmatpush1.msra.mxu0 0.0
      %1601 = vmatprep.subr.mxu0 0.0
      %1602 = vmatpush1.msra.mxu0 0.0
      %1603 = vmatprep.subr.mxu0 0.0
      %1604 = vmatpush1.msra.mxu0 0.0
      %1605 = vmatprep.subr.mxu0 0.0
      %1606 = vmatpush1.msra.mxu0 0.0
      %1607 = vmatprep.subr.mxu0 0.0
      %1608 = vmatpush1.msra.mxu0 0.0
      %1609 = vmatprep.subr.mxu0 0.0
      %1610 = vmatpush1.msra.mxu0 0.0
      %1611 = vmatprep.subr.mxu0 0.0
      %1612 = vmatpush1.msra.mxu0 0.0
      %1613 = vmatprep.subr.mxu0 0.0
      %1614 = vmatpush1.msra.mxu0 0.0
      %1615 = vmatprep.subr.mxu0 0.0
      %1616 = vmatpush1.msra.mxu0 0.0
      %1617 = vmatprep.subr.mxu0 0.0
      %1618 = vmatpush1.msra.mxu0 0.0
      %1619 = vmatprep.subr.mxu0 0.0
      %1620 = vmatpush1.msra.mxu0 0.0
      %1621 = vmatprep.subr.mxu0 0.0
      %1622 = vmatpush1.msra.mxu0 0.0
      %1623 = vmatprep.subr.mxu0 0.0
      %1624 = vmatpush1.msra.mxu0 0.0
      %1625 = vmatprep.subr.mxu0 0.0
      %1626 = vmatpush1.msra.mxu0 0.0
      %1627 = vmatprep.subr.mxu0 0.0
      %1628 = vmatpush1.msra.mxu0 0.0
      %1629 = vmatprep.subr.mxu0 0.0
      %1630 = vmatpush1.msra.mxu0 0.0
      %1631 = vmatprep.subr.mxu0 0.0
      %1632 = vmatpush1.msra.mxu0 0.0
      %1633 = vmatprep.subr.mxu0 0.0
      %1634 = vmatpush1.msra.mxu0 0.0
      %1635 = vmatprep.subr.mxu0 0.0
      %1636 = vmatpush1.msra.mxu0 0.0
      %1637 = vmatprep.subr.mxu0 0.0
      %1638 = vmatpush1.msra.mxu0 0.0
      %1639 = vmatprep.subr.mxu0 0.0
      %1640 = vmatpush1.msra.mxu0 0.0
      %1641 = vmatprep.subr.mxu0 0.0
      %1642 = vmatpush1.msra.mxu0 0.0
      %1643 = vmatprep.mubr.f32.mxu0 0.0
      %1644 = vmatmul.mubr.f32.gmra.mrb[0].mxu0 %v1571
      %v1645 = vpop.f32.mrb[0].mxu0
      %v1646 = vadd.f32 0.0, %v1645
      %v1647 = vpop.f32.mrb[0].mxu0
      %1648 = vmatprep.mubr.f32.mxu0 0.0
      %1649 = vmatmul.mubr.f32.gmra.mrb[0].mxu0 %v1574
      %v1650 = vpop.f32.mrb[0].mxu0
      %v1651 = vadd.f32 0.0, %v1650
      %v1652 = vpop.f32.mrb[0].mxu0
      %1653 = vmatprep.mubr.f32.mxu0 0.0
      %1654 = vmatmul.mubr.f32.gmra.mrb[0].mxu0 %v1577
      %v1655 = vpop.f32.mrb[0].mxu0
      %v1656 = vadd.f32 0.0, %v1655
      %v1657 = vpop.f32.mrb[0].mxu0
      %1658 = vdwg.mxu0
      %v1659 = vadd.f32 %v400, %v1646
      %v1660 = vadd.f32 %v405, %v1651
      %v1661 = vadd.f32 %v410, %v1656
      %v1662 = vlaneseq
      %v1663 = vshrl.u32 %v1662, 7
      %v1664 = vsub.s32 2, %v1663
      %v1665 = vrot.slane %v306, %v1664
      %v1666 = vadd.f32 %v1659, %v1665
      %v1667 = vadd.f32 %v1660, %v1665
      %v1668 = vadd.f32 %v1661, %v1665
      %v1669 = vsel %vm413, %v1666, 0.0
      %1670 = vadd.xlane.f32.xlu0 %v1669
      %v1671 = vpop.xlane.xlu0 %1670
      %v1672 = vsel %vm413, %v1667, 0.0
      %1673 = vadd.xlane.f32.xlu0 %v1672
      %v1674 = vpop.xlane.xlu0 %1673
      %v1675 = vsel %vm420, %v1668, 0.0
      %1676 = vadd.xlane.f32.xlu0 %v1675
      %v1677 = vpop.xlane.xlu0 %1676
      %v1678 = vmul.f32 %v1671, %v424
      %v1679 = vmul.f32 %v1674, %v424
      %v1680 = vmul.f32 %v1677, %v424
      %v1681 = vsub.f32 %v1666, %v1678
      %v1682 = vsub.f32 %v1667, %v1679
      %v1683 = vsub.f32 %v1668, %v1680
      %v1684 = vmul.f32 %v1681, %v1681
      %v1685 = vmul.f32 %v1682, %v1682
      %v1686 = vmul.f32 %v1683, %v1683
      %v1687 = vsel %vm413, %v1684, 0.0
      %1688 = vadd.xlane.f32.xlu0 %v1687
      %v1689 = vpop.xlane.xlu0 %1688
      %v1690 = vsel %vm413, %v1685, 0.0
      %1691 = vadd.xlane.f32.xlu0 %v1690
      %v1692 = vpop.xlane.xlu0 %1691
      %v1693 = vsel %vm420, %v1686, 0.0
      %1694 = vadd.xlane.f32.xlu0 %v1693
      %v1695 = vpop.xlane.xlu0 %1694
      %v1696 = vmul.f32 %v1689, %v424
      %v1697 = vmul.f32 %v1692, %v424
      %v1698 = vmul.f32 %v1695, %v424
      %v1699 = vadd.f32 %v1696, 1e-05
      %v1700 = vadd.f32 %v1697, 1e-05
      %v1701 = vadd.f32 %v1698, 1e-05
      %v1702 = vrsqrt.pop %v1699
      %v1703 = vrsqrt.pop %v1700
      %v1704 = vrsqrt.pop %v1701
      %v1705 = vmul.f32 %v1681, %v1702
      %v1706 = vmul.f32 %v1682, %v1703
      %v1707 = vmul.f32 %v1683, %v1704
      %v1708 = vlaneseq
      %v1709 = vshrl.u32 %v1708, 7
      %v1710 = vsub.s32 3, %v1709
      %v1711 = vrot.slane %v306, %v1710
      %v1712 = vmul.f32 %v1705, %v1711
      %v1713 = vmul.f32 %v1706, %v1711
      %v1714 = vmul.f32 %v1707, %v1711
      %v1715 = vlaneseq
      %v1716 = vshrl.u32 %v1715, 7
      %v1717 = vsub.s32 4, %v1716
      %v1718 = vrot.slane %v306, %v1717
      %v1719 = vadd.f32 %v1712, %v1718
      %v1720 = vadd.f32 %v1713, %v1718
      %v1721 = vadd.f32 %v1714, %v1718
      %s1722 = scalar_lea.vmem %s5, 32
      %v1723 = vld [vmem:[%s1722] sm:$0xff]
      %v1724 = vld [vmem:[%s1722 + $0x8] sm:$0xff]
      %v1725 = vld [vmem:[%s1722 + $0x10] sm:$0xff]
      %v1726 = vld [vmem:[%s1722 + $0x18] sm:$0xff]
      %v1727 = vlaneseq
      %v1728 = vshrl.u32 %v1727, 7
      %v1729 = vsub.s32 5, %v1728
      %v1730 = vrot.slane %v306, %v1729
      %v1732 = vsel %vm413, %v1719, 0
      %v1735 = vsel %vm413, %v1720, 0
      %v1738 = vsel %vm413, %v1721, 0
      %1740 = vmatprep.subr.mxu0 0.0
      %1741 = vmatpush1.msra.mxu0 %v1723
      %1742 = vmatprep.subr.mxu0 0.0
      %1743 = vmatpush1.msra.mxu0 %v1724
      %1744 = vmatprep.subr.mxu0 0.0
      %1745 = vmatpush1.msra.mxu0 %v1725
      %1746 = vmatprep.subr.mxu0 0.0
      %1747 = vmatpush1.msra.mxu0 %v1726
      %1748 = vmatprep.subr.mxu0 0.0
      %1749 = vmatpush1.msra.mxu0 0.0
      %1750 = vmatprep.subr.mxu0 0.0
      %1751 = vmatpush1.msra.mxu0 0.0
      %1752 = vmatprep.subr.mxu0 0.0
      %1753 = vmatpush1.msra.mxu0 0.0
      %1754 = vmatprep.subr.mxu0 0.0
      %1755 = vmatpush1.msra.mxu0 0.0
      %1756 = vmatprep.subr.mxu0 0.0
      %1757 = vmatpush1.msra.mxu0 0.0
      %1758 = vmatprep.subr.mxu0 0.0
      %1759 = vmatpush1.msra.mxu0 0.0
      %1760 = vmatprep.subr.mxu0 0.0
      %1761 = vmatpush1.msra.mxu0 0.0
      %1762 = vmatprep.subr.mxu0 0.0
      %1763 = vmatpush1.msra.mxu0 0.0
      %1764 = vmatprep.subr.mxu0 0.0
      %1765 = vmatpush1.msra.mxu0 0.0
      %1766 = vmatprep.subr.mxu0 0.0
      %1767 = vmatpush1.msra.mxu0 0.0
      %1768 = vmatprep.subr.mxu0 0.0
      %1769 = vmatpush1.msra.mxu0 0.0
      %1770 = vmatprep.subr.mxu0 0.0
      %1771 = vmatpush1.msra.mxu0 0.0
      %1772 = vmatprep.subr.mxu0 0.0
      %1773 = vmatpush1.msra.mxu0 0.0
      %1774 = vmatprep.subr.mxu0 0.0
      %1775 = vmatpush1.msra.mxu0 0.0
      %1776 = vmatprep.subr.mxu0 0.0
      %1777 = vmatpush1.msra.mxu0 0.0
      %1778 = vmatprep.subr.mxu0 0.0
      %1779 = vmatpush1.msra.mxu0 0.0
      %1780 = vmatprep.subr.mxu0 0.0
      %1781 = vmatpush1.msra.mxu0 0.0
      %1782 = vmatprep.subr.mxu0 0.0
      %1783 = vmatpush1.msra.mxu0 0.0
      %1784 = vmatprep.subr.mxu0 0.0
      %1785 = vmatpush1.msra.mxu0 0.0
      %1786 = vmatprep.subr.mxu0 0.0
      %1787 = vmatpush1.msra.mxu0 0.0
      %1788 = vmatprep.subr.mxu0 0.0
      %1789 = vmatpush1.msra.mxu0 0.0
      %1790 = vmatprep.subr.mxu0 0.0
      %1791 = vmatpush1.msra.mxu0 0.0
      %1792 = vmatprep.subr.mxu0 0.0
      %1793 = vmatpush1.msra.mxu0 0.0
      %1794 = vmatprep.subr.mxu0 0.0
      %1795 = vmatpush1.msra.mxu0 0.0
      %1796 = vmatprep.subr.mxu0 0.0
      %1797 = vmatpush1.msra.mxu0 0.0
      %1798 = vmatprep.subr.mxu0 0.0
      %1799 = vmatpush1.msra.mxu0 0.0
      %1800 = vmatprep.subr.mxu0 0.0
      %1801 = vmatpush1.msra.mxu0 0.0
      %1802 = vmatprep.subr.mxu0 0.0
      %1803 = vmatpush1.msra.mxu0 0.0
      %1804 = vmatprep.mubr.f32.mxu0 0.0
      %1805 = vmatmul.mubr.f32.gmra.mrb[0].mxu0 %v1732
      %v1806 = vpop.f32.mrb[0].mxu0
      %v1807 = vadd.f32 %v1730, %v1806
      %v1808 = vpop.f32.mrb[0].mxu0
      %1809 = vmatprep.mubr.f32.mxu0 0.0
      %1810 = vmatmul.mubr.f32.gmra.mrb[0].mxu0 %v1735
      %v1811 = vpop.f32.mrb[0].mxu0
      %v1812 = vadd.f32 %v1730, %v1811
      %v1813 = vpop.f32.mrb[0].mxu0
      %1814 = vmatprep.mubr.f32.mxu0 0.0
      %1815 = vmatmul.mubr.f32.gmra.mrb[0].mxu0 %v1738
      %v1816 = vpop.f32.mrb[0].mxu0
      %v1817 = vadd.f32 %v1730, %v1816
      %v1818 = vpop.f32.mrb[0].mxu0
      %1819 = vdwg.mxu0
      %v1820 = vmul.f32 %v1807, 0.5
      %v1821 = vmul.f32 %v1812, 0.5
      %v1822 = vmul.f32 %v1817, 0.5
      %v1823 = vmul.f32 %v1807, 0.70710677
      %v1824 = vmul.f32 %v1812, 0.70710677
      %v1825 = vmul.f32 %v1817, 0.70710677
      %v1826 = vand.u32 2147483647, %v1823
      %v1827 = vand.u32 2147483647, %v1824
      %v1828 = vand.u32 2147483647, %v1825
      %v1829 = vmul.f32 %v1826, 0.3275911
      %v1830 = vmul.f32 %v1827, 0.3275911
      %v1831 = vmul.f32 %v1828, 0.3275911
      %v1832 = vadd.f32 %v1829, 1.0
      %v1833 = vadd.f32 %v1830, 1.0
      %v1834 = vadd.f32 %v1831, 1.0
      %v1835 = vrcp.pop %v1832
      %v1836 = vmul.f32 1.0, %v1835
      %v1837 = vrcp.pop %v1833
      %v1838 = vmul.f32 1.0, %v1837
      %v1839 = vrcp.pop %v1834
      %v1840 = vmul.f32 1.0, %v1839
      %v1841 = vmul.f32 %v1836, 1.0614054
      %v1842 = vmul.f32 %v1838, 1.0614054
      %v1843 = vmul.f32 %v1840, 1.0614054
      %v1844 = vadd.f32 %v1841, -1.4531521
      %v1845 = vadd.f32 %v1842, -1.4531521
      %v1846 = vadd.f32 %v1843, -1.4531521
      %v1847 = vmul.f32 %v1844, %v1836
      %v1848 = vmul.f32 %v1845, %v1838
      %v1849 = vmul.f32 %v1846, %v1840
      %v1850 = vadd.f32 %v1847, 1.4214138
      %v1851 = vadd.f32 %v1848, 1.4214138
      %v1852 = vadd.f32 %v1849, 1.4214138
      %v1853 = vmul.f32 %v1850, %v1836
      %v1854 = vmul.f32 %v1851, %v1838
      %v1855 = vmul.f32 %v1852, %v1840
      %v1856 = vadd.f32 %v1853, -0.28449672
      %v1857 = vadd.f32 %v1854, -0.28449672
      %v1858 = vadd.f32 %v1855, -0.28449672
      %v1859 = vmul.f32 %v1856, %v1836
      %v1860 = vmul.f32 %v1857, %v1838
      %v1861 = vmul.f32 %v1858, %v1840
      %v1862 = vadd.f32 %v1859, 0.2548296
      %v1863 = vadd.f32 %v1860, 0.2548296
      %v1864 = vadd.f32 %v1861, 0.2548296
      %v1865 = vmul.f32 %v1862, %v1836
      %v1866 = vmul.f32 %v1863, %v1838
      %v1867 = vmul.f32 %v1864, %v1840
      %v1868 = vsub.f32 0.0, %v1826
      %v1869 = vsub.f32 0.0, %v1827
      %v1870 = vsub.f32 0.0, %v1828
      %v1871 = vmul.f32 %v1868, %v1826
      %v1872 = vmul.f32 %v1869, %v1827
      %v1873 = vmul.f32 %v1870, %v1828
      %v1874 = vmul.f32 %v1871, 1.442695
      %v1875 = vpow.pop %v1874
      %v1876 = vmul.f32 %v1872, 1.442695
      %v1877 = vpow.pop %v1876
      %v1878 = vmul.f32 %v1873, 1.442695
      %v1879 = vpow.pop %v1878
      %v1880 = vmul.f32 %v1865, %v1875
      %v1881 = vmul.f32 %v1866, %v1877
      %v1882 = vmul.f32 %v1867, %v1879
      %v1883 = vsub.f32 1.0, %v1880
      %v1884 = vsub.f32 1.0, %v1881
      %v1885 = vsub.f32 1.0, %v1882
      %vm1886 = vcmp.lt.f32.partialorder %v1823, 0.0
      %vm1887 = vcmp.lt.f32.partialorder %v1824, 0.0
      %vm1888 = vcmp.lt.f32.partialorder %v1825, 0.0
      %v1889 = vsub.f32 0.0, %v1883
      %v1890 = vsub.f32 0.0, %v1884
      %v1891 = vsub.f32 0.0, %v1885
      %v1892 = vsel %vm1886, %v1889, %v1883
      %v1893 = vsel %vm1887, %v1890, %v1884
      %v1894 = vsel %vm1888, %v1891, %v1885
      %v1895 = vadd.f32 %v1892, 1.0
      %v1896 = vadd.f32 %v1893, 1.0
      %v1897 = vadd.f32 %v1894, 1.0
      %v1898 = vmul.f32 %v1820, %v1895
      %v1899 = vmul.f32 %v1821, %v1896
      %v1900 = vmul.f32 %v1822, %v1897
      %s1901 = scalar_lea.vmem %s5, 64
      %v1902 = vld [vmem:[%s1901] sm:$0xff]
      %v1903 = vld [vmem:[%s1901 + $0x8] sm:$0xff]
      %v1904 = vld [vmem:[%s1901 + $0x10] sm:$0xff]
      %v1905 = vld [vmem:[%s1901 + $0x18] sm:$0xff]
      %v1906 = vlaneseq
      %v1907 = vshrl.u32 %v1906, 7
      %v1908 = vsub.s32 6, %v1907
      %v1909 = vrot.slane %v306, %v1908
      %v1911 = vsel %vm413, %v1898, 0
      %v1914 = vsel %vm413, %v1899, 0
      %v1917 = vsel %vm413, %v1900, 0
      %1919 = vmatprep.subr.mxu0 0.0
      %1920 = vmatpush1.msra.mxu0 %v1902
      %1921 = vmatprep.subr.mxu0 0.0
      %1922 = vmatpush1.msra.mxu0 %v1903
      %1923 = vmatprep.subr.mxu0 0.0
      %1924 = vmatpush1.msra.mxu0 %v1904
      %1925 = vmatprep.subr.mxu0 0.0
      %1926 = vmatpush1.msra.mxu0 %v1905
      %1927 = vmatprep.subr.mxu0 0.0
      %1928 = vmatpush1.msra.mxu0 0.0
      %1929 = vmatprep.subr.mxu0 0.0
      %1930 = vmatpush1.msra.mxu0 0.0
      %1931 = vmatprep.subr.mxu0 0.0
      %1932 = vmatpush1.msra.mxu0 0.0
      %1933 = vmatprep.subr.mxu0 0.0
      %1934 = vmatpush1.msra.mxu0 0.0
      %1935 = vmatprep.subr.mxu0 0.0
      %1936 = vmatpush1.msra.mxu0 0.0
      %1937 = vmatprep.subr.mxu0 0.0
      %1938 = vmatpush1.msra.mxu0 0.0
      %1939 = vmatprep.subr.mxu0 0.0
      %1940 = vmatpush1.msra.mxu0 0.0
      %1941 = vmatprep.subr.mxu0 0.0
      %1942 = vmatpush1.msra.mxu0 0.0
      %1943 = vmatprep.subr.mxu0 0.0
      %1944 = vmatpush1.msra.mxu0 0.0
      %1945 = vmatprep.subr.mxu0 0.0
      %1946 = vmatpush1.msra.mxu0 0.0
      %1947 = vmatprep.subr.mxu0 0.0
      %1948 = vmatpush1.msra.mxu0 0.0
      %1949 = vmatprep.subr.mxu0 0.0
      %1950 = vmatpush1.msra.mxu0 0.0
      %1951 = vmatprep.subr.mxu0 0.0
      %1952 = vmatpush1.msra.mxu0 0.0
      %1953 = vmatprep.subr.mxu0 0.0
      %1954 = vmatpush1.msra.mxu0 0.0
      %1955 = vmatprep.subr.mxu0 0.0
      %1956 = vmatpush1.msra.mxu0 0.0
      %1957 = vmatprep.subr.mxu0 0.0
      %1958 = vmatpush1.msra.mxu0 0.0
      %1959 = vmatprep.subr.mxu0 0.0
      %1960 = vmatpush1.msra.mxu0 0.0
      %1961 = vmatprep.subr.mxu0 0.0
      %1962 = vmatpush1.msra.mxu0 0.0
      %1963 = vmatprep.subr.mxu0 0.0
      %1964 = vmatpush1.msra.mxu0 0.0
      %1965 = vmatprep.subr.mxu0 0.0
      %1966 = vmatpush1.msra.mxu0 0.0
      %1967 = vmatprep.subr.mxu0 0.0
      %1968 = vmatpush1.msra.mxu0 0.0
      %1969 = vmatprep.subr.mxu0 0.0
      %1970 = vmatpush1.msra.mxu0 0.0
      %1971 = vmatprep.subr.mxu0 0.0
      %1972 = vmatpush1.msra.mxu0 0.0
      %1973 = vmatprep.subr.mxu0 0.0
      %1974 = vmatpush1.msra.mxu0 0.0
      %1975 = vmatprep.subr.mxu0 0.0
      %1976 = vmatpush1.msra.mxu0 0.0
      %1977 = vmatprep.subr.mxu0 0.0
      %1978 = vmatpush1.msra.mxu0 0.0
      %1979 = vmatprep.subr.mxu0 0.0
      %1980 = vmatpush1.msra.mxu0 0.0
      %1981 = vmatprep.subr.mxu0 0.0
      %1982 = vmatpush1.msra.mxu0 0.0
      %1983 = vmatprep.mubr.f32.mxu0 0.0
      %1984 = vmatmul.mubr.f32.gmra.mrb[0].mxu0 %v1911
      %v1985 = vpop.f32.mrb[0].mxu0
      %v1986 = vadd.f32 %v1909, %v1985
      %v1987 = vpop.f32.mrb[0].mxu0
      %1988 = vmatprep.mubr.f32.mxu0 0.0
      %1989 = vmatmul.mubr.f32.gmra.mrb[0].mxu0 %v1914
      %v1990 = vpop.f32.mrb[0].mxu0
      %v1991 = vadd.f32 %v1909, %v1990
      %v1992 = vpop.f32.mrb[0].mxu0
      %1993 = vmatprep.mubr.f32.mxu0 0.0
      %1994 = vmatmul.mubr.f32.gmra.mrb[0].mxu0 %v1917
      %v1995 = vpop.f32.mrb[0].mxu0
      %v1996 = vadd.f32 %v1909, %v1995
      %v1997 = vpop.f32.mrb[0].mxu0
      %1998 = vdwg.mxu0
      %v1999 = vadd.f32 %v1666, %v1986
      %v2000 = vadd.f32 %v1667, %v1991
      %v2001 = vadd.f32 %v1668, %v1996
      %v2002 = vsel %vm413, %v1999, 0.0
      %2003 = vadd.xlane.f32.xlu0 %v2002
      %v2004 = vpop.xlane.xlu0 %2003
      %v2005 = vsel %vm413, %v2000, 0.0
      %2006 = vadd.xlane.f32.xlu0 %v2005
      %v2007 = vpop.xlane.xlu0 %2006
      %v2008 = vsel %vm420, %v2001, 0.0
      %2009 = vadd.xlane.f32.xlu0 %v2008
      %v2010 = vpop.xlane.xlu0 %2009
      %v2011 = vmul.f32 %v2004, %v424
      %v2012 = vmul.f32 %v2007, %v424
      %v2013 = vmul.f32 %v2010, %v424
      %v2014 = vsub.f32 %v1999, %v2011
      %v2015 = vsub.f32 %v2000, %v2012
      %v2016 = vsub.f32 %v2001, %v2013
      %v2017 = vmul.f32 %v2014, %v2014
      %v2018 = vmul.f32 %v2015, %v2015
      %v2019 = vmul.f32 %v2016, %v2016
      %v2020 = vsel %vm413, %v2017, 0.0
      %2021 = vadd.xlane.f32.xlu0 %v2020
      %v2022 = vpop.xlane.xlu0 %2021
      %v2023 = vsel %vm413, %v2018, 0.0
      %2024 = vadd.xlane.f32.xlu0 %v2023
      %v2025 = vpop.xlane.xlu0 %2024
      %v2026 = vsel %vm420, %v2019, 0.0
      %2027 = vadd.xlane.f32.xlu0 %v2026
      %v2028 = vpop.xlane.xlu0 %2027
      %v2029 = vmul.f32 %v2022, %v424
      %v2030 = vmul.f32 %v2025, %v424
      %v2031 = vmul.f32 %v2028, %v424
      %v2032 = vadd.f32 %v2029, 1e-05
      %v2033 = vadd.f32 %v2030, 1e-05
      %v2034 = vadd.f32 %v2031, 1e-05
      %v2035 = vrsqrt.pop %v2032
      %v2036 = vrsqrt.pop %v2033
      %v2037 = vrsqrt.pop %v2034
      %v2038 = vmul.f32 %v2014, %v2035
      %v2039 = vmul.f32 %v2015, %v2036
      %v2040 = vmul.f32 %v2016, %v2037
      %v2041 = vlaneseq
      %v2042 = vshrl.u32 %v2041, 7
      %v2043 = vsub.s32 7, %v2042
      %v2044 = vrot.slane %v306, %v2043
      %v2045 = vmul.f32 %v2038, %v2044
      %v2046 = vmul.f32 %v2039, %v2044
      %v2047 = vmul.f32 %v2040, %v2044
      %v2048 = vlaneseq
      %v2049 = vshrl.u32 %v2048, 7
      %v2050 = vsub.s32 0, %v2049
      %v2051 = vrot.slane %v307, %v2050
      %v2052 = vadd.f32 %v2045, %v2051
      %v2053 = vadd.f32 %v2046, %v2051
      %v2054 = vadd.f32 %v2047, %v2051
      %s2055 = scalar_lea.vmem %s4, 32
      %v2056 = vld [vmem:[%s2055] sm:$0xff]
      %v2057 = vld [vmem:[%s2055 + $0x8] sm:$0xff]
      %v2058 = vld [vmem:[%s2055 + $0x10] sm:$0xff]
      %v2059 = vld [vmem:[%s2055 + $0x18] sm:$0xff]
      %v2061 = vsel %vm413, %v2052, 0
      %v2064 = vsel %vm413, %v2053, 0
      %v2067 = vsel %vm413, %v2054, 0
      %2069 = vmatprep.subr.mxu0 0.0
      %2070 = vmatpush1.msra.mxu0 %v2056
      %2071 = vmatprep.subr.mxu0 0.0
      %2072 = vmatpush1.msra.mxu0 %v2057
      %2073 = vmatprep.subr.mxu0 0.0
      %2074 = vmatpush1.msra.mxu0 %v2058
      %2075 = vmatprep.subr.mxu0 0.0
      %2076 = vmatpush1.msra.mxu0 %v2059
      %2077 = vmatprep.subr.mxu0 0.0
      %2078 = vmatpush1.msra.mxu0 0.0
      %2079 = vmatprep.subr.mxu0 0.0
      %2080 = vmatpush1.msra.mxu0 0.0
      %2081 = vmatprep.subr.mxu0 0.0
      %2082 = vmatpush1.msra.mxu0 0.0
      %2083 = vmatprep.subr.mxu0 0.0
      %2084 = vmatpush1.msra.mxu0 0.0
      %2085 = vmatprep.subr.mxu0 0.0
      %2086 = vmatpush1.msra.mxu0 0.0
      %2087 = vmatprep.subr.mxu0 0.0
      %2088 = vmatpush1.msra.mxu0 0.0
      %2089 = vmatprep.subr.mxu0 0.0
      %2090 = vmatpush1.msra.mxu0 0.0
      %2091 = vmatprep.subr.mxu0 0.0
      %2092 = vmatpush1.msra.mxu0 0.0
      %2093 = vmatprep.subr.mxu0 0.0
      %2094 = vmatpush1.msra.mxu0 0.0
      %2095 = vmatprep.subr.mxu0 0.0
      %2096 = vmatpush1.msra.mxu0 0.0
      %2097 = vmatprep.subr.mxu0 0.0
      %2098 = vmatpush1.msra.mxu0 0.0
      %2099 = vmatprep.subr.mxu0 0.0
      %2100 = vmatpush1.msra.mxu0 0.0
      %2101 = vmatprep.subr.mxu0 0.0
      %2102 = vmatpush1.msra.mxu0 0.0
      %2103 = vmatprep.subr.mxu0 0.0
      %2104 = vmatpush1.msra.mxu0 0.0
      %2105 = vmatprep.subr.mxu0 0.0
      %2106 = vmatpush1.msra.mxu0 0.0
      %2107 = vmatprep.subr.mxu0 0.0
      %2108 = vmatpush1.msra.mxu0 0.0
      %2109 = vmatprep.subr.mxu0 0.0
      %2110 = vmatpush1.msra.mxu0 0.0
      %2111 = vmatprep.subr.mxu0 0.0
      %2112 = vmatpush1.msra.mxu0 0.0
      %2113 = vmatprep.subr.mxu0 0.0
      %2114 = vmatpush1.msra.mxu0 0.0
      %2115 = vmatprep.subr.mxu0 0.0
      %2116 = vmatpush1.msra.mxu0 0.0
      %2117 = vmatprep.subr.mxu0 0.0
      %2118 = vmatpush1.msra.mxu0 0.0
      %2119 = vmatprep.subr.mxu0 0.0
      %2120 = vmatpush1.msra.mxu0 0.0
      %2121 = vmatprep.subr.mxu0 0.0
      %2122 = vmatpush1.msra.mxu0 0.0
      %2123 = vmatprep.subr.mxu0 0.0
      %2124 = vmatpush1.msra.mxu0 0.0
      %2125 = vmatprep.subr.mxu0 0.0
      %2126 = vmatpush1.msra.mxu0 0.0
      %2127 = vmatprep.subr.mxu0 0.0
      %2128 = vmatpush1.msra.mxu0 0.0
      %2129 = vmatprep.subr.mxu0 0.0
      %2130 = vmatpush1.msra.mxu0 0.0
      %2131 = vmatprep.subr.mxu0 0.0
      %2132 = vmatpush1.msra.mxu0 0.0
      %2133 = vmatprep.mubr.f32.mxu0 0.0
      %2134 = vmatmul.mubr.f32.gmra.mrb[0].mxu0 %v2061
      %v2135 = vpop.f32.mrb[0].mxu0
      %v2136 = vadd.f32 0.0, %v2135
      %v2137 = vpop.f32.mrb[0].mxu0
      %2138 = vmatprep.mubr.f32.mxu0 0.0
      %2139 = vmatmul.mubr.f32.gmra.mrb[0].mxu0 %v2064
      %v2140 = vpop.f32.mrb[0].mxu0
      %v2141 = vadd.f32 0.0, %v2140
      %v2142 = vpop.f32.mrb[0].mxu0
      %2143 = vmatprep.mubr.f32.mxu0 0.0
      %2144 = vmatmul.mubr.f32.gmra.mrb[0].mxu0 %v2067
      %v2145 = vpop.f32.mrb[0].mxu0
      %v2146 = vadd.f32 0.0, %v2145
      %v2147 = vpop.f32.mrb[0].mxu0
      %2148 = vdwg.mxu0
      %2152 = vrot.lane.b32.xlu0 %v2136, 96
      %v2153 = vpop.permute.xlu0 %2152
      %2154 = vrot.lane.b32.xlu0 %v2141, 96
      %v2155 = vpop.permute.xlu0 %2154
      %2156 = vrot.lane.b32.xlu0 %v2146, 96
      %v2157 = vpop.permute.xlu0 %2156
      %v2158 = vsel %vm571, %v2136, 0
      %v2160 = vsel %vm571, %v2141, 0
      %v2162 = vsel %vm571, %v2146, 0
      %v2164 = vsel %vm571, %v2153, 0
      %v2166 = vsel %vm571, %v2155, 0
      %v2168 = vsel %vm571, %v2157, 0
      %2170 = vmatprep.subr.mxu0 0.0
      %2171 = vmatpush1.xpose.msra.mxu0 %v2164
      %2172 = vmatprep.subr.mxu0 0.0
      %2173 = vmatpush1.xpose.msra.mxu0 %v2166
      %2174 = vmatprep.subr.mxu0 0.0
      %2175 = vmatpush1.xpose.msra.mxu0 %v2168
      %2176 = vmatprep.subr.mxu0 0.0
      %2177 = vmatpush1.xpose.msra.mxu0 0.0
      %2178 = vmatprep.subr.mxu0 0.0
      %2179 = vmatpush1.xpose.msra.mxu0 0.0
      %2180 = vmatprep.subr.mxu0 0.0
      %2181 = vmatpush1.xpose.msra.mxu0 0.0
      %2182 = vmatprep.subr.mxu0 0.0
      %2183 = vmatpush1.xpose.msra.mxu0 0.0
      %2184 = vmatprep.subr.mxu0 0.0
      %2185 = vmatpush1.xpose.msra.mxu0 0.0
      %2186 = vmatprep.subr.mxu0 0.0
      %2187 = vmatpush1.xpose.msra.mxu0 0.0
      %2188 = vmatprep.subr.mxu0 0.0
      %2189 = vmatpush1.xpose.msra.mxu0 0.0
      %2190 = vmatprep.subr.mxu0 0.0
      %2191 = vmatpush1.xpose.msra.mxu0 0.0
      %2192 = vmatprep.subr.mxu0 0.0
      %2193 = vmatpush1.xpose.msra.mxu0 0.0
      %2194 = vmatprep.subr.mxu0 0.0
      %2195 = vmatpush1.xpose.msra.mxu0 0.0
      %2196 = vmatprep.subr.mxu0 0.0
      %2197 = vmatpush1.xpose.msra.mxu0 0.0
      %2198 = vmatprep.subr.mxu0 0.0
      %2199 = vmatpush1.xpose.msra.mxu0 0.0
      %2200 = vmatprep.subr.mxu0 0.0
      %2201 = vmatpush1.xpose.msra.mxu0 0.0
      %2202 = vmatprep.subr.mxu0 0.0
      %2203 = vmatpush1.xpose.msra.mxu0 0.0
      %2204 = vmatprep.subr.mxu0 0.0
      %2205 = vmatpush1.xpose.msra.mxu0 0.0
      %2206 = vmatprep.subr.mxu0 0.0
      %2207 = vmatpush1.xpose.msra.mxu0 0.0
      %2208 = vmatprep.subr.mxu0 0.0
      %2209 = vmatpush1.xpose.msra.mxu0 0.0
      %2210 = vmatprep.subr.mxu0 0.0
      %2211 = vmatpush1.xpose.msra.mxu0 0.0
      %2212 = vmatprep.subr.mxu0 0.0
      %2213 = vmatpush1.xpose.msra.mxu0 0.0
      %2214 = vmatprep.subr.mxu0 0.0
      %2215 = vmatpush1.xpose.msra.mxu0 0.0
      %2216 = vmatprep.subr.mxu0 0.0
      %2217 = vmatpush1.xpose.msra.mxu0 0.0
      %2218 = vmatprep.subr.mxu0 0.0
      %2219 = vmatpush1.xpose.msra.mxu0 0.0
      %2220 = vmatprep.subr.mxu0 0.0
      %2221 = vmatpush1.xpose.msra.mxu0 0.0
      %2222 = vmatprep.subr.mxu0 0.0
      %2223 = vmatpush1.xpose.msra.mxu0 0.0
      %2224 = vmatprep.subr.mxu0 0.0
      %2225 = vmatpush1.xpose.msra.mxu0 0.0
      %2226 = vmatprep.subr.mxu0 0.0
      %2227 = vmatpush1.xpose.msra.mxu0 0.0
      %2228 = vmatprep.subr.mxu0 0.0
      %2229 = vmatpush1.xpose.msra.mxu0 0.0
      %2230 = vmatprep.subr.mxu0 0.0
      %2231 = vmatpush1.xpose.msra.mxu0 0.0
      %2232 = vmatprep.subr.mxu0 0.0
      %2233 = vmatpush1.xpose.msra.mxu0 0.0
      %2234 = vmatprep.mubr.f32.mxu0 0.0
      %2235 = vmatmul.mubr.f32.gmra.mrb[0].mxu0 %v2158
      %v2236 = vpop.f32.mrb[0].mxu0
      %v2237 = vadd.f32 0.0, %v2236
      %v2238 = vpop.f32.mrb[0].mxu0
      %2239 = vmatprep.mubr.f32.mxu0 0.0
      %2240 = vmatmul.mubr.f32.gmra.mrb[0].mxu0 %v2160
      %v2241 = vpop.f32.mrb[0].mxu0
      %v2242 = vadd.f32 0.0, %v2241
      %v2243 = vpop.f32.mrb[0].mxu0
      %2244 = vmatprep.mubr.f32.mxu0 0.0
      %2245 = vmatmul.mubr.f32.gmra.mrb[0].mxu0 %v2162
      %v2246 = vpop.f32.mrb[0].mxu0
      %v2247 = vadd.f32 0.0, %v2246
      %v2248 = vpop.f32.mrb[0].mxu0
      %2249 = vdwg.mxu0
      %v2250 = vmul.f32 %v2237, 0.35355338
      %v2251 = vmul.f32 %v2242, 0.35355338
      %v2252 = vmul.f32 %v2247, 0.35355338
      %v2253 = vsel %vm667, %v2250, -inf
      %2254 = vmax.xlane.f32.xlu0 %v2253
      %v2255 = vpop.xlane.xlu0 %2254
      %v2256 = vsel %vm667, %v2251, -inf
      %2257 = vmax.xlane.f32.xlu0 %v2256
      %v2258 = vpop.xlane.xlu0 %2257
      %v2259 = vsel %vm674, %v2252, -inf
      %2260 = vmax.xlane.f32.xlu0 %v2259
      %v2261 = vpop.xlane.xlu0 %2260
      %v2262 = vsub.f32 %v2250, %v2255
      %v2263 = vsub.f32 %v2251, %v2258
      %v2264 = vsub.f32 %v2252, %v2261
      %v2265 = vmul.f32 %v2262, 1.442695
      %v2266 = vpow.pop %v2265
      %v2267 = vmul.f32 %v2263, 1.442695
      %v2268 = vpow.pop %v2267
      %v2269 = vmul.f32 %v2264, 1.442695
      %v2270 = vpow.pop %v2269
      %v2271 = vsel %vm667, %v2266, 0.0
      %2272 = vadd.xlane.f32.xlu0 %v2271
      %v2273 = vpop.xlane.xlu0 %2272
      %v2274 = vsel %vm667, %v2268, 0.0
      %2275 = vadd.xlane.f32.xlu0 %v2274
      %v2276 = vpop.xlane.xlu0 %2275
      %v2277 = vsel %vm674, %v2270, 0.0
      %2278 = vadd.xlane.f32.xlu0 %v2277
      %v2279 = vpop.xlane.xlu0 %2278
      %v2280 = vrcp.pop %v2273
      %v2281 = vrcp.pop %v2276
      %v2282 = vrcp.pop %v2279
      %v2283 = vmul.f32 %v2266, %v2280
      %v2284 = vmul.f32 %v2268, %v2281
      %v2285 = vmul.f32 %v2270, %v2282
      %2286 = vrot.lane.b32.xlu0 %v2136, 64
      %v2287 = vpop.permute.xlu0 %2286
      %2288 = vrot.lane.b32.xlu0 %v2141, 64
      %v2289 = vpop.permute.xlu0 %2288
      %2290 = vrot.lane.b32.xlu0 %v2146, 64
      %v2291 = vpop.permute.xlu0 %2290
      %v2295 = vsel %vm667, %v2283, 0
      %v2298 = vsel %vm667, %v2284, 0
      %v2301 = vsel %vm667, %v2285, 0
      %v2303 = vsel %vm719, %v2291, 0
      %2305 = vmatprep.subr.mxu0 0.0
      %2306 = vmatpush1.msra.mxu0 %v2287
      %2307 = vmatprep.subr.mxu0 0.0
      %2308 = vmatpush1.msra.mxu0 %v2289
      %2309 = vmatprep.subr.mxu0 0.0
      %2310 = vmatpush1.msra.mxu0 %v2303
      %2311 = vmatprep.subr.mxu0 0.0
      %2312 = vmatpush1.msra.mxu0 0.0
      %2313 = vmatprep.subr.mxu0 0.0
      %2314 = vmatpush1.msra.mxu0 0.0
      %2315 = vmatprep.subr.mxu0 0.0
      %2316 = vmatpush1.msra.mxu0 0.0
      %2317 = vmatprep.subr.mxu0 0.0
      %2318 = vmatpush1.msra.mxu0 0.0
      %2319 = vmatprep.subr.mxu0 0.0
      %2320 = vmatpush1.msra.mxu0 0.0
      %2321 = vmatprep.subr.mxu0 0.0
      %2322 = vmatpush1.msra.mxu0 0.0
      %2323 = vmatprep.subr.mxu0 0.0
      %2324 = vmatpush1.msra.mxu0 0.0
      %2325 = vmatprep.subr.mxu0 0.0
      %2326 = vmatpush1.msra.mxu0 0.0
      %2327 = vmatprep.subr.mxu0 0.0
      %2328 = vmatpush1.msra.mxu0 0.0
      %2329 = vmatprep.subr.mxu0 0.0
      %2330 = vmatpush1.msra.mxu0 0.0
      %2331 = vmatprep.subr.mxu0 0.0
      %2332 = vmatpush1.msra.mxu0 0.0
      %2333 = vmatprep.subr.mxu0 0.0
      %2334 = vmatpush1.msra.mxu0 0.0
      %2335 = vmatprep.subr.mxu0 0.0
      %2336 = vmatpush1.msra.mxu0 0.0
      %2337 = vmatprep.subr.mxu0 0.0
      %2338 = vmatpush1.msra.mxu0 0.0
      %2339 = vmatprep.subr.mxu0 0.0
      %2340 = vmatpush1.msra.mxu0 0.0
      %2341 = vmatprep.subr.mxu0 0.0
      %2342 = vmatpush1.msra.mxu0 0.0
      %2343 = vmatprep.subr.mxu0 0.0
      %2344 = vmatpush1.msra.mxu0 0.0
      %2345 = vmatprep.subr.mxu0 0.0
      %2346 = vmatpush1.msra.mxu0 0.0
      %2347 = vmatprep.subr.mxu0 0.0
      %2348 = vmatpush1.msra.mxu0 0.0
      %2349 = vmatprep.subr.mxu0 0.0
      %2350 = vmatpush1.msra.mxu0 0.0
      %2351 = vmatprep.subr.mxu0 0.0
      %2352 = vmatpush1.msra.mxu0 0.0
      %2353 = vmatprep.subr.mxu0 0.0
      %2354 = vmatpush1.msra.mxu0 0.0
      %2355 = vmatprep.subr.mxu0 0.0
      %2356 = vmatpush1.msra.mxu0 0.0
      %2357 = vmatprep.subr.mxu0 0.0
      %2358 = vmatpush1.msra.mxu0 0.0
      %2359 = vmatprep.subr.mxu0 0.0
      %2360 = vmatpush1.msra.mxu0 0.0
      %2361 = vmatprep.subr.mxu0 0.0
      %2362 = vmatpush1.msra.mxu0 0.0
      %2363 = vmatprep.subr.mxu0 0.0
      %2364 = vmatpush1.msra.mxu0 0.0
      %2365 = vmatprep.subr.mxu0 0.0
      %2366 = vmatpush1.msra.mxu0 0.0
      %2367 = vmatprep.subr.mxu0 0.0
      %2368 = vmatpush1.msra.mxu0 0.0
      %2369 = vmatprep.mubr.f32.mxu0 0.0
      %2370 = vmatmul.mubr.f32.gmra.mrb[0].mxu0 %v2295
      %v2371 = vpop.f32.mrb[0].mxu0
      %v2372 = vadd.f32 0.0, %v2371
      %v2373 = vpop.f32.mrb[0].mxu0
      %2374 = vmatprep.mubr.f32.mxu0 0.0
      %2375 = vmatmul.mubr.f32.gmra.mrb[0].mxu0 %v2298
      %v2376 = vpop.f32.mrb[0].mxu0
      %v2377 = vadd.f32 0.0, %v2376
      %v2378 = vpop.f32.mrb[0].mxu0
      %2379 = vmatprep.mubr.f32.mxu0 0.0
      %2380 = vmatmul.mubr.f32.gmra.mrb[0].mxu0 %v2301
      %v2381 = vpop.f32.mrb[0].mxu0
      %v2382 = vadd.f32 0.0, %v2381
      %v2383 = vpop.f32.mrb[0].mxu0
      %2384 = vdwg.mxu0
      %2385 = vrot.lane.b32.xlu0 %v2136, 120
      %v2386 = vpop.permute.xlu0 %2385
      %2387 = vrot.lane.b32.xlu0 %v2141, 120
      %v2388 = vpop.permute.xlu0 %2387
      %2389 = vrot.lane.b32.xlu0 %v2146, 120
      %v2390 = vpop.permute.xlu0 %2389
      %2391 = vrot.lane.b32.xlu0 %v2136, 88
      %v2392 = vpop.permute.xlu0 %2391
      %2393 = vrot.lane.b32.xlu0 %v2141, 88
      %v2394 = vpop.permute.xlu0 %2393
      %2395 = vrot.lane.b32.xlu0 %v2146, 88
      %v2396 = vpop.permute.xlu0 %2395
      %v2397 = vsel %vm571, %v2386, 0
      %v2399 = vsel %vm571, %v2388, 0
      %v2401 = vsel %vm571, %v2390, 0
      %v2403 = vsel %vm571, %v2392, 0
      %v2405 = vsel %vm571, %v2394, 0
      %v2407 = vsel %vm571, %v2396, 0
      %2409 = vmatprep.subr.mxu0 0.0
      %2410 = vmatpush1.xpose.msra.mxu0 %v2403
      %2411 = vmatprep.subr.mxu0 0.0
      %2412 = vmatpush1.xpose.msra.mxu0 %v2405
      %2413 = vmatprep.subr.mxu0 0.0
      %2414 = vmatpush1.xpose.msra.mxu0 %v2407
      %2415 = vmatprep.subr.mxu0 0.0
      %2416 = vmatpush1.xpose.msra.mxu0 0.0
      %2417 = vmatprep.subr.mxu0 0.0
      %2418 = vmatpush1.xpose.msra.mxu0 0.0
      %2419 = vmatprep.subr.mxu0 0.0
      %2420 = vmatpush1.xpose.msra.mxu0 0.0
      %2421 = vmatprep.subr.mxu0 0.0
      %2422 = vmatpush1.xpose.msra.mxu0 0.0
      %2423 = vmatprep.subr.mxu0 0.0
      %2424 = vmatpush1.xpose.msra.mxu0 0.0
      %2425 = vmatprep.subr.mxu0 0.0
      %2426 = vmatpush1.xpose.msra.mxu0 0.0
      %2427 = vmatprep.subr.mxu0 0.0
      %2428 = vmatpush1.xpose.msra.mxu0 0.0
      %2429 = vmatprep.subr.mxu0 0.0
      %2430 = vmatpush1.xpose.msra.mxu0 0.0
      %2431 = vmatprep.subr.mxu0 0.0
      %2432 = vmatpush1.xpose.msra.mxu0 0.0
      %2433 = vmatprep.subr.mxu0 0.0
      %2434 = vmatpush1.xpose.msra.mxu0 0.0
      %2435 = vmatprep.subr.mxu0 0.0
      %2436 = vmatpush1.xpose.msra.mxu0 0.0
      %2437 = vmatprep.subr.mxu0 0.0
      %2438 = vmatpush1.xpose.msra.mxu0 0.0
      %2439 = vmatprep.subr.mxu0 0.0
      %2440 = vmatpush1.xpose.msra.mxu0 0.0
      %2441 = vmatprep.subr.mxu0 0.0
      %2442 = vmatpush1.xpose.msra.mxu0 0.0
      %2443 = vmatprep.subr.mxu0 0.0
      %2444 = vmatpush1.xpose.msra.mxu0 0.0
      %2445 = vmatprep.subr.mxu0 0.0
      %2446 = vmatpush1.xpose.msra.mxu0 0.0
      %2447 = vmatprep.subr.mxu0 0.0
      %2448 = vmatpush1.xpose.msra.mxu0 0.0
      %2449 = vmatprep.subr.mxu0 0.0
      %2450 = vmatpush1.xpose.msra.mxu0 0.0
      %2451 = vmatprep.subr.mxu0 0.0
      %2452 = vmatpush1.xpose.msra.mxu0 0.0
      %2453 = vmatprep.subr.mxu0 0.0
      %2454 = vmatpush1.xpose.msra.mxu0 0.0
      %2455 = vmatprep.subr.mxu0 0.0
      %2456 = vmatpush1.xpose.msra.mxu0 0.0
      %2457 = vmatprep.subr.mxu0 0.0
      %2458 = vmatpush1.xpose.msra.mxu0 0.0
      %2459 = vmatprep.subr.mxu0 0.0
      %2460 = vmatpush1.xpose.msra.mxu0 0.0
      %2461 = vmatprep.subr.mxu0 0.0
      %2462 = vmatpush1.xpose.msra.mxu0 0.0
      %2463 = vmatprep.subr.mxu0 0.0
      %2464 = vmatpush1.xpose.msra.mxu0 0.0
      %2465 = vmatprep.subr.mxu0 0.0
      %2466 = vmatpush1.xpose.msra.mxu0 0.0
      %2467 = vmatprep.subr.mxu0 0.0
      %2468 = vmatpush1.xpose.msra.mxu0 0.0
      %2469 = vmatprep.subr.mxu0 0.0
      %2470 = vmatpush1.xpose.msra.mxu0 0.0
      %2471 = vmatprep.subr.mxu0 0.0
      %2472 = vmatpush1.xpose.msra.mxu0 0.0
      %2473 = vmatprep.mubr.f32.mxu0 0.0
      %2474 = vmatmul.mubr.f32.gmra.mrb[0].mxu0 %v2397
      %v2475 = vpop.f32.mrb[0].mxu0
      %v2476 = vadd.f32 0.0, %v2475
      %v2477 = vpop.f32.mrb[0].mxu0
      %2478 = vmatprep.mubr.f32.mxu0 0.0
      %2479 = vmatmul.mubr.f32.gmra.mrb[0].mxu0 %v2399
      %v2480 = vpop.f32.mrb[0].mxu0
      %v2481 = vadd.f32 0.0, %v2480
      %v2482 = vpop.f32.mrb[0].mxu0
      %2483 = vmatprep.mubr.f32.mxu0 0.0
      %2484 = vmatmul.mubr.f32.gmra.mrb[0].mxu0 %v2401
      %v2485 = vpop.f32.mrb[0].mxu0
      %v2486 = vadd.f32 0.0, %v2485
      %v2487 = vpop.f32.mrb[0].mxu0
      %2488 = vdwg.mxu0
      %v2489 = vmul.f32 %v2476, 0.35355338
      %v2490 = vmul.f32 %v2481, 0.35355338
      %v2491 = vmul.f32 %v2486, 0.35355338
      %v2492 = vsel %vm667, %v2489, -inf
      %2493 = vmax.xlane.f32.xlu0 %v2492
      %v2494 = vpop.xlane.xlu0 %2493
      %v2495 = vsel %vm667, %v2490, -inf
      %2496 = vmax.xlane.f32.xlu0 %v2495
      %v2497 = vpop.xlane.xlu0 %2496
      %v2498 = vsel %vm674, %v2491, -inf
      %2499 = vmax.xlane.f32.xlu0 %v2498
      %v2500 = vpop.xlane.xlu0 %2499
      %v2501 = vsub.f32 %v2489, %v2494
      %v2502 = vsub.f32 %v2490, %v2497
      %v2503 = vsub.f32 %v2491, %v2500
      %v2504 = vmul.f32 %v2501, 1.442695
      %v2505 = vpow.pop %v2504
      %v2506 = vmul.f32 %v2502, 1.442695
      %v2507 = vpow.pop %v2506
      %v2508 = vmul.f32 %v2503, 1.442695
      %v2509 = vpow.pop %v2508
      %v2510 = vsel %vm667, %v2505, 0.0
      %2511 = vadd.xlane.f32.xlu0 %v2510
      %v2512 = vpop.xlane.xlu0 %2511
      %v2513 = vsel %vm667, %v2507, 0.0
      %2514 = vadd.xlane.f32.xlu0 %v2513
      %v2515 = vpop.xlane.xlu0 %2514
      %v2516 = vsel %vm674, %v2509, 0.0
      %2517 = vadd.xlane.f32.xlu0 %v2516
      %v2518 = vpop.xlane.xlu0 %2517
      %v2519 = vrcp.pop %v2512
      %v2520 = vrcp.pop %v2515
      %v2521 = vrcp.pop %v2518
      %v2522 = vmul.f32 %v2505, %v2519
      %v2523 = vmul.f32 %v2507, %v2520
      %v2524 = vmul.f32 %v2509, %v2521
      %2525 = vrot.lane.b32.xlu0 %v2136, 56
      %v2526 = vpop.permute.xlu0 %2525
      %2527 = vrot.lane.b32.xlu0 %v2141, 56
      %v2528 = vpop.permute.xlu0 %2527
      %2529 = vrot.lane.b32.xlu0 %v2146, 56
      %v2530 = vpop.permute.xlu0 %2529
      %v2534 = vsel %vm667, %v2522, 0
      %v2537 = vsel %vm667, %v2523, 0
      %v2540 = vsel %vm667, %v2524, 0
      %v2542 = vsel %vm719, %v2530, 0
      %2544 = vmatprep.subr.mxu0 0.0
      %2545 = vmatpush1.msra.mxu0 %v2526
      %2546 = vmatprep.subr.mxu0 0.0
      %2547 = vmatpush1.msra.mxu0 %v2528
      %2548 = vmatprep.subr.mxu0 0.0
      %2549 = vmatpush1.msra.mxu0 %v2542
      %2550 = vmatprep.subr.mxu0 0.0
      %2551 = vmatpush1.msra.mxu0 0.0
      %2552 = vmatprep.subr.mxu0 0.0
      %2553 = vmatpush1.msra.mxu0 0.0
      %2554 = vmatprep.subr.mxu0 0.0
      %2555 = vmatpush1.msra.mxu0 0.0
      %2556 = vmatprep.subr.mxu0 0.0
      %2557 = vmatpush1.msra.mxu0 0.0
      %2558 = vmatprep.subr.mxu0 0.0
      %2559 = vmatpush1.msra.mxu0 0.0
      %2560 = vmatprep.subr.mxu0 0.0
      %2561 = vmatpush1.msra.mxu0 0.0
      %2562 = vmatprep.subr.mxu0 0.0
      %2563 = vmatpush1.msra.mxu0 0.0
      %2564 = vmatprep.subr.mxu0 0.0
      %2565 = vmatpush1.msra.mxu0 0.0
      %2566 = vmatprep.subr.mxu0 0.0
      %2567 = vmatpush1.msra.mxu0 0.0
      %2568 = vmatprep.subr.mxu0 0.0
      %2569 = vmatpush1.msra.mxu0 0.0
      %2570 = vmatprep.subr.mxu0 0.0
      %2571 = vmatpush1.msra.mxu0 0.0
      %2572 = vmatprep.subr.mxu0 0.0
      %2573 = vmatpush1.msra.mxu0 0.0
      %2574 = vmatprep.subr.mxu0 0.0
      %2575 = vmatpush1.msra.mxu0 0.0
      %2576 = vmatprep.subr.mxu0 0.0
      %2577 = vmatpush1.msra.mxu0 0.0
      %2578 = vmatprep.subr.mxu0 0.0
      %2579 = vmatpush1.msra.mxu0 0.0
      %2580 = vmatprep.subr.mxu0 0.0
      %2581 = vmatpush1.msra.mxu0 0.0
      %2582 = vmatprep.subr.mxu0 0.0
      %2583 = vmatpush1.msra.mxu0 0.0
      %2584 = vmatprep.subr.mxu0 0.0
      %2585 = vmatpush1.msra.mxu0 0.0
      %2586 = vmatprep.subr.mxu0 0.0
      %2587 = vmatpush1.msra.mxu0 0.0
      %2588 = vmatprep.subr.mxu0 0.0
      %2589 = vmatpush1.msra.mxu0 0.0
      %2590 = vmatprep.subr.mxu0 0.0
      %2591 = vmatpush1.msra.mxu0 0.0
      %2592 = vmatprep.subr.mxu0 0.0
      %2593 = vmatpush1.msra.mxu0 0.0
      %2594 = vmatprep.subr.mxu0 0.0
      %2595 = vmatpush1.msra.mxu0 0.0
      %2596 = vmatprep.subr.mxu0 0.0
      %2597 = vmatpush1.msra.mxu0 0.0
      %2598 = vmatprep.subr.mxu0 0.0
      %2599 = vmatpush1.msra.mxu0 0.0
      %2600 = vmatprep.subr.mxu0 0.0
      %2601 = vmatpush1.msra.mxu0 0.0
      %2602 = vmatprep.subr.mxu0 0.0
      %2603 = vmatpush1.msra.mxu0 0.0
      %2604 = vmatprep.subr.mxu0 0.0
      %2605 = vmatpush1.msra.mxu0 0.0
      %2606 = vmatprep.subr.mxu0 0.0
      %2607 = vmatpush1.msra.mxu0 0.0
      %2608 = vmatprep.mubr.f32.mxu0 0.0
      %2609 = vmatmul.mubr.f32.gmra.mrb[0].mxu0 %v2534
      %v2610 = vpop.f32.mrb[0].mxu0
      %v2611 = vadd.f32 0.0, %v2610
      %v2612 = vpop.f32.mrb[0].mxu0
      %2613 = vmatprep.mubr.f32.mxu0 0.0
      %2614 = vmatmul.mubr.f32.gmra.mrb[0].mxu0 %v2537
      %v2615 = vpop.f32.mrb[0].mxu0
      %v2616 = vadd.f32 0.0, %v2615
      %v2617 = vpop.f32.mrb[0].mxu0
      %2618 = vmatprep.mubr.f32.mxu0 0.0
      %2619 = vmatmul.mubr.f32.gmra.mrb[0].mxu0 %v2540
      %v2620 = vpop.f32.mrb[0].mxu0
      %v2621 = vadd.f32 0.0, %v2620
      %v2622 = vpop.f32.mrb[0].mxu0
      %2623 = vdwg.mxu0
      %2624 = vrot.lane.b32.xlu0 %v2136, 112
      %v2625 = vpop.permute.xlu0 %2624
      %2626 = vrot.lane.b32.xlu0 %v2141, 112
      %v2627 = vpop.permute.xlu0 %2626
      %2628 = vrot.lane.b32.xlu0 %v2146, 112
      %v2629 = vpop.permute.xlu0 %2628
      %2630 = vrot.lane.b32.xlu0 %v2136, 80
      %v2631 = vpop.permute.xlu0 %2630
      %2632 = vrot.lane.b32.xlu0 %v2141, 80
      %v2633 = vpop.permute.xlu0 %2632
      %2634 = vrot.lane.b32.xlu0 %v2146, 80
      %v2635 = vpop.permute.xlu0 %2634
      %v2636 = vsel %vm571, %v2625, 0
      %v2638 = vsel %vm571, %v2627, 0
      %v2640 = vsel %vm571, %v2629, 0
      %v2642 = vsel %vm571, %v2631, 0
      %v2644 = vsel %vm571, %v2633, 0
      %v2646 = vsel %vm571, %v2635, 0
      %2648 = vmatprep.subr.mxu0 0.0
      %2649 = vmatpush1.xpose.msra.mxu0 %v2642
      %2650 = vmatprep.subr.mxu0 0.0
      %2651 = vmatpush1.xpose.msra.mxu0 %v2644
      %2652 = vmatprep.subr.mxu0 0.0
      %2653 = vmatpush1.xpose.msra.mxu0 %v2646
      %2654 = vmatprep.subr.mxu0 0.0
      %2655 = vmatpush1.xpose.msra.mxu0 0.0
      %2656 = vmatprep.subr.mxu0 0.0
      %2657 = vmatpush1.xpose.msra.mxu0 0.0
      %2658 = vmatprep.subr.mxu0 0.0
      %2659 = vmatpush1.xpose.msra.mxu0 0.0
      %2660 = vmatprep.subr.mxu0 0.0
      %2661 = vmatpush1.xpose.msra.mxu0 0.0
      %2662 = vmatprep.subr.mxu0 0.0
      %2663 = vmatpush1.xpose.msra.mxu0 0.0
      %2664 = vmatprep.subr.mxu0 0.0
      %2665 = vmatpush1.xpose.msra.mxu0 0.0
      %2666 = vmatprep.subr.mxu0 0.0
      %2667 = vmatpush1.xpose.msra.mxu0 0.0
      %2668 = vmatprep.subr.mxu0 0.0
      %2669 = vmatpush1.xpose.msra.mxu0 0.0
      %2670 = vmatprep.subr.mxu0 0.0
      %2671 = vmatpush1.xpose.msra.mxu0 0.0
      %2672 = vmatprep.subr.mxu0 0.0
      %2673 = vmatpush1.xpose.msra.mxu0 0.0
      %2674 = vmatprep.subr.mxu0 0.0
      %2675 = vmatpush1.xpose.msra.mxu0 0.0
      %2676 = vmatprep.subr.mxu0 0.0
      %2677 = vmatpush1.xpose.msra.mxu0 0.0
      %2678 = vmatprep.subr.mxu0 0.0
      %2679 = vmatpush1.xpose.msra.mxu0 0.0
      %2680 = vmatprep.subr.mxu0 0.0
      %2681 = vmatpush1.xpose.msra.mxu0 0.0
      %2682 = vmatprep.subr.mxu0 0.0
      %2683 = vmatpush1.xpose.msra.mxu0 0.0
      %2684 = vmatprep.subr.mxu0 0.0
      %2685 = vmatpush1.xpose.msra.mxu0 0.0
      %2686 = vmatprep.subr.mxu0 0.0
      %2687 = vmatpush1.xpose.msra.mxu0 0.0
      %2688 = vmatprep.subr.mxu0 0.0
      %2689 = vmatpush1.xpose.msra.mxu0 0.0
      %2690 = vmatprep.subr.mxu0 0.0
      %2691 = vmatpush1.xpose.msra.mxu0 0.0
      %2692 = vmatprep.subr.mxu0 0.0
      %2693 = vmatpush1.xpose.msra.mxu0 0.0
      %2694 = vmatprep.subr.mxu0 0.0
      %2695 = vmatpush1.xpose.msra.mxu0 0.0
      %2696 = vmatprep.subr.mxu0 0.0
      %2697 = vmatpush1.xpose.msra.mxu0 0.0
      %2698 = vmatprep.subr.mxu0 0.0
      %2699 = vmatpush1.xpose.msra.mxu0 0.0
      %2700 = vmatprep.subr.mxu0 0.0
      %2701 = vmatpush1.xpose.msra.mxu0 0.0
      %2702 = vmatprep.subr.mxu0 0.0
      %2703 = vmatpush1.xpose.msra.mxu0 0.0
      %2704 = vmatprep.subr.mxu0 0.0
      %2705 = vmatpush1.xpose.msra.mxu0 0.0
      %2706 = vmatprep.subr.mxu0 0.0
      %2707 = vmatpush1.xpose.msra.mxu0 0.0
      %2708 = vmatprep.subr.mxu0 0.0
      %2709 = vmatpush1.xpose.msra.mxu0 0.0
      %2710 = vmatprep.subr.mxu0 0.0
      %2711 = vmatpush1.xpose.msra.mxu0 0.0
      %2712 = vmatprep.mubr.f32.mxu0 0.0
      %2713 = vmatmul.mubr.f32.gmra.mrb[0].mxu0 %v2636
      %v2714 = vpop.f32.mrb[0].mxu0
      %v2715 = vadd.f32 0.0, %v2714
      %v2716 = vpop.f32.mrb[0].mxu0
      %2717 = vmatprep.mubr.f32.mxu0 0.0
      %2718 = vmatmul.mubr.f32.gmra.mrb[0].mxu0 %v2638
      %v2719 = vpop.f32.mrb[0].mxu0
      %v2720 = vadd.f32 0.0, %v2719
      %v2721 = vpop.f32.mrb[0].mxu0
      %2722 = vmatprep.mubr.f32.mxu0 0.0
      %2723 = vmatmul.mubr.f32.gmra.mrb[0].mxu0 %v2640
      %v2724 = vpop.f32.mrb[0].mxu0
      %v2725 = vadd.f32 0.0, %v2724
      %v2726 = vpop.f32.mrb[0].mxu0
      %2727 = vdwg.mxu0
      %v2728 = vmul.f32 %v2715, 0.35355338
      %v2729 = vmul.f32 %v2720, 0.35355338
      %v2730 = vmul.f32 %v2725, 0.35355338
      %v2731 = vsel %vm667, %v2728, -inf
      %2732 = vmax.xlane.f32.xlu0 %v2731
      %v2733 = vpop.xlane.xlu0 %2732
      %v2734 = vsel %vm667, %v2729, -inf
      %2735 = vmax.xlane.f32.xlu0 %v2734
      %v2736 = vpop.xlane.xlu0 %2735
      %v2737 = vsel %vm674, %v2730, -inf
      %2738 = vmax.xlane.f32.xlu0 %v2737
      %v2739 = vpop.xlane.xlu0 %2738
      %v2740 = vsub.f32 %v2728, %v2733
      %v2741 = vsub.f32 %v2729, %v2736
      %v2742 = vsub.f32 %v2730, %v2739
      %v2743 = vmul.f32 %v2740, 1.442695
      %v2744 = vpow.pop %v2743
      %v2745 = vmul.f32 %v2741, 1.442695
      %v2746 = vpow.pop %v2745
      %v2747 = vmul.f32 %v2742, 1.442695
      %v2748 = vpow.pop %v2747
      %v2749 = vsel %vm667, %v2744, 0.0
      %2750 = vadd.xlane.f32.xlu0 %v2749
      %v2751 = vpop.xlane.xlu0 %2750
      %v2752 = vsel %vm667, %v2746, 0.0
      %2753 = vadd.xlane.f32.xlu0 %v2752
      %v2754 = vpop.xlane.xlu0 %2753
      %v2755 = vsel %vm674, %v2748, 0.0
      %2756 = vadd.xlane.f32.xlu0 %v2755
      %v2757 = vpop.xlane.xlu0 %2756
      %v2758 = vrcp.pop %v2751
      %v2759 = vrcp.pop %v2754
      %v2760 = vrcp.pop %v2757
      %v2761 = vmul.f32 %v2744, %v2758
      %v2762 = vmul.f32 %v2746, %v2759
      %v2763 = vmul.f32 %v2748, %v2760
      %2764 = vrot.lane.b32.xlu0 %v2136, 48
      %v2765 = vpop.permute.xlu0 %2764
      %2766 = vrot.lane.b32.xlu0 %v2141, 48
      %v2767 = vpop.permute.xlu0 %2766
      %2768 = vrot.lane.b32.xlu0 %v2146, 48
      %v2769 = vpop.permute.xlu0 %2768
      %v2773 = vsel %vm667, %v2761, 0
      %v2776 = vsel %vm667, %v2762, 0
      %v2779 = vsel %vm667, %v2763, 0
      %v2781 = vsel %vm719, %v2769, 0
      %2783 = vmatprep.subr.mxu0 0.0
      %2784 = vmatpush1.msra.mxu0 %v2765
      %2785 = vmatprep.subr.mxu0 0.0
      %2786 = vmatpush1.msra.mxu0 %v2767
      %2787 = vmatprep.subr.mxu0 0.0
      %2788 = vmatpush1.msra.mxu0 %v2781
      %2789 = vmatprep.subr.mxu0 0.0
      %2790 = vmatpush1.msra.mxu0 0.0
      %2791 = vmatprep.subr.mxu0 0.0
      %2792 = vmatpush1.msra.mxu0 0.0
      %2793 = vmatprep.subr.mxu0 0.0
      %2794 = vmatpush1.msra.mxu0 0.0
      %2795 = vmatprep.subr.mxu0 0.0
      %2796 = vmatpush1.msra.mxu0 0.0
      %2797 = vmatprep.subr.mxu0 0.0
      %2798 = vmatpush1.msra.mxu0 0.0
      %2799 = vmatprep.subr.mxu0 0.0
      %2800 = vmatpush1.msra.mxu0 0.0
      %2801 = vmatprep.subr.mxu0 0.0
      %2802 = vmatpush1.msra.mxu0 0.0
      %2803 = vmatprep.subr.mxu0 0.0
      %2804 = vmatpush1.msra.mxu0 0.0
      %2805 = vmatprep.subr.mxu0 0.0
      %2806 = vmatpush1.msra.mxu0 0.0
      %2807 = vmatprep.subr.mxu0 0.0
      %2808 = vmatpush1.msra.mxu0 0.0
      %2809 = vmatprep.subr.mxu0 0.0
      %2810 = vmatpush1.msra.mxu0 0.0
      %2811 = vmatprep.subr.mxu0 0.0
      %2812 = vmatpush1.msra.mxu0 0.0
      %2813 = vmatprep.subr.mxu0 0.0
      %2814 = vmatpush1.msra.mxu0 0.0
      %2815 = vmatprep.subr.mxu0 0.0
      %2816 = vmatpush1.msra.mxu0 0.0
      %2817 = vmatprep.subr.mxu0 0.0
      %2818 = vmatpush1.msra.mxu0 0.0
      %2819 = vmatprep.subr.mxu0 0.0
      %2820 = vmatpush1.msra.mxu0 0.0
      %2821 = vmatprep.subr.mxu0 0.0
      %2822 = vmatpush1.msra.mxu0 0.0
      %2823 = vmatprep.subr.mxu0 0.0
      %2824 = vmatpush1.msra.mxu0 0.0
      %2825 = vmatprep.subr.mxu0 0.0
      %2826 = vmatpush1.msra.mxu0 0.0
      %2827 = vmatprep.subr.mxu0 0.0
      %2828 = vmatpush1.msra.mxu0 0.0
      %2829 = vmatprep.subr.mxu0 0.0
      %2830 = vmatpush1.msra.mxu0 0.0
      %2831 = vmatprep.subr.mxu0 0.0
      %2832 = vmatpush1.msra.mxu0 0.0
      %2833 = vmatprep.subr.mxu0 0.0
      %2834 = vmatpush1.msra.mxu0 0.0
      %2835 = vmatprep.subr.mxu0 0.0
      %2836 = vmatpush1.msra.mxu0 0.0
      %2837 = vmatprep.subr.mxu0 0.0
      %2838 = vmatpush1.msra.mxu0 0.0
      %2839 = vmatprep.subr.mxu0 0.0
      %2840 = vmatpush1.msra.mxu0 0.0
      %2841 = vmatprep.subr.mxu0 0.0
      %2842 = vmatpush1.msra.mxu0 0.0
      %2843 = vmatprep.subr.mxu0 0.0
      %2844 = vmatpush1.msra.mxu0 0.0
      %2845 = vmatprep.subr.mxu0 0.0
      %2846 = vmatpush1.msra.mxu0 0.0
      %2847 = vmatprep.mubr.f32.mxu0 0.0
      %2848 = vmatmul.mubr.f32.gmra.mrb[0].mxu0 %v2773
      %v2849 = vpop.f32.mrb[0].mxu0
      %v2850 = vadd.f32 0.0, %v2849
      %v2851 = vpop.f32.mrb[0].mxu0
      %2852 = vmatprep.mubr.f32.mxu0 0.0
      %2853 = vmatmul.mubr.f32.gmra.mrb[0].mxu0 %v2776
      %v2854 = vpop.f32.mrb[0].mxu0
      %v2855 = vadd.f32 0.0, %v2854
      %v2856 = vpop.f32.mrb[0].mxu0
      %2857 = vmatprep.mubr.f32.mxu0 0.0
      %2858 = vmatmul.mubr.f32.gmra.mrb[0].mxu0 %v2779
      %v2859 = vpop.f32.mrb[0].mxu0
      %v2860 = vadd.f32 0.0, %v2859
      %v2861 = vpop.f32.mrb[0].mxu0
      %2862 = vdwg.mxu0
      %2863 = vrot.lane.b32.xlu0 %v2136, 104
      %v2864 = vpop.permute.xlu0 %2863
      %2865 = vrot.lane.b32.xlu0 %v2141, 104
      %v2866 = vpop.permute.xlu0 %2865
      %2867 = vrot.lane.b32.xlu0 %v2146, 104
      %v2868 = vpop.permute.xlu0 %2867
      %2869 = vrot.lane.b32.xlu0 %v2136, 72
      %v2870 = vpop.permute.xlu0 %2869
      %2871 = vrot.lane.b32.xlu0 %v2141, 72
      %v2872 = vpop.permute.xlu0 %2871
      %2873 = vrot.lane.b32.xlu0 %v2146, 72
      %v2874 = vpop.permute.xlu0 %2873
      %v2875 = vsel %vm571, %v2864, 0
      %v2877 = vsel %vm571, %v2866, 0
      %v2879 = vsel %vm571, %v2868, 0
      %v2881 = vsel %vm571, %v2870, 0
      %v2883 = vsel %vm571, %v2872, 0
      %v2885 = vsel %vm571, %v2874, 0
      %2887 = vmatprep.subr.mxu0 0.0
      %2888 = vmatpush1.xpose.msra.mxu0 %v2881
      %2889 = vmatprep.subr.mxu0 0.0
      %2890 = vmatpush1.xpose.msra.mxu0 %v2883
      %2891 = vmatprep.subr.mxu0 0.0
      %2892 = vmatpush1.xpose.msra.mxu0 %v2885
      %2893 = vmatprep.subr.mxu0 0.0
      %2894 = vmatpush1.xpose.msra.mxu0 0.0
      %2895 = vmatprep.subr.mxu0 0.0
      %2896 = vmatpush1.xpose.msra.mxu0 0.0
      %2897 = vmatprep.subr.mxu0 0.0
      %2898 = vmatpush1.xpose.msra.mxu0 0.0
      %2899 = vmatprep.subr.mxu0 0.0
      %2900 = vmatpush1.xpose.msra.mxu0 0.0
      %2901 = vmatprep.subr.mxu0 0.0
      %2902 = vmatpush1.xpose.msra.mxu0 0.0
      %2903 = vmatprep.subr.mxu0 0.0
      %2904 = vmatpush1.xpose.msra.mxu0 0.0
      %2905 = vmatprep.subr.mxu0 0.0
      %2906 = vmatpush1.xpose.msra.mxu0 0.0
      %2907 = vmatprep.subr.mxu0 0.0
      %2908 = vmatpush1.xpose.msra.mxu0 0.0
      %2909 = vmatprep.subr.mxu0 0.0
      %2910 = vmatpush1.xpose.msra.mxu0 0.0
      %2911 = vmatprep.subr.mxu0 0.0
      %2912 = vmatpush1.xpose.msra.mxu0 0.0
      %2913 = vmatprep.subr.mxu0 0.0
      %2914 = vmatpush1.xpose.msra.mxu0 0.0
      %2915 = vmatprep.subr.mxu0 0.0
      %2916 = vmatpush1.xpose.msra.mxu0 0.0
      %2917 = vmatprep.subr.mxu0 0.0
      %2918 = vmatpush1.xpose.msra.mxu0 0.0
      %2919 = vmatprep.subr.mxu0 0.0
      %2920 = vmatpush1.xpose.msra.mxu0 0.0
      %2921 = vmatprep.subr.mxu0 0.0
      %2922 = vmatpush1.xpose.msra.mxu0 0.0
      %2923 = vmatprep.subr.mxu0 0.0
      %2924 = vmatpush1.xpose.msra.mxu0 0.0
      %2925 = vmatprep.subr.mxu0 0.0
      %2926 = vmatpush1.xpose.msra.mxu0 0.0
      %2927 = vmatprep.subr.mxu0 0.0
      %2928 = vmatpush1.xpose.msra.mxu0 0.0
      %2929 = vmatprep.subr.mxu0 0.0
      %2930 = vmatpush1.xpose.msra.mxu0 0.0
      %2931 = vmatprep.subr.mxu0 0.0
      %2932 = vmatpush1.xpose.msra.mxu0 0.0
      %2933 = vmatprep.subr.mxu0 0.0
      %2934 = vmatpush1.xpose.msra.mxu0 0.0
      %2935 = vmatprep.subr.mxu0 0.0
      %2936 = vmatpush1.xpose.msra.mxu0 0.0
      %2937 = vmatprep.subr.mxu0 0.0
      %2938 = vmatpush1.xpose.msra.mxu0 0.0
      %2939 = vmatprep.subr.mxu0 0.0
      %2940 = vmatpush1.xpose.msra.mxu0 0.0
      %2941 = vmatprep.subr.mxu0 0.0
      %2942 = vmatpush1.xpose.msra.mxu0 0.0
      %2943 = vmatprep.subr.mxu0 0.0
      %2944 = vmatpush1.xpose.msra.mxu0 0.0
      %2945 = vmatprep.subr.mxu0 0.0
      %2946 = vmatpush1.xpose.msra.mxu0 0.0
      %2947 = vmatprep.subr.mxu0 0.0
      %2948 = vmatpush1.xpose.msra.mxu0 0.0
      %2949 = vmatprep.subr.mxu0 0.0
      %2950 = vmatpush1.xpose.msra.mxu0 0.0
      %2951 = vmatprep.mubr.f32.mxu0 0.0
      %2952 = vmatmul.mubr.f32.gmra.mrb[0].mxu0 %v2875
      %v2953 = vpop.f32.mrb[0].mxu0
      %v2954 = vadd.f32 0.0, %v2953
      %v2955 = vpop.f32.mrb[0].mxu0
      %2956 = vmatprep.mubr.f32.mxu0 0.0
      %2957 = vmatmul.mubr.f32.gmra.mrb[0].mxu0 %v2877
      %v2958 = vpop.f32.mrb[0].mxu0
      %v2959 = vadd.f32 0.0, %v2958
      %v2960 = vpop.f32.mrb[0].mxu0
      %2961 = vmatprep.mubr.f32.mxu0 0.0
      %2962 = vmatmul.mubr.f32.gmra.mrb[0].mxu0 %v2879
      %v2963 = vpop.f32.mrb[0].mxu0
      %v2964 = vadd.f32 0.0, %v2963
      %v2965 = vpop.f32.mrb[0].mxu0
      %2966 = vdwg.mxu0
      %v2967 = vmul.f32 %v2954, 0.35355338
      %v2968 = vmul.f32 %v2959, 0.35355338
      %v2969 = vmul.f32 %v2964, 0.35355338
      %v2970 = vsel %vm667, %v2967, -inf
      %2971 = vmax.xlane.f32.xlu0 %v2970
      %v2972 = vpop.xlane.xlu0 %2971
      %v2973 = vsel %vm667, %v2968, -inf
      %2974 = vmax.xlane.f32.xlu0 %v2973
      %v2975 = vpop.xlane.xlu0 %2974
      %v2976 = vsel %vm674, %v2969, -inf
      %2977 = vmax.xlane.f32.xlu0 %v2976
      %v2978 = vpop.xlane.xlu0 %2977
      %v2979 = vsub.f32 %v2967, %v2972
      %v2980 = vsub.f32 %v2968, %v2975
      %v2981 = vsub.f32 %v2969, %v2978
      %v2982 = vmul.f32 %v2979, 1.442695
      %v2983 = vpow.pop %v2982
      %v2984 = vmul.f32 %v2980, 1.442695
      %v2985 = vpow.pop %v2984
      %v2986 = vmul.f32 %v2981, 1.442695
      %v2987 = vpow.pop %v2986
      %v2988 = vsel %vm667, %v2983, 0.0
      %2989 = vadd.xlane.f32.xlu0 %v2988
      %v2990 = vpop.xlane.xlu0 %2989
      %v2991 = vsel %vm667, %v2985, 0.0
      %2992 = vadd.xlane.f32.xlu0 %v2991
      %v2993 = vpop.xlane.xlu0 %2992
      %v2994 = vsel %vm674, %v2987, 0.0
      %2995 = vadd.xlane.f32.xlu0 %v2994
      %v2996 = vpop.xlane.xlu0 %2995
      %v2997 = vrcp.pop %v2990
      %v2998 = vrcp.pop %v2993
      %v2999 = vrcp.pop %v2996
      %v3000 = vmul.f32 %v2983, %v2997
      %v3001 = vmul.f32 %v2985, %v2998
      %v3002 = vmul.f32 %v2987, %v2999
      %3003 = vrot.lane.b32.xlu0 %v2136, 40
      %v3004 = vpop.permute.xlu0 %3003
      %3005 = vrot.lane.b32.xlu0 %v2141, 40
      %v3006 = vpop.permute.xlu0 %3005
      %3007 = vrot.lane.b32.xlu0 %v2146, 40
      %v3008 = vpop.permute.xlu0 %3007
      %v3012 = vsel %vm667, %v3000, 0
      %v3015 = vsel %vm667, %v3001, 0
      %v3018 = vsel %vm667, %v3002, 0
      %v3020 = vsel %vm719, %v3008, 0
      %3022 = vmatprep.subr.mxu0 0.0
      %3023 = vmatpush1.msra.mxu0 %v3004
      %3024 = vmatprep.subr.mxu0 0.0
      %3025 = vmatpush1.msra.mxu0 %v3006
      %3026 = vmatprep.subr.mxu0 0.0
      %3027 = vmatpush1.msra.mxu0 %v3020
      %3028 = vmatprep.subr.mxu0 0.0
      %3029 = vmatpush1.msra.mxu0 0.0
      %3030 = vmatprep.subr.mxu0 0.0
      %3031 = vmatpush1.msra.mxu0 0.0
      %3032 = vmatprep.subr.mxu0 0.0
      %3033 = vmatpush1.msra.mxu0 0.0
      %3034 = vmatprep.subr.mxu0 0.0
      %3035 = vmatpush1.msra.mxu0 0.0
      %3036 = vmatprep.subr.mxu0 0.0
      %3037 = vmatpush1.msra.mxu0 0.0
      %3038 = vmatprep.subr.mxu0 0.0
      %3039 = vmatpush1.msra.mxu0 0.0
      %3040 = vmatprep.subr.mxu0 0.0
      %3041 = vmatpush1.msra.mxu0 0.0
      %3042 = vmatprep.subr.mxu0 0.0
      %3043 = vmatpush1.msra.mxu0 0.0
      %3044 = vmatprep.subr.mxu0 0.0
      %3045 = vmatpush1.msra.mxu0 0.0
      %3046 = vmatprep.subr.mxu0 0.0
      %3047 = vmatpush1.msra.mxu0 0.0
      %3048 = vmatprep.subr.mxu0 0.0
      %3049 = vmatpush1.msra.mxu0 0.0
      %3050 = vmatprep.subr.mxu0 0.0
      %3051 = vmatpush1.msra.mxu0 0.0
      %3052 = vmatprep.subr.mxu0 0.0
      %3053 = vmatpush1.msra.mxu0 0.0
      %3054 = vmatprep.subr.mxu0 0.0
      %3055 = vmatpush1.msra.mxu0 0.0
      %3056 = vmatprep.subr.mxu0 0.0
      %3057 = vmatpush1.msra.mxu0 0.0
      %3058 = vmatprep.subr.mxu0 0.0
      %3059 = vmatpush1.msra.mxu0 0.0
      %3060 = vmatprep.subr.mxu0 0.0
      %3061 = vmatpush1.msra.mxu0 0.0
      %3062 = vmatprep.subr.mxu0 0.0
      %3063 = vmatpush1.msra.mxu0 0.0
      %3064 = vmatprep.subr.mxu0 0.0
      %3065 = vmatpush1.msra.mxu0 0.0
      %3066 = vmatprep.subr.mxu0 0.0
      %3067 = vmatpush1.msra.mxu0 0.0
      %3068 = vmatprep.subr.mxu0 0.0
      %3069 = vmatpush1.msra.mxu0 0.0
      %3070 = vmatprep.subr.mxu0 0.0
      %3071 = vmatpush1.msra.mxu0 0.0
      %3072 = vmatprep.subr.mxu0 0.0
      %3073 = vmatpush1.msra.mxu0 0.0
      %3074 = vmatprep.subr.mxu0 0.0
      %3075 = vmatpush1.msra.mxu0 0.0
      %3076 = vmatprep.subr.mxu0 0.0
      %3077 = vmatpush1.msra.mxu0 0.0
      %3078 = vmatprep.subr.mxu0 0.0
      %3079 = vmatpush1.msra.mxu0 0.0
      %3080 = vmatprep.subr.mxu0 0.0
      %3081 = vmatpush1.msra.mxu0 0.0
      %3082 = vmatprep.subr.mxu0 0.0
      %3083 = vmatpush1.msra.mxu0 0.0
      %3084 = vmatprep.subr.mxu0 0.0
      %3085 = vmatpush1.msra.mxu0 0.0
      %3086 = vmatprep.mubr.f32.mxu0 0.0
      %3087 = vmatmul.mubr.f32.gmra.mrb[0].mxu0 %v3012
      %v3088 = vpop.f32.mrb[0].mxu0
      %v3089 = vadd.f32 0.0, %v3088
      %v3090 = vpop.f32.mrb[0].mxu0
      %3091 = vmatprep.mubr.f32.mxu0 0.0
      %3092 = vmatmul.mubr.f32.gmra.mrb[0].mxu0 %v3015
      %v3093 = vpop.f32.mrb[0].mxu0
      %v3094 = vadd.f32 0.0, %v3093
      %v3095 = vpop.f32.mrb[0].mxu0
      %3096 = vmatprep.mubr.f32.mxu0 0.0
      %3097 = vmatmul.mubr.f32.gmra.mrb[0].mxu0 %v3018
      %v3098 = vpop.f32.mrb[0].mxu0
      %v3099 = vadd.f32 0.0, %v3098
      %v3100 = vpop.f32.mrb[0].mxu0
      %3101 = vdwg.mxu0
      %3105 = vrot.lane.b32.xlu0 %v2611, 8
      %v3106 = vpop.permute.xlu0 %3105
      %3107 = vrot.lane.b32.xlu0 %v2616, 8
      %v3108 = vpop.permute.xlu0 %3107
      %3109 = vrot.lane.b32.xlu0 %v2621, 8
      %v3110 = vpop.permute.xlu0 %3109
      %3117 = vrot.lane.b32.xlu0 %v2850, 16
      %v3118 = vpop.permute.xlu0 %3117
      %3119 = vrot.lane.b32.xlu0 %v2855, 16
      %v3120 = vpop.permute.xlu0 %3119
      %3121 = vrot.lane.b32.xlu0 %v2860, 16
      %v3122 = vpop.permute.xlu0 %3121
      %3129 = vrot.lane.b32.xlu0 %v3089, 24
      %v3130 = vpop.permute.xlu0 %3129
      %3131 = vrot.lane.b32.xlu0 %v3094, 24
      %v3132 = vpop.permute.xlu0 %3131
      %3133 = vrot.lane.b32.xlu0 %v3099, 24
      %v3134 = vpop.permute.xlu0 %3133
      %v3138 = vsel %vm571, %v2372, %v3106
      %v3139 = vsel %vm571, %v2377, %v3108
      %v3140 = vsel %vm571, %v2382, %v3110
      %v3141 = vsel %vm1558, %v3138, %v3118
      %v3142 = vsel %vm1558, %v3139, %v3120
      %v3143 = vsel %vm1558, %v3140, %v3122
      %v3144 = vsel %vm1562, %v3141, %v3130
      %v3145 = vsel %vm1562, %v3142, %v3132
      %v3146 = vsel %vm1562, %v3143, %v3134
      %s3147 = scalar_lea.vmem %s5, 96
      %v3148 = vld [vmem:[%s3147] sm:$0xff]
      %v3149 = vld [vmem:[%s3147 + $0x8] sm:$0xff]
      %v3150 = vld [vmem:[%s3147 + $0x10] sm:$0xff]
      %v3151 = vld [vmem:[%s3147 + $0x18] sm:$0xff]
      %v3153 = vsel %vm413, %v3144, 0
      %v3156 = vsel %vm413, %v3145, 0
      %v3159 = vsel %vm413, %v3146, 0
      %3161 = vmatprep.subr.mxu0 0.0
      %3162 = vmatpush1.msra.mxu0 %v3148
      %3163 = vmatprep.subr.mxu0 0.0
      %3164 = vmatpush1.msra.mxu0 %v3149
      %3165 = vmatprep.subr.mxu0 0.0
      %3166 = vmatpush1.msra.mxu0 %v3150
      %3167 = vmatprep.subr.mxu0 0.0
      %3168 = vmatpush1.msra.mxu0 %v3151
      %3169 = vmatprep.subr.mxu0 0.0
      %3170 = vmatpush1.msra.mxu0 0.0
      %3171 = vmatprep.subr.mxu0 0.0
      %3172 = vmatpush1.msra.mxu0 0.0
      %3173 = vmatprep.subr.mxu0 0.0
      %3174 = vmatpush1.msra.mxu0 0.0
      %3175 = vmatprep.subr.mxu0 0.0
      %3176 = vmatpush1.msra.mxu0 0.0
      %3177 = vmatprep.subr.mxu0 0.0
      %3178 = vmatpush1.msra.mxu0 0.0
      %3179 = vmatprep.subr.mxu0 0.0
      %3180 = vmatpush1.msra.mxu0 0.0
      %3181 = vmatprep.subr.mxu0 0.0
      %3182 = vmatpush1.msra.mxu0 0.0
      %3183 = vmatprep.subr.mxu0 0.0
      %3184 = vmatpush1.msra.mxu0 0.0
      %3185 = vmatprep.subr.mxu0 0.0
      %3186 = vmatpush1.msra.mxu0 0.0
      %3187 = vmatprep.subr.mxu0 0.0
      %3188 = vmatpush1.msra.mxu0 0.0
      %3189 = vmatprep.subr.mxu0 0.0
      %3190 = vmatpush1.msra.mxu0 0.0
      %3191 = vmatprep.subr.mxu0 0.0
      %3192 = vmatpush1.msra.mxu0 0.0
      %3193 = vmatprep.subr.mxu0 0.0
      %3194 = vmatpush1.msra.mxu0 0.0
      %3195 = vmatprep.subr.mxu0 0.0
      %3196 = vmatpush1.msra.mxu0 0.0
      %3197 = vmatprep.subr.mxu0 0.0
      %3198 = vmatpush1.msra.mxu0 0.0
      %3199 = vmatprep.subr.mxu0 0.0
      %3200 = vmatpush1.msra.mxu0 0.0
      %3201 = vmatprep.subr.mxu0 0.0
      %3202 = vmatpush1.msra.mxu0 0.0
      %3203 = vmatprep.subr.mxu0 0.0
      %3204 = vmatpush1.msra.mxu0 0.0
      %3205 = vmatprep.subr.mxu0 0.0
      %3206 = vmatpush1.msra.mxu0 0.0
      %3207 = vmatprep.subr.mxu0 0.0
      %3208 = vmatpush1.msra.mxu0 0.0
      %3209 = vmatprep.subr.mxu0 0.0
      %3210 = vmatpush1.msra.mxu0 0.0
      %3211 = vmatprep.subr.mxu0 0.0
      %3212 = vmatpush1.msra.mxu0 0.0
      %3213 = vmatprep.subr.mxu0 0.0
      %3214 = vmatpush1.msra.mxu0 0.0
      %3215 = vmatprep.subr.mxu0 0.0
      %3216 = vmatpush1.msra.mxu0 0.0
      %3217 = vmatprep.subr.mxu0 0.0
      %3218 = vmatpush1.msra.mxu0 0.0
      %3219 = vmatprep.subr.mxu0 0.0
      %3220 = vmatpush1.msra.mxu0 0.0
      %3221 = vmatprep.subr.mxu0 0.0
      %3222 = vmatpush1.msra.mxu0 0.0
      %3223 = vmatprep.subr.mxu0 0.0
      %3224 = vmatpush1.msra.mxu0 0.0
      %3225 = vmatprep.mubr.f32.mxu0 0.0
      %3226 = vmatmul.mubr.f32.gmra.mrb[0].mxu0 %v3153
      %v3227 = vpop.f32.mrb[0].mxu0
      %v3228 = vadd.f32 0.0, %v3227
      %v3229 = vpop.f32.mrb[0].mxu0
      %3230 = vmatprep.mubr.f32.mxu0 0.0
      %3231 = vmatmul.mubr.f32.gmra.mrb[0].mxu0 %v3156
      %v3232 = vpop.f32.mrb[0].mxu0
      %v3233 = vadd.f32 0.0, %v3232
      %v3234 = vpop.f32.mrb[0].mxu0
      %3235 = vmatprep.mubr.f32.mxu0 0.0
      %3236 = vmatmul.mubr.f32.gmra.mrb[0].mxu0 %v3159
      %v3237 = vpop.f32.mrb[0].mxu0
      %v3238 = vadd.f32 0.0, %v3237
      %v3239 = vpop.f32.mrb[0].mxu0
      %3240 = vdwg.mxu0
      %v3241 = vadd.f32 %v1999, %v3228
      %v3242 = vadd.f32 %v2000, %v3233
      %v3243 = vadd.f32 %v2001, %v3238
      %v3244 = vlaneseq
      %v3245 = vshrl.u32 %v3244, 7
      %v3246 = vsub.s32 1, %v3245
      %v3247 = vrot.slane %v307, %v3246
      %v3248 = vadd.f32 %v3241, %v3247
      %v3249 = vadd.f32 %v3242, %v3247
      %v3250 = vadd.f32 %v3243, %v3247
      %v3251 = vsel %vm413, %v3248, 0.0
      %3252 = vadd.xlane.f32.xlu0 %v3251
      %v3253 = vpop.xlane.xlu0 %3252
      %v3254 = vsel %vm413, %v3249, 0.0
      %3255 = vadd.xlane.f32.xlu0 %v3254
      %v3256 = vpop.xlane.xlu0 %3255
      %v3257 = vsel %vm420, %v3250, 0.0
      %3258 = vadd.xlane.f32.xlu0 %v3257
      %v3259 = vpop.xlane.xlu0 %3258
      %v3260 = vmul.f32 %v3253, %v424
      %v3261 = vmul.f32 %v3256, %v424
      %v3262 = vmul.f32 %v3259, %v424
      %v3263 = vsub.f32 %v3248, %v3260
      %v3264 = vsub.f32 %v3249, %v3261
      %v3265 = vsub.f32 %v3250, %v3262
      %v3266 = vmul.f32 %v3263, %v3263
      %v3267 = vmul.f32 %v3264, %v3264
      %v3268 = vmul.f32 %v3265, %v3265
      %v3269 = vsel %vm413, %v3266, 0.0
      %3270 = vadd.xlane.f32.xlu0 %v3269
      %v3271 = vpop.xlane.xlu0 %3270
      %v3272 = vsel %vm413, %v3267, 0.0
      %3273 = vadd.xlane.f32.xlu0 %v3272
      %v3274 = vpop.xlane.xlu0 %3273
      %v3275 = vsel %vm420, %v3268, 0.0
      %3276 = vadd.xlane.f32.xlu0 %v3275
      %v3277 = vpop.xlane.xlu0 %3276
      %v3278 = vmul.f32 %v3271, %v424
      %v3279 = vmul.f32 %v3274, %v424
      %v3280 = vmul.f32 %v3277, %v424
      %v3281 = vadd.f32 %v3278, 1e-05
      %v3282 = vadd.f32 %v3279, 1e-05
      %v3283 = vadd.f32 %v3280, 1e-05
      %v3284 = vrsqrt.pop %v3281
      %v3285 = vrsqrt.pop %v3282
      %v3286 = vrsqrt.pop %v3283
      %v3287 = vmul.f32 %v3263, %v3284
      %v3288 = vmul.f32 %v3264, %v3285
      %v3289 = vmul.f32 %v3265, %v3286
      %v3290 = vlaneseq
      %v3291 = vshrl.u32 %v3290, 7
      %v3292 = vsub.s32 2, %v3291
      %v3293 = vrot.slane %v307, %v3292
      %v3294 = vmul.f32 %v3287, %v3293
      %v3295 = vmul.f32 %v3288, %v3293
      %v3296 = vmul.f32 %v3289, %v3293
      %v3297 = vlaneseq
      %v3298 = vshrl.u32 %v3297, 7
      %v3299 = vsub.s32 3, %v3298
      %v3300 = vrot.slane %v307, %v3299
      %v3301 = vadd.f32 %v3294, %v3300
      %v3302 = vadd.f32 %v3295, %v3300
      %v3303 = vadd.f32 %v3296, %v3300
      %s3304 = scalar_lea.vmem %s5, 128
      %v3305 = vld [vmem:[%s3304] sm:$0xff]
      %v3306 = vld [vmem:[%s3304 + $0x8] sm:$0xff]
      %v3307 = vld [vmem:[%s3304 + $0x10] sm:$0xff]
      %v3308 = vld [vmem:[%s3304 + $0x18] sm:$0xff]
      %v3309 = vlaneseq
      %v3310 = vshrl.u32 %v3309, 7
      %v3311 = vsub.s32 4, %v3310
      %v3312 = vrot.slane %v307, %v3311
      %v3314 = vsel %vm413, %v3301, 0
      %v3317 = vsel %vm413, %v3302, 0
      %v3320 = vsel %vm413, %v3303, 0
      %3322 = vmatprep.subr.mxu0 0.0
      %3323 = vmatpush1.msra.mxu0 %v3305
      %3324 = vmatprep.subr.mxu0 0.0
      %3325 = vmatpush1.msra.mxu0 %v3306
      %3326 = vmatprep.subr.mxu0 0.0
      %3327 = vmatpush1.msra.mxu0 %v3307
      %3328 = vmatprep.subr.mxu0 0.0
      %3329 = vmatpush1.msra.mxu0 %v3308
      %3330 = vmatprep.subr.mxu0 0.0
      %3331 = vmatpush1.msra.mxu0 0.0
      %3332 = vmatprep.subr.mxu0 0.0
      %3333 = vmatpush1.msra.mxu0 0.0
      %3334 = vmatprep.subr.mxu0 0.0
      %3335 = vmatpush1.msra.mxu0 0.0
      %3336 = vmatprep.subr.mxu0 0.0
      %3337 = vmatpush1.msra.mxu0 0.0
      %3338 = vmatprep.subr.mxu0 0.0
      %3339 = vmatpush1.msra.mxu0 0.0
      %3340 = vmatprep.subr.mxu0 0.0
      %3341 = vmatpush1.msra.mxu0 0.0
      %3342 = vmatprep.subr.mxu0 0.0
      %3343 = vmatpush1.msra.mxu0 0.0
      %3344 = vmatprep.subr.mxu0 0.0
      %3345 = vmatpush1.msra.mxu0 0.0
      %3346 = vmatprep.subr.mxu0 0.0
      %3347 = vmatpush1.msra.mxu0 0.0
      %3348 = vmatprep.subr.mxu0 0.0
      %3349 = vmatpush1.msra.mxu0 0.0
      %3350 = vmatprep.subr.mxu0 0.0
      %3351 = vmatpush1.msra.mxu0 0.0
      %3352 = vmatprep.subr.mxu0 0.0
      %3353 = vmatpush1.msra.mxu0 0.0
      %3354 = vmatprep.subr.mxu0 0.0
      %3355 = vmatpush1.msra.mxu0 0.0
      %3356 = vmatprep.subr.mxu0 0.0
      %3357 = vmatpush1.msra.mxu0 0.0
      %3358 = vmatprep.subr.mxu0 0.0
      %3359 = vmatpush1.msra.mxu0 0.0
      %3360 = vmatprep.subr.mxu0 0.0
      %3361 = vmatpush1.msra.mxu0 0.0
      %3362 = vmatprep.subr.mxu0 0.0
      %3363 = vmatpush1.msra.mxu0 0.0
      %3364 = vmatprep.subr.mxu0 0.0
      %3365 = vmatpush1.msra.mxu0 0.0
      %3366 = vmatprep.subr.mxu0 0.0
      %3367 = vmatpush1.msra.mxu0 0.0
      %3368 = vmatprep.subr.mxu0 0.0
      %3369 = vmatpush1.msra.mxu0 0.0
      %3370 = vmatprep.subr.mxu0 0.0
      %3371 = vmatpush1.msra.mxu0 0.0
      %3372 = vmatprep.subr.mxu0 0.0
      %3373 = vmatpush1.msra.mxu0 0.0
      %3374 = vmatprep.subr.mxu0 0.0
      %3375 = vmatpush1.msra.mxu0 0.0
      %3376 = vmatprep.subr.mxu0 0.0
      %3377 = vmatpush1.msra.mxu0 0.0
      %3378 = vmatprep.subr.mxu0 0.0
      %3379 = vmatpush1.msra.mxu0 0.0
      %3380 = vmatprep.subr.mxu0 0.0
      %3381 = vmatpush1.msra.mxu0 0.0
      %3382 = vmatprep.subr.mxu0 0.0
      %3383 = vmatpush1.msra.mxu0 0.0
      %3384 = vmatprep.subr.mxu0 0.0
      %3385 = vmatpush1.msra.mxu0 0.0
      %3386 = vmatprep.mubr.f32.mxu0 0.0
      %3387 = vmatmul.mubr.f32.gmra.mrb[0].mxu0 %v3314
      %v3388 = vpop.f32.mrb[0].mxu0
      %v3389 = vadd.f32 %v3312, %v3388
      %v3390 = vpop.f32.mrb[0].mxu0
      %3391 = vmatprep.mubr.f32.mxu0 0.0
      %3392 = vmatmul.mubr.f32.gmra.mrb[0].mxu0 %v3317
      %v3393 = vpop.f32.mrb[0].mxu0
      %v3394 = vadd.f32 %v3312, %v3393
      %v3395 = vpop.f32.mrb[0].mxu0
      %3396 = vmatprep.mubr.f32.mxu0 0.0
      %3397 = vmatmul.mubr.f32.gmra.mrb[0].mxu0 %v3320
      %v3398 = vpop.f32.mrb[0].mxu0
      %v3399 = vadd.f32 %v3312, %v3398
      %v3400 = vpop.f32.mrb[0].mxu0
      %3401 = vdwg.mxu0
      %v3402 = vmul.f32 %v3389, 0.5
      %v3403 = vmul.f32 %v3394, 0.5
      %v3404 = vmul.f32 %v3399, 0.5
      %v3405 = vmul.f32 %v3389, 0.70710677
      %v3406 = vmul.f32 %v3394, 0.70710677
      %v3407 = vmul.f32 %v3399, 0.70710677
      %v3408 = vand.u32 2147483647, %v3405
      %v3409 = vand.u32 2147483647, %v3406
      %v3410 = vand.u32 2147483647, %v3407
      %v3411 = vmul.f32 %v3408, 0.3275911
      %v3412 = vmul.f32 %v3409, 0.3275911
      %v3413 = vmul.f32 %v3410, 0.3275911
      %v3414 = vadd.f32 %v3411, 1.0
      %v3415 = vadd.f32 %v3412, 1.0
      %v3416 = vadd.f32 %v3413, 1.0
      %v3417 = vrcp.pop %v3414
      %v3418 = vmul.f32 1.0, %v3417
      %v3419 = vrcp.pop %v3415
      %v3420 = vmul.f32 1.0, %v3419
      %v3421 = vrcp.pop %v3416
      %v3422 = vmul.f32 1.0, %v3421
      %v3423 = vmul.f32 %v3418, 1.0614054
      %v3424 = vmul.f32 %v3420, 1.0614054
      %v3425 = vmul.f32 %v3422, 1.0614054
      %v3426 = vadd.f32 %v3423, -1.4531521
      %v3427 = vadd.f32 %v3424, -1.4531521
      %v3428 = vadd.f32 %v3425, -1.4531521
      %v3429 = vmul.f32 %v3426, %v3418
      %v3430 = vmul.f32 %v3427, %v3420
      %v3431 = vmul.f32 %v3428, %v3422
      %v3432 = vadd.f32 %v3429, 1.4214138
      %v3433 = vadd.f32 %v3430, 1.4214138
      %v3434 = vadd.f32 %v3431, 1.4214138
      %v3435 = vmul.f32 %v3432, %v3418
      %v3436 = vmul.f32 %v3433, %v3420
      %v3437 = vmul.f32 %v3434, %v3422
      %v3438 = vadd.f32 %v3435, -0.28449672
      %v3439 = vadd.f32 %v3436, -0.28449672
      %v3440 = vadd.f32 %v3437, -0.28449672
      %v3441 = vmul.f32 %v3438, %v3418
      %v3442 = vmul.f32 %v3439, %v3420
      %v3443 = vmul.f32 %v3440, %v3422
      %v3444 = vadd.f32 %v3441, 0.2548296
      %v3445 = vadd.f32 %v3442, 0.2548296
      %v3446 = vadd.f32 %v3443, 0.2548296
      %v3447 = vmul.f32 %v3444, %v3418
      %v3448 = vmul.f32 %v3445, %v3420
      %v3449 = vmul.f32 %v3446, %v3422
      %v3450 = vsub.f32 0.0, %v3408
      %v3451 = vsub.f32 0.0, %v3409
      %v3452 = vsub.f32 0.0, %v3410
      %v3453 = vmul.f32 %v3450, %v3408
      %v3454 = vmul.f32 %v3451, %v3409
      %v3455 = vmul.f32 %v3452, %v3410
      %v3456 = vmul.f32 %v3453, 1.442695
      %v3457 = vpow.pop %v3456
      %v3458 = vmul.f32 %v3454, 1.442695
      %v3459 = vpow.pop %v3458
      %v3460 = vmul.f32 %v3455, 1.442695
      %v3461 = vpow.pop %v3460
      %v3462 = vmul.f32 %v3447, %v3457
      %v3463 = vmul.f32 %v3448, %v3459
      %v3464 = vmul.f32 %v3449, %v3461
      %v3465 = vsub.f32 1.0, %v3462
      %v3466 = vsub.f32 1.0, %v3463
      %v3467 = vsub.f32 1.0, %v3464
      %vm3468 = vcmp.lt.f32.partialorder %v3405, 0.0
      %vm3469 = vcmp.lt.f32.partialorder %v3406, 0.0
      %vm3470 = vcmp.lt.f32.partialorder %v3407, 0.0
      %v3471 = vsub.f32 0.0, %v3465
      %v3472 = vsub.f32 0.0, %v3466
      %v3473 = vsub.f32 0.0, %v3467
      %v3474 = vsel %vm3468, %v3471, %v3465
      %v3475 = vsel %vm3469, %v3472, %v3466
      %v3476 = vsel %vm3470, %v3473, %v3467
      %v3477 = vadd.f32 %v3474, 1.0
      %v3478 = vadd.f32 %v3475, 1.0
      %v3479 = vadd.f32 %v3476, 1.0
      %v3480 = vmul.f32 %v3402, %v3477
      %v3481 = vmul.f32 %v3403, %v3478
      %v3482 = vmul.f32 %v3404, %v3479
      %s3483 = scalar_lea.vmem %s5, 160
      %v3484 = vld [vmem:[%s3483] sm:$0xff]
      %v3485 = vld [vmem:[%s3483 + $0x8] sm:$0xff]
      %v3486 = vld [vmem:[%s3483 + $0x10] sm:$0xff]
      %v3487 = vld [vmem:[%s3483 + $0x18] sm:$0xff]
      %v3488 = vlaneseq
      %v3489 = vshrl.u32 %v3488, 7
      %v3490 = vsub.s32 5, %v3489
      %v3491 = vrot.slane %v307, %v3490
      %v3493 = vsel %vm413, %v3480, 0
      %v3496 = vsel %vm413, %v3481, 0
      %v3499 = vsel %vm413, %v3482, 0
      %3501 = vmatprep.subr.mxu0 0.0
      %3502 = vmatpush1.msra.mxu0 %v3484
      %3503 = vmatprep.subr.mxu0 0.0
      %3504 = vmatpush1.msra.mxu0 %v3485
      %3505 = vmatprep.subr.mxu0 0.0
      %3506 = vmatpush1.msra.mxu0 %v3486
      %3507 = vmatprep.subr.mxu0 0.0
      %3508 = vmatpush1.msra.mxu0 %v3487
      %3509 = vmatprep.subr.mxu0 0.0
      %3510 = vmatpush1.msra.mxu0 0.0
      %3511 = vmatprep.subr.mxu0 0.0
      %3512 = vmatpush1.msra.mxu0 0.0
      %3513 = vmatprep.subr.mxu0 0.0
      %3514 = vmatpush1.msra.mxu0 0.0
      %3515 = vmatprep.subr.mxu0 0.0
      %3516 = vmatpush1.msra.mxu0 0.0
      %3517 = vmatprep.subr.mxu0 0.0
      %3518 = vmatpush1.msra.mxu0 0.0
      %3519 = vmatprep.subr.mxu0 0.0
      %3520 = vmatpush1.msra.mxu0 0.0
      %3521 = vmatprep.subr.mxu0 0.0
      %3522 = vmatpush1.msra.mxu0 0.0
      %3523 = vmatprep.subr.mxu0 0.0
      %3524 = vmatpush1.msra.mxu0 0.0
      %3525 = vmatprep.subr.mxu0 0.0
      %3526 = vmatpush1.msra.mxu0 0.0
      %3527 = vmatprep.subr.mxu0 0.0
      %3528 = vmatpush1.msra.mxu0 0.0
      %3529 = vmatprep.subr.mxu0 0.0
      %3530 = vmatpush1.msra.mxu0 0.0
      %3531 = vmatprep.subr.mxu0 0.0
      %3532 = vmatpush1.msra.mxu0 0.0
      %3533 = vmatprep.subr.mxu0 0.0
      %3534 = vmatpush1.msra.mxu0 0.0
      %3535 = vmatprep.subr.mxu0 0.0
      %3536 = vmatpush1.msra.mxu0 0.0
      %3537 = vmatprep.subr.mxu0 0.0
      %3538 = vmatpush1.msra.mxu0 0.0
      %3539 = vmatprep.subr.mxu0 0.0
      %3540 = vmatpush1.msra.mxu0 0.0
      %3541 = vmatprep.subr.mxu0 0.0
      %3542 = vmatpush1.msra.mxu0 0.0
      %3543 = vmatprep.subr.mxu0 0.0
      %3544 = vmatpush1.msra.mxu0 0.0
      %3545 = vmatprep.subr.mxu0 0.0
      %3546 = vmatpush1.msra.mxu0 0.0
      %3547 = vmatprep.subr.mxu0 0.0
      %3548 = vmatpush1.msra.mxu0 0.0
      %3549 = vmatprep.subr.mxu0 0.0
      %3550 = vmatpush1.msra.mxu0 0.0
      %3551 = vmatprep.subr.mxu0 0.0
      %3552 = vmatpush1.msra.mxu0 0.0
      %3553 = vmatprep.subr.mxu0 0.0
      %3554 = vmatpush1.msra.mxu0 0.0
      %3555 = vmatprep.subr.mxu0 0.0
      %3556 = vmatpush1.msra.mxu0 0.0
      %3557 = vmatprep.subr.mxu0 0.0
      %3558 = vmatpush1.msra.mxu0 0.0
      %3559 = vmatprep.subr.mxu0 0.0
      %3560 = vmatpush1.msra.mxu0 0.0
      %3561 = vmatprep.subr.mxu0 0.0
      %3562 = vmatpush1.msra.mxu0 0.0
      %3563 = vmatprep.subr.mxu0 0.0
      %3564 = vmatpush1.msra.mxu0 0.0
      %3565 = vmatprep.mubr.f32.mxu0 0.0
      %3566 = vmatmul.mubr.f32.gmra.mrb[0].mxu0 %v3493
      %v3567 = vpop.f32.mrb[0].mxu0
      %v3568 = vadd.f32 %v3491, %v3567
      %v3569 = vpop.f32.mrb[0].mxu0
      %3570 = vmatprep.mubr.f32.mxu0 0.0
      %3571 = vmatmul.mubr.f32.gmra.mrb[0].mxu0 %v3496
      %v3572 = vpop.f32.mrb[0].mxu0
      %v3573 = vadd.f32 %v3491, %v3572
      %v3574 = vpop.f32.mrb[0].mxu0
      %3575 = vmatprep.mubr.f32.mxu0 0.0
      %3576 = vmatmul.mubr.f32.gmra.mrb[0].mxu0 %v3499
      %v3577 = vpop.f32.mrb[0].mxu0
      %v3578 = vadd.f32 %v3491, %v3577
      %v3579 = vpop.f32.mrb[0].mxu0
      %3580 = vdwg.mxu0
      %v3581 = vadd.f32 %v3248, %v3568
      %v3582 = vadd.f32 %v3249, %v3573
      %v3583 = vadd.f32 %v3250, %v3578
      %v3584 = vld [vmem:[%s6] sm:$0xff]
      %v3585 = vld [vmem:[%s6 + $0x8] sm:$0xff]
      %v3586 = vld [vmem:[%s7] sm:$0xff]
      %v3587 = vld [vmem:[%s7 + $0x8] sm:$0xff]
      %v3588 = vld [vmem:[%s7 + $0x10] sm:$0xff]
      %v3589 = vld [vmem:[%s7 + $0x18] sm:$0xff]
      %3591 = vset.pattern.permute.xlu0 17
      %3592 = vperm.xlu0 %3591, %v3584
      %v3593 = vpop.permute.xlu0 %3592
      %3596 = vset.pattern.permute.xlu0 17
      %3597 = vperm.xlu0 %3596, %v3585
      %v3598 = vpop.permute.xlu0 %3597
      %v3600 = vsel %vm667, %v3584, 0
      %v3602 = vsel %vm667, %v3585, 0
      %v3605 = vsel %vm719, %v3583, 0
      %3607 = vmatprep.subr.mxu0 0.0
      %3608 = vmatpush1.msra.mxu0 %v3581
      %3609 = vmatprep.subr.mxu0 0.0
      %3610 = vmatpush1.msra.mxu0 %v3582
      %3611 = vmatprep.subr.mxu0 0.0
      %3612 = vmatpush1.msra.mxu0 %v3605
      %3613 = vmatprep.subr.mxu0 0.0
      %3614 = vmatpush1.msra.mxu0 0.0
      %3615 = vmatprep.subr.mxu0 0.0
      %3616 = vmatpush1.msra.mxu0 0.0
      %3617 = vmatprep.subr.mxu0 0.0
      %3618 = vmatpush1.msra.mxu0 0.0
      %3619 = vmatprep.subr.mxu0 0.0
      %3620 = vmatpush1.msra.mxu0 0.0
      %3621 = vmatprep.subr.mxu0 0.0
      %3622 = vmatpush1.msra.mxu0 0.0
      %3623 = vmatprep.subr.mxu0 0.0
      %3624 = vmatpush1.msra.mxu0 0.0
      %3625 = vmatprep.subr.mxu0 0.0
      %3626 = vmatpush1.msra.mxu0 0.0
      %3627 = vmatprep.subr.mxu0 0.0
      %3628 = vmatpush1.msra.mxu0 0.0
      %3629 = vmatprep.subr.mxu0 0.0
      %3630 = vmatpush1.msra.mxu0 0.0
      %3631 = vmatprep.subr.mxu0 0.0
      %3632 = vmatpush1.msra.mxu0 0.0
      %3633 = vmatprep.subr.mxu0 0.0
      %3634 = vmatpush1.msra.mxu0 0.0
      %3635 = vmatprep.subr.mxu0 0.0
      %3636 = vmatpush1.msra.mxu0 0.0
      %3637 = vmatprep.subr.mxu0 0.0
      %3638 = vmatpush1.msra.mxu0 0.0
      %3639 = vmatprep.subr.mxu0 0.0
      %3640 = vmatpush1.msra.mxu0 0.0
      %3641 = vmatprep.subr.mxu0 0.0
      %3642 = vmatpush1.msra.mxu0 0.0
      %3643 = vmatprep.subr.mxu0 0.0
      %3644 = vmatpush1.msra.mxu0 0.0
      %3645 = vmatprep.subr.mxu0 0.0
      %3646 = vmatpush1.msra.mxu0 0.0
      %3647 = vmatprep.subr.mxu0 0.0
      %3648 = vmatpush1.msra.mxu0 0.0
      %3649 = vmatprep.subr.mxu0 0.0
      %3650 = vmatpush1.msra.mxu0 0.0
      %3651 = vmatprep.subr.mxu0 0.0
      %3652 = vmatpush1.msra.mxu0 0.0
      %3653 = vmatprep.subr.mxu0 0.0
      %3654 = vmatpush1.msra.mxu0 0.0
      %3655 = vmatprep.subr.mxu0 0.0
      %3656 = vmatpush1.msra.mxu0 0.0
      %3657 = vmatprep.subr.mxu0 0.0
      %3658 = vmatpush1.msra.mxu0 0.0
      %3659 = vmatprep.subr.mxu0 0.0
      %3660 = vmatpush1.msra.mxu0 0.0
      %3661 = vmatprep.subr.mxu0 0.0
      %3662 = vmatpush1.msra.mxu0 0.0
      %3663 = vmatprep.subr.mxu0 0.0
      %3664 = vmatpush1.msra.mxu0 0.0
      %3665 = vmatprep.subr.mxu0 0.0
      %3666 = vmatpush1.msra.mxu0 0.0
      %3667 = vmatprep.subr.mxu0 0.0
      %3668 = vmatpush1.msra.mxu0 0.0
      %3669 = vmatprep.subr.mxu0 0.0
      %3670 = vmatpush1.msra.mxu0 0.0
      %3671 = vmatprep.mubr.f32.mxu0 0.0
      %3672 = vmatmul.mubr.f32.gmra.mrb[0].mxu0 %v3600
      %v3673 = vpop.f32.mrb[0].mxu0
      %v3674 = vadd.f32 %v3593, %v3673
      %v3675 = vpop.f32.mrb[0].mxu0
      %3676 = vmatprep.mubr.f32.mxu0 0.0
      %3677 = vmatmul.mubr.f32.gmra.mrb[0].mxu0 %v3602
      %v3678 = vpop.f32.mrb[0].mxu0
      %v3679 = vadd.f32 %v3598, %v3678
      %v3680 = vpop.f32.mrb[0].mxu0
      %3681 = vdwg.mxu0
      %v3683 = vrot.slane %v307, 6
      %v3684 = vsel %vm1558, %v3683, 0
      %3686 = vmatprep.subr.mxu0 0.0
      %3687 = vmatpush1.msra.mxu0 %v3674
      %3688 = vmatprep.subr.mxu0 0.0
      %3689 = vmatpush1.msra.mxu0 %v3679
      %3690 = vmatprep.subr.mxu0 0.0
      %3691 = vmatpush1.msra.mxu0 0.0
      %3692 = vmatprep.subr.mxu0 0.0
      %3693 = vmatpush1.msra.mxu0 0.0
      %3694 = vmatprep.subr.mxu0 0.0
      %3695 = vmatpush1.msra.mxu0 0.0
      %3696 = vmatprep.subr.mxu0 0.0
      %3697 = vmatpush1.msra.mxu0 0.0
      %3698 = vmatprep.subr.mxu0 0.0
      %3699 = vmatpush1.msra.mxu0 0.0
      %3700 = vmatprep.subr.mxu0 0.0
      %3701 = vmatpush1.msra.mxu0 0.0
      %3702 = vmatprep.subr.mxu0 0.0
      %3703 = vmatpush1.msra.mxu0 0.0
      %3704 = vmatprep.subr.mxu0 0.0
      %3705 = vmatpush1.msra.mxu0 0.0
      %3706 = vmatprep.subr.mxu0 0.0
      %3707 = vmatpush1.msra.mxu0 0.0
      %3708 = vmatprep.subr.mxu0 0.0
      %3709 = vmatpush1.msra.mxu0 0.0
      %3710 = vmatprep.subr.mxu0 0.0
      %3711 = vmatpush1.msra.mxu0 0.0
      %3712 = vmatprep.subr.mxu0 0.0
      %3713 = vmatpush1.msra.mxu0 0.0
      %3714 = vmatprep.subr.mxu0 0.0
      %3715 = vmatpush1.msra.mxu0 0.0
      %3716 = vmatprep.subr.mxu0 0.0
      %3717 = vmatpush1.msra.mxu0 0.0
      %3718 = vmatprep.subr.mxu0 0.0
      %3719 = vmatpush1.msra.mxu0 0.0
      %3720 = vmatprep.subr.mxu0 0.0
      %3721 = vmatpush1.msra.mxu0 0.0
      %3722 = vmatprep.subr.mxu0 0.0
      %3723 = vmatpush1.msra.mxu0 0.0
      %3724 = vmatprep.subr.mxu0 0.0
      %3725 = vmatpush1.msra.mxu0 0.0
      %3726 = vmatprep.subr.mxu0 0.0
      %3727 = vmatpush1.msra.mxu0 0.0
      %3728 = vmatprep.subr.mxu0 0.0
      %3729 = vmatpush1.msra.mxu0 0.0
      %3730 = vmatprep.subr.mxu0 0.0
      %3731 = vmatpush1.msra.mxu0 0.0
      %3732 = vmatprep.subr.mxu0 0.0
      %3733 = vmatpush1.msra.mxu0 0.0
      %3734 = vmatprep.subr.mxu0 0.0
      %3735 = vmatpush1.msra.mxu0 0.0
      %3736 = vmatprep.subr.mxu0 0.0
      %3737 = vmatpush1.msra.mxu0 0.0
      %3738 = vmatprep.subr.mxu0 0.0
      %3739 = vmatpush1.msra.mxu0 0.0
      %3740 = vmatprep.subr.mxu0 0.0
      %3741 = vmatpush1.msra.mxu0 0.0
      %3742 = vmatprep.subr.mxu0 0.0
      %3743 = vmatpush1.msra.mxu0 0.0
      %3744 = vmatprep.subr.mxu0 0.0
      %3745 = vmatpush1.msra.mxu0 0.0
      %3746 = vmatprep.subr.mxu0 0.0
      %3747 = vmatpush1.msra.mxu0 0.0
      %3748 = vmatprep.subr.mxu0 0.0
      %3749 = vmatpush1.msra.mxu0 0.0
      %3750 = vmatprep.mubr.f32.mxu0 0.0
      %3751 = vmatmul.mubr.f32.gmra.mrb[0].mxu0 %v3684
      %v3752 = vpop.f32.mrb[0].mxu0
      %v3753 = vadd.f32 0.0, %v3752
      %v3754 = vpop.f32.mrb[0].mxu0
      %3755 = vdwg.mxu0
      %v3756 = vlaneseq
      %v3757 = vshrl.u32 %v3756, 7
      %v3758 = vsub.s32 7, %v3757
      %v3759 = vrot.slane %v307, %v3758
      %v3761 = vsel %vm413, %v3674, 0
      %v3764 = vsel %vm413, %v3679, 0
      %3766 = vmatprep.subr.mxu0 0.0
      %3767 = vmatpush1.msra.mxu0 %v3586
      %3768 = vmatprep.subr.mxu0 0.0
      %3769 = vmatpush1.msra.mxu0 %v3587
      %3770 = vmatprep.subr.mxu0 0.0
      %3771 = vmatpush1.msra.mxu0 %v3588
      %3772 = vmatprep.subr.mxu0 0.0
      %3773 = vmatpush1.msra.mxu0 %v3589
      %3774 = vmatprep.subr.mxu0 0.0
      %3775 = vmatpush1.msra.mxu0 0.0
      %3776 = vmatprep.subr.mxu0 0.0
      %3777 = vmatpush1.msra.mxu0 0.0
      %3778 = vmatprep.subr.mxu0 0.0
      %3779 = vmatpush1.msra.mxu0 0.0
      %3780 = vmatprep.subr.mxu0 0.0
      %3781 = vmatpush1.msra.mxu0 0.0
      %3782 = vmatprep.subr.mxu0 0.0
      %3783 = vmatpush1.msra.mxu0 0.0
      %3784 = vmatprep.subr.mxu0 0.0
      %3785 = vmatpush1.msra.mxu0 0.0
      %3786 = vmatprep.subr.mxu0 0.0
      %3787 = vmatpush1.msra.mxu0 0.0
      %3788 = vmatprep.subr.mxu0 0.0
      %3789 = vmatpush1.msra.mxu0 0.0
      %3790 = vmatprep.subr.mxu0 0.0
      %3791 = vmatpush1.msra.mxu0 0.0
      %3792 = vmatprep.subr.mxu0 0.0
      %3793 = vmatpush1.msra.mxu0 0.0
      %3794 = vmatprep.subr.mxu0 0.0
      %3795 = vmatpush1.msra.mxu0 0.0
      %3796 = vmatprep.subr.mxu0 0.0
      %3797 = vmatpush1.msra.mxu0 0.0
      %3798 = vmatprep.subr.mxu0 0.0
      %3799 = vmatpush1.msra.mxu0 0.0
      %3800 = vmatprep.subr.mxu0 0.0
      %3801 = vmatpush1.msra.mxu0 0.0
      %3802 = vmatprep.subr.mxu0 0.0
      %3803 = vmatpush1.msra.mxu0 0.0
      %3804 = vmatprep.subr.mxu0 0.0
      %3805 = vmatpush1.msra.mxu0 0.0
      %3806 = vmatprep.subr.mxu0 0.0
      %3807 = vmatpush1.msra.mxu0 0.0
      %3808 = vmatprep.subr.mxu0 0.0
      %3809 = vmatpush1.msra.mxu0 0.0
      %3810 = vmatprep.subr.mxu0 0.0
      %3811 = vmatpush1.msra.mxu0 0.0
      %3812 = vmatprep.subr.mxu0 0.0
      %3813 = vmatpush1.msra.mxu0 0.0
      %3814 = vmatprep.subr.mxu0 0.0
      %3815 = vmatpush1.msra.mxu0 0.0
      %3816 = vmatprep.subr.mxu0 0.0
      %3817 = vmatpush1.msra.mxu0 0.0
      %3818 = vmatprep.subr.mxu0 0.0
      %3819 = vmatpush1.msra.mxu0 0.0
      %3820 = vmatprep.subr.mxu0 0.0
      %3821 = vmatpush1.msra.mxu0 0.0
      %3822 = vmatprep.subr.mxu0 0.0
      %3823 = vmatpush1.msra.mxu0 0.0
      %3824 = vmatprep.subr.mxu0 0.0
      %3825 = vmatpush1.msra.mxu0 0.0
      %3826 = vmatprep.subr.mxu0 0.0
      %3827 = vmatpush1.msra.mxu0 0.0
      %3828 = vmatprep.subr.mxu0 0.0
      %3829 = vmatpush1.msra.mxu0 0.0
      %3830 = vmatprep.mubr.f32.mxu0 0.0
      %3831 = vmatmul.mubr.f32.gmra.mrb[0].mxu0 %v3761
      %v3832 = vpop.f32.mrb[0].mxu0
      %v3833 = vadd.f32 %v3759, %v3832
      %v3834 = vpop.f32.mrb[0].mxu0
      %3835 = vmatprep.mubr.f32.mxu0 0.0
      %3836 = vmatmul.mubr.f32.gmra.mrb[0].mxu0 %v3764
      %v3837 = vpop.f32.mrb[0].mxu0
      %v3838 = vadd.f32 %v3759, %v3837
      %v3839 = vpop.f32.mrb[0].mxu0
      %3840 = vdwg.mxu0
      %v3841 = vlaneseq
      %v3842 = vshrl.u32 %v3841, 7
      %v3843 = vsub.s32 0, %v3842
      %v3844 = vrot.slane %v3753, %v3843
      %v3845 = vadd.f32 %v3833, %v3844
      %v3846 = vadd.f32 %v3838, %v3844
      %v3847 = vsel %vm413, %v3845, 0.0
      %3848 = vadd.xlane.f32.xlu0 %v3847
      %v3849 = vpop.xlane.xlu0 %3848
      %v3850 = vsel %vm413, %v3846, 0.0
      %3851 = vadd.xlane.f32.xlu0 %v3850
      %v3852 = vpop.xlane.xlu0 %3851
      %v3853 = vmul.f32 %v3849, %v424
      %v3854 = vmul.f32 %v3852, %v424
      %v3855 = vsub.f32 %v3845, %v3853
      %v3856 = vsub.f32 %v3846, %v3854
      %v3857 = vmul.f32 %v3855, %v3855
      %v3858 = vmul.f32 %v3856, %v3856
      %v3859 = vsel %vm413, %v3857, 0.0
      %3860 = vadd.xlane.f32.xlu0 %v3859
      %v3861 = vpop.xlane.xlu0 %3860
      %v3862 = vsel %vm413, %v3858, 0.0
      %3863 = vadd.xlane.f32.xlu0 %v3862
      %v3864 = vpop.xlane.xlu0 %3863
      %v3865 = vmul.f32 %v3861, %v424
      %v3866 = vmul.f32 %v3864, %v424
      %v3867 = vadd.f32 %v3865, 1e-05
      %v3868 = vadd.f32 %v3866, 1e-05
      %v3869 = vrsqrt.pop %v3867
      %v3870 = vrsqrt.pop %v3868
      %v3871 = vmul.f32 %v3855, %v3869
      %v3872 = vmul.f32 %v3856, %v3870
      %v3873 = vlaneseq
      %v3874 = vshrl.u32 %v3873, 7
      %v3875 = vsub.s32 0, %v3874
      %v3876 = vrot.slane %v308, %v3875
      %v3877 = vmul.f32 %v3871, %v3876
      %v3878 = vmul.f32 %v3872, %v3876
      %v3879 = vlaneseq
      %v3880 = vshrl.u32 %v3879, 7
      %v3881 = vsub.s32 1, %v3880
      %v3882 = vrot.slane %v308, %v3881
      %v3883 = vadd.f32 %v3877, %v3882
      %v3884 = vadd.f32 %v3878, %v3882
      %s3885 = scalar_lea.vmem %s7, 32
      %v3886 = vld [vmem:[%s3885] sm:$0xff]
      %v3887 = vld [vmem:[%s3885 + $0x8] sm:$0xff]
      %v3888 = vld [vmem:[%s3885 + $0x10] sm:$0xff]
      %v3889 = vld [vmem:[%s3885 + $0x18] sm:$0xff]
      %v3891 = vsel %vm413, %v3883, 0
      %v3894 = vsel %vm413, %v3884, 0
      %3896 = vmatprep.subr.mxu0 0.0
      %3897 = vmatpush1.msra.mxu0 %v3886
      %3898 = vmatprep.subr.mxu0 0.0
      %3899 = vmatpush1.msra.mxu0 %v3887
      %3900 = vmatprep.subr.mxu0 0.0
      %3901 = vmatpush1.msra.mxu0 %v3888
      %3902 = vmatprep.subr.mxu0 0.0
      %3903 = vmatpush1.msra.mxu0 %v3889
      %3904 = vmatprep.subr.mxu0 0.0
      %3905 = vmatpush1.msra.mxu0 0.0
      %3906 = vmatprep.subr.mxu0 0.0
      %3907 = vmatpush1.msra.mxu0 0.0
      %3908 = vmatprep.subr.mxu0 0.0
      %3909 = vmatpush1.msra.mxu0 0.0
      %3910 = vmatprep.subr.mxu0 0.0
      %3911 = vmatpush1.msra.mxu0 0.0
      %3912 = vmatprep.subr.mxu0 0.0
      %3913 = vmatpush1.msra.mxu0 0.0
      %3914 = vmatprep.subr.mxu0 0.0
      %3915 = vmatpush1.msra.mxu0 0.0
      %3916 = vmatprep.subr.mxu0 0.0
      %3917 = vmatpush1.msra.mxu0 0.0
      %3918 = vmatprep.subr.mxu0 0.0
      %3919 = vmatpush1.msra.mxu0 0.0
      %3920 = vmatprep.subr.mxu0 0.0
      %3921 = vmatpush1.msra.mxu0 0.0
      %3922 = vmatprep.subr.mxu0 0.0
      %3923 = vmatpush1.msra.mxu0 0.0
      %3924 = vmatprep.subr.mxu0 0.0
      %3925 = vmatpush1.msra.mxu0 0.0
      %3926 = vmatprep.subr.mxu0 0.0
      %3927 = vmatpush1.msra.mxu0 0.0
      %3928 = vmatprep.subr.mxu0 0.0
      %3929 = vmatpush1.msra.mxu0 0.0
      %3930 = vmatprep.subr.mxu0 0.0
      %3931 = vmatpush1.msra.mxu0 0.0
      %3932 = vmatprep.subr.mxu0 0.0
      %3933 = vmatpush1.msra.mxu0 0.0
      %3934 = vmatprep.subr.mxu0 0.0
      %3935 = vmatpush1.msra.mxu0 0.0
      %3936 = vmatprep.subr.mxu0 0.0
      %3937 = vmatpush1.msra.mxu0 0.0
      %3938 = vmatprep.subr.mxu0 0.0
      %3939 = vmatpush1.msra.mxu0 0.0
      %3940 = vmatprep.subr.mxu0 0.0
      %3941 = vmatpush1.msra.mxu0 0.0
      %3942 = vmatprep.subr.mxu0 0.0
      %3943 = vmatpush1.msra.mxu0 0.0
      %3944 = vmatprep.subr.mxu0 0.0
      %3945 = vmatpush1.msra.mxu0 0.0
      %3946 = vmatprep.subr.mxu0 0.0
      %3947 = vmatpush1.msra.mxu0 0.0
      %3948 = vmatprep.subr.mxu0 0.0
      %3949 = vmatpush1.msra.mxu0 0.0
      %3950 = vmatprep.subr.mxu0 0.0
      %3951 = vmatpush1.msra.mxu0 0.0
      %3952 = vmatprep.subr.mxu0 0.0
      %3953 = vmatpush1.msra.mxu0 0.0
      %3954 = vmatprep.subr.mxu0 0.0
      %3955 = vmatpush1.msra.mxu0 0.0
      %3956 = vmatprep.subr.mxu0 0.0
      %3957 = vmatpush1.msra.mxu0 0.0
      %3958 = vmatprep.subr.mxu0 0.0
      %3959 = vmatpush1.msra.mxu0 0.0
      %3960 = vmatprep.mubr.f32.mxu0 0.0
      %3961 = vmatmul.mubr.f32.gmra.mrb[0].mxu0 %v3891
      %v3962 = vpop.f32.mrb[0].mxu0
      %v3963 = vadd.f32 0.0, %v3962
      %v3964 = vpop.f32.mrb[0].mxu0
      %3965 = vmatprep.mubr.f32.mxu0 0.0
      %3966 = vmatmul.mubr.f32.gmra.mrb[0].mxu0 %v3894
      %v3967 = vpop.f32.mrb[0].mxu0
      %v3968 = vadd.f32 0.0, %v3967
      %v3969 = vpop.f32.mrb[0].mxu0
      %3970 = vdwg.mxu0
      %s3971 = scalar_lea.vmem %s7, 64
      %v3972 = vld [vmem:[%s3971] sm:$0xff]
      %v3973 = vld [vmem:[%s3971 + $0x8] sm:$0xff]
      %v3974 = vld [vmem:[%s3971 + $0x10] sm:$0xff]
      %v3975 = vld [vmem:[%s3971 + $0x18] sm:$0xff]
      %v3976 = vlaneseq
      %v3977 = vshrl.u32 %v3976, 7
      %v3978 = vsub.s32 2, %v3977
      %v3979 = vrot.slane %v308, %v3978
      %v3981 = vsel %vm413, %v3963, 0
      %v3984 = vsel %vm413, %v3968, 0
      %3986 = vmatprep.subr.mxu0 0.0
      %3987 = vmatpush1.msra.mxu0 %v3972
      %3988 = vmatprep.subr.mxu0 0.0
      %3989 = vmatpush1.msra.mxu0 %v3973
      %3990 = vmatprep.subr.mxu0 0.0
      %3991 = vmatpush1.msra.mxu0 %v3974
      %3992 = vmatprep.subr.mxu0 0.0
      %3993 = vmatpush1.msra.mxu0 %v3975
      %3994 = vmatprep.subr.mxu0 0.0
      %3995 = vmatpush1.msra.mxu0 0.0
      %3996 = vmatprep.subr.mxu0 0.0
      %3997 = vmatpush1.msra.mxu0 0.0
      %3998 = vmatprep.subr.mxu0 0.0
      %3999 = vmatpush1.msra.mxu0 0.0
      %4000 = vmatprep.subr.mxu0 0.0
      %4001 = vmatpush1.msra.mxu0 0.0
      %4002 = vmatprep.subr.mxu0 0.0
      %4003 = vmatpush1.msra.mxu0 0.0
      %4004 = vmatprep.subr.mxu0 0.0
      %4005 = vmatpush1.msra.mxu0 0.0
      %4006 = vmatprep.subr.mxu0 0.0
      %4007 = vmatpush1.msra.mxu0 0.0
      %4008 = vmatprep.subr.mxu0 0.0
      %4009 = vmatpush1.msra.mxu0 0.0
      %4010 = vmatprep.subr.mxu0 0.0
      %4011 = vmatpush1.msra.mxu0 0.0
      %4012 = vmatprep.subr.mxu0 0.0
      %4013 = vmatpush1.msra.mxu0 0.0
      %4014 = vmatprep.subr.mxu0 0.0
      %4015 = vmatpush1.msra.mxu0 0.0
      %4016 = vmatprep.subr.mxu0 0.0
      %4017 = vmatpush1.msra.mxu0 0.0
      %4018 = vmatprep.subr.mxu0 0.0
      %4019 = vmatpush1.msra.mxu0 0.0
      %4020 = vmatprep.subr.mxu0 0.0
      %4021 = vmatpush1.msra.mxu0 0.0
      %4022 = vmatprep.subr.mxu0 0.0
      %4023 = vmatpush1.msra.mxu0 0.0
      %4024 = vmatprep.subr.mxu0 0.0
      %4025 = vmatpush1.msra.mxu0 0.0
      %4026 = vmatprep.subr.mxu0 0.0
      %4027 = vmatpush1.msra.mxu0 0.0
      %4028 = vmatprep.subr.mxu0 0.0
      %4029 = vmatpush1.msra.mxu0 0.0
      %4030 = vmatprep.subr.mxu0 0.0
      %4031 = vmatpush1.msra.mxu0 0.0
      %4032 = vmatprep.subr.mxu0 0.0
      %4033 = vmatpush1.msra.mxu0 0.0
      %4034 = vmatprep.subr.mxu0 0.0
      %4035 = vmatpush1.msra.mxu0 0.0
      %4036 = vmatprep.subr.mxu0 0.0
      %4037 = vmatpush1.msra.mxu0 0.0
      %4038 = vmatprep.subr.mxu0 0.0
      %4039 = vmatpush1.msra.mxu0 0.0
      %4040 = vmatprep.subr.mxu0 0.0
      %4041 = vmatpush1.msra.mxu0 0.0
      %4042 = vmatprep.subr.mxu0 0.0
      %4043 = vmatpush1.msra.mxu0 0.0
      %4044 = vmatprep.subr.mxu0 0.0
      %4045 = vmatpush1.msra.mxu0 0.0
      %4046 = vmatprep.subr.mxu0 0.0
      %4047 = vmatpush1.msra.mxu0 0.0
      %4048 = vmatprep.subr.mxu0 0.0
      %4049 = vmatpush1.msra.mxu0 0.0
      %4050 = vmatprep.mubr.f32.mxu0 0.0
      %4051 = vmatmul.mubr.f32.gmra.mrb[0].mxu0 %v3981
      %v4052 = vpop.f32.mrb[0].mxu0
      %v4053 = vadd.f32 %v3979, %v4052
      %v4054 = vpop.f32.mrb[0].mxu0
      %4055 = vmatprep.mubr.f32.mxu0 0.0
      %4056 = vmatmul.mubr.f32.gmra.mrb[0].mxu0 %v3984
      %v4057 = vpop.f32.mrb[0].mxu0
      %v4058 = vadd.f32 %v3979, %v4057
      %v4059 = vpop.f32.mrb[0].mxu0
      %4060 = vdwg.mxu0
      %v4061 = vadd.f32 %v4053, %v3845
      %v4062 = vadd.f32 %v4058, %v3846
      %v4063 = vsel %vm413, %v4061, 0.0
      %4064 = vadd.xlane.f32.xlu0 %v4063
      %v4065 = vpop.xlane.xlu0 %4064
      %v4066 = vsel %vm413, %v4062, 0.0
      %4067 = vadd.xlane.f32.xlu0 %v4066
      %v4068 = vpop.xlane.xlu0 %4067
      %v4069 = vmul.f32 %v4065, %v424
      %v4070 = vmul.f32 %v4068, %v424
      %v4071 = vsub.f32 %v4061, %v4069
      %v4072 = vsub.f32 %v4062, %v4070
      %v4073 = vmul.f32 %v4071, %v4071
      %v4074 = vmul.f32 %v4072, %v4072
      %v4075 = vsel %vm413, %v4073, 0.0
      %4076 = vadd.xlane.f32.xlu0 %v4075
      %v4077 = vpop.xlane.xlu0 %4076
      %v4078 = vsel %vm413, %v4074, 0.0
      %4079 = vadd.xlane.f32.xlu0 %v4078
      %v4080 = vpop.xlane.xlu0 %4079
      %v4081 = vmul.f32 %v4077, %v424
      %v4082 = vmul.f32 %v4080, %v424
      %v4083 = vadd.f32 %v4081, 1e-05
      %v4084 = vadd.f32 %v4082, 1e-05
      %v4085 = vrsqrt.pop %v4083
      %v4086 = vrsqrt.pop %v4084
      %v4087 = vmul.f32 %v4071, %v4085
      %v4088 = vmul.f32 %v4072, %v4086
      %v4089 = vlaneseq
      %v4090 = vshrl.u32 %v4089, 7
      %v4091 = vsub.s32 3, %v4090
      %v4092 = vrot.slane %v308, %v4091
      %v4093 = vmul.f32 %v4087, %v4092
      %v4094 = vmul.f32 %v4088, %v4092
      %v4095 = vlaneseq
      %v4096 = vshrl.u32 %v4095, 7
      %v4097 = vsub.s32 4, %v4096
      %v4098 = vrot.slane %v308, %v4097
      %v4099 = vadd.f32 %v4093, %v4098
      %v4100 = vadd.f32 %v4094, %v4098
      %s4101 = scalar_lea.vmem %s7, 96
      %v4102 = vld [vmem:[%s4101] sm:$0xff]
      %v4103 = vld [vmem:[%s4101 + $0x8] sm:$0xff]
      %v4104 = vld [vmem:[%s4101 + $0x10] sm:$0xff]
      %v4105 = vld [vmem:[%s4101 + $0x18] sm:$0xff]
      %v4106 = vlaneseq
      %v4107 = vshrl.u32 %v4106, 7
      %v4108 = vsub.s32 5, %v4107
      %v4109 = vrot.slane %v308, %v4108
      %v4111 = vsel %vm413, %v4099, 0
      %v4114 = vsel %vm413, %v4100, 0
      %4116 = vmatprep.subr.mxu0 0.0
      %4117 = vmatpush1.msra.mxu0 %v4102
      %4118 = vmatprep.subr.mxu0 0.0
      %4119 = vmatpush1.msra.mxu0 %v4103
      %4120 = vmatprep.subr.mxu0 0.0
      %4121 = vmatpush1.msra.mxu0 %v4104
      %4122 = vmatprep.subr.mxu0 0.0
      %4123 = vmatpush1.msra.mxu0 %v4105
      %4124 = vmatprep.subr.mxu0 0.0
      %4125 = vmatpush1.msra.mxu0 0.0
      %4126 = vmatprep.subr.mxu0 0.0
      %4127 = vmatpush1.msra.mxu0 0.0
      %4128 = vmatprep.subr.mxu0 0.0
      %4129 = vmatpush1.msra.mxu0 0.0
      %4130 = vmatprep.subr.mxu0 0.0
      %4131 = vmatpush1.msra.mxu0 0.0
      %4132 = vmatprep.subr.mxu0 0.0
      %4133 = vmatpush1.msra.mxu0 0.0
      %4134 = vmatprep.subr.mxu0 0.0
      %4135 = vmatpush1.msra.mxu0 0.0
      %4136 = vmatprep.subr.mxu0 0.0
      %4137 = vmatpush1.msra.mxu0 0.0
      %4138 = vmatprep.subr.mxu0 0.0
      %4139 = vmatpush1.msra.mxu0 0.0
      %4140 = vmatprep.subr.mxu0 0.0
      %4141 = vmatpush1.msra.mxu0 0.0
      %4142 = vmatprep.subr.mxu0 0.0
      %4143 = vmatpush1.msra.mxu0 0.0
      %4144 = vmatprep.subr.mxu0 0.0
      %4145 = vmatpush1.msra.mxu0 0.0
      %4146 = vmatprep.subr.mxu0 0.0
      %4147 = vmatpush1.msra.mxu0 0.0
      %4148 = vmatprep.subr.mxu0 0.0
      %4149 = vmatpush1.msra.mxu0 0.0
      %4150 = vmatprep.subr.mxu0 0.0
      %4151 = vmatpush1.msra.mxu0 0.0
      %4152 = vmatprep.subr.mxu0 0.0
      %4153 = vmatpush1.msra.mxu0 0.0
      %4154 = vmatprep.subr.mxu0 0.0
      %4155 = vmatpush1.msra.mxu0 0.0
      %4156 = vmatprep.subr.mxu0 0.0
      %4157 = vmatpush1.msra.mxu0 0.0
      %4158 = vmatprep.subr.mxu0 0.0
      %4159 = vmatpush1.msra.mxu0 0.0
      %4160 = vmatprep.subr.mxu0 0.0
      %4161 = vmatpush1.msra.mxu0 0.0
      %4162 = vmatprep.subr.mxu0 0.0
      %4163 = vmatpush1.msra.mxu0 0.0
      %4164 = vmatprep.subr.mxu0 0.0
      %4165 = vmatpush1.msra.mxu0 0.0
      %4166 = vmatprep.subr.mxu0 0.0
      %4167 = vmatpush1.msra.mxu0 0.0
      %4168 = vmatprep.subr.mxu0 0.0
      %4169 = vmatpush1.msra.mxu0 0.0
      %4170 = vmatprep.subr.mxu0 0.0
      %4171 = vmatpush1.msra.mxu0 0.0
      %4172 = vmatprep.subr.mxu0 0.0
      %4173 = vmatpush1.msra.mxu0 0.0
      %4174 = vmatprep.subr.mxu0 0.0
      %4175 = vmatpush1.msra.mxu0 0.0
      %4176 = vmatprep.subr.mxu0 0.0
      %4177 = vmatpush1.msra.mxu0 0.0
      %4178 = vmatprep.subr.mxu0 0.0
      %4179 = vmatpush1.msra.mxu0 0.0
      %4180 = vmatprep.mubr.f32.mxu0 0.0
      %4181 = vmatmul.mubr.f32.gmra.mrb[0].mxu0 %v4111
      %v4182 = vpop.f32.mrb[0].mxu0
      %v4183 = vadd.f32 %v4109, %v4182
      %v4184 = vpop.f32.mrb[0].mxu0
      %4185 = vmatprep.mubr.f32.mxu0 0.0
      %4186 = vmatmul.mubr.f32.gmra.mrb[0].mxu0 %v4114
      %v4187 = vpop.f32.mrb[0].mxu0
      %v4188 = vadd.f32 %v4109, %v4187
      %v4189 = vpop.f32.mrb[0].mxu0
      %4190 = vdwg.mxu0
      %v4191 = vtanh.pop %v4183
      %v4192 = vtanh.pop %v4188
      %s4193 = scalar_lea.vmem %s7, 128
      %v4194 = vld [vmem:[%s4193] sm:$0xff]
      %v4195 = vld [vmem:[%s4193 + $0x8] sm:$0xff]
      %v4196 = vld [vmem:[%s4193 + $0x10] sm:$0xff]
      %v4197 = vld [vmem:[%s4193 + $0x18] sm:$0xff]
      %v4198 = vlaneseq
      %v4199 = vshrl.u32 %v4198, 7
      %v4200 = vsub.s32 6, %v4199
      %v4201 = vrot.slane %v308, %v4200
      %v4203 = vsel %vm413, %v4191, 0
      %v4206 = vsel %vm413, %v4192, 0
      %4208 = vmatprep.subr.mxu0 0.0
      %4209 = vmatpush1.msra.mxu0 %v4194
      %4210 = vmatprep.subr.mxu0 0.0
      %4211 = vmatpush1.msra.mxu0 %v4195
      %4212 = vmatprep.subr.mxu0 0.0
      %4213 = vmatpush1.msra.mxu0 %v4196
      %4214 = vmatprep.subr.mxu0 0.0
      %4215 = vmatpush1.msra.mxu0 %v4197
      %4216 = vmatprep.subr.mxu0 0.0
      %4217 = vmatpush1.msra.mxu0 0.0
      %4218 = vmatprep.subr.mxu0 0.0
      %4219 = vmatpush1.msra.mxu0 0.0
      %4220 = vmatprep.subr.mxu0 0.0
      %4221 = vmatpush1.msra.mxu0 0.0
      %4222 = vmatprep.subr.mxu0 0.0
      %4223 = vmatpush1.msra.mxu0 0.0
      %4224 = vmatprep.subr.mxu0 0.0
      %4225 = vmatpush1.msra.mxu0 0.0
      %4226 = vmatprep.subr.mxu0 0.0
      %4227 = vmatpush1.msra.mxu0 0.0
      %4228 = vmatprep.subr.mxu0 0.0
      %4229 = vmatpush1.msra.mxu0 0.0
      %4230 = vmatprep.subr.mxu0 0.0
      %4231 = vmatpush1.msra.mxu0 0.0
      %4232 = vmatprep.subr.mxu0 0.0
      %4233 = vmatpush1.msra.mxu0 0.0
      %4234 = vmatprep.subr.mxu0 0.0
      %4235 = vmatpush1.msra.mxu0 0.0
      %4236 = vmatprep.subr.mxu0 0.0
      %4237 = vmatpush1.msra.mxu0 0.0
      %4238 = vmatprep.subr.mxu0 0.0
      %4239 = vmatpush1.msra.mxu0 0.0
      %4240 = vmatprep.subr.mxu0 0.0
      %4241 = vmatpush1.msra.mxu0 0.0
      %4242 = vmatprep.subr.mxu0 0.0
      %4243 = vmatpush1.msra.mxu0 0.0
      %4244 = vmatprep.subr.mxu0 0.0
      %4245 = vmatpush1.msra.mxu0 0.0
      %4246 = vmatprep.subr.mxu0 0.0
      %4247 = vmatpush1.msra.mxu0 0.0
      %4248 = vmatprep.subr.mxu0 0.0
      %4249 = vmatpush1.msra.mxu0 0.0
      %4250 = vmatprep.subr.mxu0 0.0
      %4251 = vmatpush1.msra.mxu0 0.0
      %4252 = vmatprep.subr.mxu0 0.0
      %4253 = vmatpush1.msra.mxu0 0.0
      %4254 = vmatprep.subr.mxu0 0.0
      %4255 = vmatpush1.msra.mxu0 0.0
      %4256 = vmatprep.subr.mxu0 0.0
      %4257 = vmatpush1.msra.mxu0 0.0
      %4258 = vmatprep.subr.mxu0 0.0
      %4259 = vmatpush1.msra.mxu0 0.0
      %4260 = vmatprep.subr.mxu0 0.0
      %4261 = vmatpush1.msra.mxu0 0.0
      %4262 = vmatprep.subr.mxu0 0.0
      %4263 = vmatpush1.msra.mxu0 0.0
      %4264 = vmatprep.subr.mxu0 0.0
      %4265 = vmatpush1.msra.mxu0 0.0
      %4266 = vmatprep.subr.mxu0 0.0
      %4267 = vmatpush1.msra.mxu0 0.0
      %4268 = vmatprep.subr.mxu0 0.0
      %4269 = vmatpush1.msra.mxu0 0.0
      %4270 = vmatprep.subr.mxu0 0.0
      %4271 = vmatpush1.msra.mxu0 0.0
      %4272 = vmatprep.mubr.f32.mxu0 0.0
      %4273 = vmatmul.mubr.f32.gmra.mrb[0].mxu0 %v4203
      %v4274 = vpop.f32.mrb[0].mxu0
      %v4275 = vadd.f32 %v4201, %v4274
      %v4276 = vpop.f32.mrb[0].mxu0
      %4277 = vmatprep.mubr.f32.mxu0 0.0
      %4278 = vmatmul.mubr.f32.gmra.mrb[0].mxu0 %v4206
      %v4279 = vpop.f32.mrb[0].mxu0
      %v4280 = vadd.f32 %v4201, %v4279
      %v4281 = vpop.f32.mrb[0].mxu0
      %4282 = vdwg.mxu0
      %4283 = vst.msk [vmem:[%s305] sm:$0xff] %vm571, %v4275
      %4284 = vst.msk [vmem:[%s305 + $0x8] sm:$0xff] %vm571, %v4280
      %p4285 = scmp.lt.s32.totalorder %s19, 1
      %s4286 = scalar_select %p4285, %s19, 1
      %s4287 = smul.addr %s4286, 2
      %s4288 = smul.addr %s4287, 8
      %s4289 = scalar_lea.vmem %s8, %s4288
      // Predicated region
      $region53: #{stvt_forward.1} parent=51 // pred_check
        %p4290 = pneg %p210
      $region54: #{stvt_forward.1} parent=51 // pred_check_branch
        %4292 = sbr.rel (%p4290) target = $region56
      $region55: #{stvt_forward.1} parent=51 // pred_region
        _
      $region56: #{stvt_forward.1} parent=51 // pred_fallthru
        _
    $region52: #{stvt_forward.1} parent=5 // pred_fallthru
      _
    %p4293 = scmp.le.s32.totalorder 2, %s14
    // Predicated region
    $region57: #{stvt_forward.1} parent=5 // pred_check
      %p4294 = pneg %p4293
    $region58: #{stvt_forward.1} parent=5 // pred_check_branch
      %4296 = sbr.rel (%p4294) target = $region60
    $region59: #{stvt_forward.1} parent=5 // pred_region
      %s4297 = ssub.s32 %s14, 2
      // Predicated region
      $region61: #{stvt_forward.1} parent=59 // pred_check
        %p4298 = pneg %p216
      $region62: #{stvt_forward.1} parent=59 // pred_check_branch
        %4300 = sbr.rel (%p4298) target = $region64
      $region63: #{stvt_forward.1} parent=59 // pred_region
        %p4301 = scmp.lt.s32.totalorder %s20, 1
        %s4302 = scalar_select %p4301, %s20, 1
        %s4303 = smul.addr %s4302, 2
        %s4304 = smul.addr %s4303, 8
        %s4305 = scalar_lea.vmem %s8, %s4304
      $region64: #{stvt_forward.1} parent=59 // pred_fallthru
        _
    $region60: #{stvt_forward.1} parent=5 // pred_fallthru
      _
  $region6: #{stvt_forward.1} parent=0 // loop_footer
    %s18 = sadd.s32 1, %s14
  $region7: #{stvt_forward.1} parent=0 // loop_footer_branch
    %13 = sbr.rel target = $region3
  $region8: #{stvt_forward.1} parent=0 // loop_exit
    _

</llo_original>
